<compile_context>
chip_gen: v6e
topology: v6e:2x2x1
jax: 0.10.0
libtpu: 0.0.40
codegen_flags: <defaults>
</compile_context>

<pallas_src>
import jax
import jax.numpy as jnp
from jax import lax
from jax.experimental import pallas as pl
from jax.experimental.pallas import tpu as pltpu

EPS = 1e-5  # torch nn.LayerNorm default eps


# ----------------------------- in-kernel helpers -----------------------------

def _layernorm(x, gamma, beta):
    """LayerNorm over the last axis (biased variance), matching torch."""
    mean = jnp.mean(x, axis=-1, keepdims=True)
    xc = x - mean
    var = jnp.mean(xc * xc, axis=-1, keepdims=True)
    return xc * lax.rsqrt(var + EPS) * gamma + beta


# ------------------------------- fused kernel --------------------------------

def _transformer_kernel(x_ref,
                        a_g_ref, a_b_ref, wq_ref, wk_ref, wv_ref, wo_ref, bo_ref,
                        f_g_ref, f_b_ref, w1_ref, b1_ref, w2_ref, b2_ref,
                        fn_g_ref, fn_b_ref,
                        o_ref, x_acc):
    """Grid = (batch, depth). One batch element, one transformer layer per step.

    x_acc (VMEM scratch, f32) carries the activation across the depth axis.
    """
    l = pl.program_id(1)
    n_layers = pl.num_programs(1)
    heads = wq_ref.shape[1]
    dim_head = wq_ref.shape[3]
    scale = dim_head ** -0.5

    @pl.when(l == 0)
    def _():
        x_acc[...] = x_ref[0].astype(jnp.float32)

    x = x_acc[...]                                              # (N, D) f32

    # ------------------------- attention block -------------------------------
    xn = _layernorm(x, a_g_ref[0, 0], a_b_ref[0, 0])            # (N, D)
    attn_out = jnp.zeros(x.shape, jnp.float32)
    for h in range(heads):                                      # static unroll
        wq = wq_ref[0, h]                                       # (D, dh)
        wk = wk_ref[0, h]
        wv = wv_ref[0, h]
        wo = wo_ref[0, h]                                       # (dh, D)
        qh = jnp.dot(xn, wq, preferred_element_type=jnp.float32)   # (N, dh)
        kh = jnp.dot(xn, wk, preferred_element_type=jnp.float32)
        vh = jnp.dot(xn, wv, preferred_element_type=jnp.float32)
        dots = jnp.dot(qh, kh.T, preferred_element_type=jnp.float32) * scale
        dots = dots - jnp.max(dots, axis=-1, keepdims=True)
        e = jnp.exp(dots)
        p = e * pl.reciprocal(jnp.sum(e, axis=-1, keepdims=True), approx=True)
        oh = jnp.dot(p, vh, preferred_element_type=jnp.float32)    # (N, dh)
        # project this head directly into the output dim and accumulate
        # (equivalent to concat(heads) @ W_out, without the concat).
        attn_out = attn_out + jnp.dot(oh, wo, preferred_element_type=jnp.float32)
    x = x + attn_out + bo_ref[0, 0]                             # residual

    # ------------------------ feed-forward block ------------------------------
    xn = _layernorm(x, f_g_ref[0, 0], f_b_ref[0, 0])
    hdn = jnp.dot(xn, w1_ref[0], preferred_element_type=jnp.float32) + b1_ref[0, 0]
    # torch nn.GELU() default = exact erf form
    hdn = 0.5 * hdn * (1.0 + lax.erf(hdn * (2.0 ** -0.5)))
    x = x + jnp.dot(hdn, w2_ref[0], preferred_element_type=jnp.float32) + b2_ref[0, 0]

    x_acc[...] = x                                              # carry to next layer

    @pl.when(l == n_layers - 1)
    def _():
        o_ref[0] = _layernorm(x, fn_g_ref[0], fn_b_ref[0]).astype(o_ref.dtype)


# ------------------------------- host wrapper ---------------------------------

def transformer_forward(x, params, heads, dim_head):
    B, N, D = x.shape
    depth = params["wq"].shape[0]
    H = params["w1"].shape[-1]

    def per_layer(shape):
        # block indexed by the depth grid axis only
        return pl.BlockSpec(shape, lambda b, l, _s=len(shape): (l,) + (0,) * (_s - 1))

    return pl.pallas_call(
        _transformer_kernel,
        out_shape=jax.ShapeDtypeStruct((B, N, D), x.dtype),
        grid=(B, depth),
        in_specs=[
            pl.BlockSpec((1, N, D), lambda b, l: (b, 0, 0)),          # x
            per_layer((1, 1, D)),                                     # attn LN gamma
            per_layer((1, 1, D)),                                     # attn LN beta
            per_layer((1, heads, D, dim_head)),                       # W_q (head-major)
            per_layer((1, heads, D, dim_head)),                       # W_k
            per_layer((1, heads, D, dim_head)),                       # W_v
            per_layer((1, heads, dim_head, D)),                       # W_out (head-major)
            per_layer((1, 1, D)),                                     # b_out
            per_layer((1, 1, D)),                                     # ff LN gamma
            per_layer((1, 1, D)),                                     # ff LN beta
            per_layer((1, D, H)),                                     # W1
            per_layer((1, 1, H)),                                     # b1
            per_layer((1, H, D)),                                     # W2
            per_layer((1, 1, D)),                                     # b2
            pl.BlockSpec((1, D), lambda b, l: (0, 0)),                # final LN gamma
            pl.BlockSpec((1, D), lambda b, l: (0, 0)),                # final LN beta
        ],
        out_specs=pl.BlockSpec((1, N, D), lambda b, l: (b, 0, 0)),
        scratch_shapes=[pltpu.VMEM((N, D), jnp.float32)],
        compiler_params=pltpu.CompilerParams(
            dimension_semantics=("parallel", "arbitrary")),
    )(x,
      params["a_ln_g"], params["a_ln_b"],
      params["wq"], params["wk"], params["wv"], params["wo"], params["bo"],
      params["f_ln_g"], params["f_ln_b"],
      params["w1"], params["b1"], params["w2"], params["b2"],
      params["fn_g"], params["fn_b"])


# ----------------------------- parameter creation -----------------------------

def init_params(key, dim, depth, heads, dim_head, mlp_dim):
    """Per-layer params stacked on a leading depth axis; attention weights are
    stored head-major: W_q/k/v: (depth, heads, dim, dim_head),
    W_out: (depth, heads, dim_head, dim)."""
    ks = jax.random.split(key, 8)

    def nrm(k, shape, s=0.05):
        return s * jax.random.normal(k, shape, jnp.float32)

    return {
        "a_ln_g": jnp.ones((depth, 1, dim), jnp.float32),
        "a_ln_b": jnp.zeros((depth, 1, dim), jnp.float32),
        "wq": nrm(ks[0], (depth, heads, dim, dim_head)),
        "wk": nrm(ks[1], (depth, heads, dim, dim_head)),
        "wv": nrm(ks[2], (depth, heads, dim, dim_head)),
        "wo": nrm(ks[3], (depth, heads, dim_head, dim)),
        "bo": 0.01 * jax.random.normal(ks[4], (depth, 1, dim), jnp.float32),
        "f_ln_g": jnp.ones((depth, 1, dim), jnp.float32),
        "f_ln_b": jnp.zeros((depth, 1, dim), jnp.float32),
        "w1": nrm(ks[5], (depth, dim, mlp_dim)),
        "b1": jnp.zeros((depth, 1, mlp_dim), jnp.float32),
        "w2": nrm(ks[6], (depth, mlp_dim, dim)),
        "b2": jnp.zeros((depth, 1, dim), jnp.float32),
        "fn_g": jnp.ones((1, dim), jnp.float32),
        "fn_b": jnp.zeros((1, dim), jnp.float32),
    }


# ------------------------------ pure-JAX reference -----------------------------

def ref_transformer(x, p, heads, dim_head):
    def ln(t, g, b):
        m = t.mean(-1, keepdims=True)
        v = ((t - m) ** 2).mean(-1, keepdims=True)
        return (t - m) / jnp.sqrt(v + EPS) * g + b

    depth = p["wq"].shape[0]
    for l in range(depth):
        xn = ln(x, p["a_ln_g"][l, 0], p["a_ln_b"][l, 0])
        q = jnp.einsum("bnd,hde->bhne", xn, p["wq"][l])
        k = jnp.einsum("bnd,hde->bhne", xn, p["wk"][l])
        v = jnp.einsum("bnd,hde->bhne", xn, p["wv"][l])
        dots = jnp.einsum("bhne,bhme->bhnm", q, k) * (dim_head ** -0.5)
        attn = jax.nn.softmax(dots, axis=-1)
        o = jnp.einsum("bhnm,bhme->bhne", attn, v)
        x = x + jnp.einsum("bhne,hed->bnd", o, p["wo"][l]) + p["bo"][l, 0]

        xn = ln(x, p["f_ln_g"][l, 0], p["f_ln_b"][l, 0])
        h = jax.nn.gelu(xn @ p["w1"][l] + p["b1"][l, 0], approximate=False)
        x = x + h @ p["w2"][l] + p["b2"][l, 0]
    return ln(x, p["fn_g"][0], p["fn_b"][0])


# ------------------------------------ main -------------------------------------

if __name__ == "__main__":
    # Small ViT-ish config: dim=32, depth=2, heads=4, dim_head=8, mlp_dim=64
    B, N = 2, 8
    DIM, DEPTH, HEADS, DIM_HEAD, MLP_DIM = 32, 2, 4, 8, 64

    key = jax.random.PRNGKey(0)
    key, kx = jax.random.split(key)
    x = jax.random.normal(kx, (B, N, DIM), jnp.float32)

    params = init_params(key, DIM, DEPTH, HEADS, DIM_HEAD, MLP_DIM)

    out = jax.block_until_ready(transformer_forward(x, params, HEADS, DIM_HEAD))
    assert out.shape == (B, N, DIM) and out.dtype == jnp.float32

    ref = ref_transformer(x, params, HEADS, DIM_HEAD)
    assert jnp.allclose(out, ref, rtol=5e-2, atol=5e-2), "mismatch vs JAX reference"

    print("KERNEL_OK")
</pallas_src>

<mosaic_0001>
module attributes {stable_mosaic.version = 11 : i64} {
  func.func @_transformer_kernel(%arg0: i32, %arg1: i32, %arg2: memref<1x8x32xf32, #tpu.memory_space<vmem>>, %arg3: memref<1x1x32xf32, #tpu.memory_space<vmem>>, %arg4: memref<1x1x32xf32, #tpu.memory_space<vmem>>, %arg5: memref<1x4x32x8xf32, #tpu.memory_space<vmem>>, %arg6: memref<1x4x32x8xf32, #tpu.memory_space<vmem>>, %arg7: memref<1x4x32x8xf32, #tpu.memory_space<vmem>>, %arg8: memref<1x4x8x32xf32, #tpu.memory_space<vmem>>, %arg9: memref<1x1x32xf32, #tpu.memory_space<vmem>>, %arg10: memref<1x1x32xf32, #tpu.memory_space<vmem>>, %arg11: memref<1x1x32xf32, #tpu.memory_space<vmem>>, %arg12: memref<1x32x64xf32, #tpu.memory_space<vmem>>, %arg13: memref<1x1x64xf32, #tpu.memory_space<vmem>>, %arg14: memref<1x64x32xf32, #tpu.memory_space<vmem>>, %arg15: memref<1x1x32xf32, #tpu.memory_space<vmem>>, %arg16: memref<1x32xf32, #tpu.memory_space<vmem>>, %arg17: memref<1x32xf32, #tpu.memory_space<vmem>>, %arg18: memref<1x8x32xf32, #tpu.memory_space<vmem>>, %arg19: memref<8x32xf32, #tpu.memory_space<vmem>>) attributes {dimension_semantics = [#tpu.dimension_semantics<parallel>, #tpu.dimension_semantics<arbitrary>], iteration_bounds = array<i64: 2, 2>, scalar_prefetch = 0 : i64, scratch_operands = 1 : i64, tpu.core_type = #tpu.core_type<tc>, window_params = [{transform_indices = @transform_0, window_bounds = array<i64: 1, 8, 32>}, {transform_indices = @transform_1, window_bounds = array<i64: 1, 1, 32>}, {transform_indices = @transform_2, window_bounds = array<i64: 1, 1, 32>}, {transform_indices = @transform_3, window_bounds = array<i64: 1, 4, 32, 8>}, {transform_indices = @transform_4, window_bounds = array<i64: 1, 4, 32, 8>}, {transform_indices = @transform_5, window_bounds = array<i64: 1, 4, 32, 8>}, {transform_indices = @transform_6, window_bounds = array<i64: 1, 4, 8, 32>}, {transform_indices = @transform_7, window_bounds = array<i64: 1, 1, 32>}, {transform_indices = @transform_8, window_bounds = array<i64: 1, 1, 32>}, {transform_indices = @transform_9, window_bounds = array<i64: 1, 1, 32>}, {transform_indices = @transform_10, window_bounds = array<i64: 1, 32, 64>}, {transform_indices = @transform_11, window_bounds = array<i64: 1, 1, 64>}, {transform_indices = @transform_12, window_bounds = array<i64: 1, 64, 32>}, {transform_indices = @transform_13, window_bounds = array<i64: 1, 1, 32>}, {pipeline_mode = #tpu.pipeline_mode<synchronous>, transform_indices = @transform_14, window_bounds = array<i64: 1, 32>}, {pipeline_mode = #tpu.pipeline_mode<synchronous>, transform_indices = @transform_15, window_bounds = array<i64: 1, 32>}, {transform_indices = @transform_16, window_bounds = array<i64: 1, 8, 32>}]} {
    %c0_i32 = arith.constant 0 : i32
    %0 = arith.cmpi eq, %arg1, %c0_i32 : i32
    %1 = arith.extui %0 : i1 to i32
    %c0_i32_0 = arith.constant 0 : i32
    %2 = arith.cmpi ne, %1, %c0_i32_0 : i32
    scf.if %2 {
      %c0_144 = arith.constant 0 : index
      %c0_145 = arith.constant 0 : index
      %c0_146 = arith.constant 0 : index
      %204 = vector.load %arg2[%c0_144, %c0_145, %c0_146] : memref<1x8x32xf32, #tpu.memory_space<vmem>>, vector<1x8x32xf32>
      %205 = vector.shape_cast %204 : vector<1x8x32xf32> to vector<8x32xf32>
      %c0_147 = arith.constant 0 : index
      %c0_148 = arith.constant 0 : index
      %206 = vector.load %arg19[%c0_147, %c0_148] : memref<8x32xf32, #tpu.memory_space<vmem>>, vector<8x32xf32>
      tpu.vector_store %arg19[%c0_147, %c0_148], %205 {strides = array<i32>} : memref<8x32xf32, #tpu.memory_space<vmem>>, vector<8x32xf32>,
    } else {
    }
    %c0 = arith.constant 0 : index
    %c0_1 = arith.constant 0 : index
    %3 = vector.load %arg19[%c0, %c0_1] : memref<8x32xf32, #tpu.memory_space<vmem>>, vector<8x32xf32>
    %c0_2 = arith.constant 0 : index
    %c0_3 = arith.constant 0 : index
    %c0_4 = arith.constant 0 : index
    %4 = vector.load %arg3[%c0_2, %c0_3, %c0_4] : memref<1x1x32xf32, #tpu.memory_space<vmem>>, vector<1x1x32xf32>
    %5 = vector.shape_cast %4 : vector<1x1x32xf32> to vector<32xf32>
    %c0_5 = arith.constant 0 : index
    %c0_6 = arith.constant 0 : index
    %c0_7 = arith.constant 0 : index
    %6 = vector.load %arg4[%c0_5, %c0_6, %c0_7] : memref<1x1x32xf32, #tpu.memory_space<vmem>>, vector<1x1x32xf32>
    %7 = vector.shape_cast %6 : vector<1x1x32xf32> to vector<32xf32>
    %cst = arith.constant dense<0.000000e+00> : vector<8xf32>
    %8 = vector.multi_reduction <add>, %3, %cst [1] : vector<8x32xf32> to vector<8xf32>
    %9 = vector.shape_cast %8 : vector<8xf32> to vector<8x1xf32>
    %cst_8 = arith.constant 3.200000e+01 : f32
    %10 = vector.broadcast %cst_8 : f32 to vector<8x1xf32>
    %11 = arith.divf %9, %10 : vector<8x1xf32>
    %12 = vector.broadcast %11 : vector<8x1xf32> to vector<8x32xf32>
    %13 = arith.subf %3, %12 : vector<8x32xf32>
    %14 = arith.mulf %13, %13 : vector<8x32xf32>
    %cst_9 = arith.constant dense<0.000000e+00> : vector<8xf32>
    %15 = vector.multi_reduction <add>, %14, %cst_9 [1] : vector<8x32xf32> to vector<8xf32>
    %16 = vector.shape_cast %15 : vector<8xf32> to vector<8x1xf32>
    %cst_10 = arith.constant 3.200000e+01 : f32
    %17 = vector.broadcast %cst_10 : f32 to vector<8x1xf32>
    %18 = arith.divf %16, %17 : vector<8x1xf32>
    %cst_11 = arith.constant 9.99999974E-6 : f32
    %19 = vector.broadcast %cst_11 : f32 to vector<8x1xf32>
    %20 = arith.addf %18, %19 : vector<8x1xf32>
    %21 = math.rsqrt %20 : vector<8x1xf32>
    %22 = vector.broadcast %21 : vector<8x1xf32> to vector<8x32xf32>
    %23 = arith.mulf %13, %22 : vector<8x32xf32>
    %24 = vector.shape_cast %5 : vector<32xf32> to vector<1x32xf32>
    %25 = vector.broadcast %24 : vector<1x32xf32> to vector<8x32xf32>
    %26 = arith.mulf %23, %25 : vector<8x32xf32>
    %27 = vector.shape_cast %7 : vector<32xf32> to vector<1x32xf32>
    %28 = vector.broadcast %27 : vector<1x32xf32> to vector<8x32xf32>
    %29 = arith.addf %26, %28 : vector<8x32xf32>
    %cst_12 = arith.constant 0.000000e+00 : f32
    %30 = vector.broadcast %cst_12 : f32 to vector<8x32xf32>
    %c0_13 = arith.constant 0 : index
    %c0_14 = arith.constant 0 : index
    %c0_15 = arith.constant 0 : index
    %c0_16 = arith.constant 0 : index
    %31 = vector.load %arg5[%c0_13, %c0_14, %c0_15, %c0_16] : memref<1x4x32x8xf32, #tpu.memory_space<vmem>>, vector<1x1x32x8xf32>
    %32 = vector.shape_cast %31 : vector<1x1x32x8xf32> to vector<32x8xf32>
    %c0_17 = arith.constant 0 : index
    %c0_18 = arith.constant 0 : index
    %c0_19 = arith.constant 0 : index
    %c0_20 = arith.constant 0 : index
    %33 = vector.load %arg6[%c0_17, %c0_18, %c0_19, %c0_20] : memref<1x4x32x8xf32, #tpu.memory_space<vmem>>, vector<1x1x32x8xf32>
    %34 = vector.shape_cast %33 : vector<1x1x32x8xf32> to vector<32x8xf32>
    %c0_21 = arith.constant 0 : index
    %c0_22 = arith.constant 0 : index
    %c0_23 = arith.constant 0 : index
    %c0_24 = arith.constant 0 : index
    %35 = vector.load %arg7[%c0_21, %c0_22, %c0_23, %c0_24] : memref<1x4x32x8xf32, #tpu.memory_space<vmem>>, vector<1x1x32x8xf32>
    %36 = vector.shape_cast %35 : vector<1x1x32x8xf32> to vector<32x8xf32>
    %c0_25 = arith.constant 0 : index
    %c0_26 = arith.constant 0 : index
    %c0_27 = arith.constant 0 : index
    %c0_28 = arith.constant 0 : index
    %37 = vector.load %arg8[%c0_25, %c0_26, %c0_27, %c0_28] : memref<1x4x8x32xf32, #tpu.memory_space<vmem>>, vector<1x1x8x32xf32>
    %38 = vector.shape_cast %37 : vector<1x1x8x32xf32> to vector<8x32xf32>
    %cst_29 = arith.constant dense<0.000000e+00> : vector<8x8xf32>
    %39 = tpu.matmul %29, %32, %cst_29 {dimension_numbers = #tpu.dot_dimension_numbers<[1], [0], [0], [1], [0, 0, 1, 1], [], []>} : vector<8x32xf32>, vector<32x8xf32>, vector<8x8xf32> -> vector<8x8xf32>
    %cst_30 = arith.constant dense<0.000000e+00> : vector<8x8xf32>
    %40 = tpu.matmul %29, %34, %cst_30 {dimension_numbers = #tpu.dot_dimension_numbers<[1], [0], [0], [1], [0, 0, 1, 1], [], []>} : vector<8x32xf32>, vector<32x8xf32>, vector<8x8xf32> -> vector<8x8xf32>
    %cst_31 = arith.constant dense<0.000000e+00> : vector<8x8xf32>
    %41 = tpu.matmul %29, %36, %cst_31 {dimension_numbers = #tpu.dot_dimension_numbers<[1], [0], [0], [1], [0, 0, 1, 1], [], []>} : vector<8x32xf32>, vector<32x8xf32>, vector<8x8xf32> -> vector<8x8xf32>
    %42 = tpu.transpose %40, [1, 0] : vector<8x8xf32> -> vector<8x8xf32>
    %cst_32 = arith.constant dense<0.000000e+00> : vector<8x8xf32>
    %43 = tpu.matmul %39, %42, %cst_32 {dimension_numbers = #tpu.dot_dimension_numbers<[1], [0], [0], [1], [0, 0, 1, 1], [], []>} : vector<8x8xf32>, vector<8x8xf32>, vector<8x8xf32> -> vector<8x8xf32>
    %cst_33 = arith.constant 0.353553385 : f32
    %44 = vector.broadcast %cst_33 : f32 to vector<8x8xf32>
    %45 = arith.mulf %43, %44 : vector<8x8xf32>
    %cst_34 = arith.constant dense<0xFF800000> : vector<8xf32>
    %46 = vector.multi_reduction <maximumf>, %45, %cst_34 [1] : vector<8x8xf32> to vector<8xf32>
    %47 = vector.shape_cast %46 : vector<8xf32> to vector<8x1xf32>
    %48 = vector.broadcast %47 : vector<8x1xf32> to vector<8x8xf32>
    %49 = arith.subf %45, %48 : vector<8x8xf32>
    %50 = math.exp %49 : vector<8x8xf32>
    %cst_35 = arith.constant dense<0.000000e+00> : vector<8xf32>
    %51 = vector.multi_reduction <add>, %50, %cst_35 [1] : vector<8x8xf32> to vector<8xf32>
    %52 = vector.shape_cast %51 : vector<8xf32> to vector<8x1xf32>
    %53 = tpu.reciprocal %52 {approx = true} : vector<8x1xf32> -> vector<8x1xf32>
    %54 = vector.broadcast %53 : vector<8x1xf32> to vector<8x8xf32>
    %55 = arith.mulf %50, %54 : vector<8x8xf32>
    %cst_36 = arith.constant dense<0.000000e+00> : vector<8x8xf32>
    %56 = tpu.matmul %55, %41, %cst_36 {dimension_numbers = #tpu.dot_dimension_numbers<[1], [0], [0], [1], [0, 0, 1, 1], [], []>} : vector<8x8xf32>, vector<8x8xf32>, vector<8x8xf32> -> vector<8x8xf32>
    %cst_37 = arith.constant dense<0.000000e+00> : vector<8x32xf32>
    %57 = tpu.matmul %56, %38, %cst_37 {dimension_numbers = #tpu.dot_dimension_numbers<[1], [0], [0], [1], [0, 0, 1, 1], [], []>} : vector<8x8xf32>, vector<8x32xf32>, vector<8x32xf32> -> vector<8x32xf32>
    %58 = arith.addf %30, %57 : vector<8x32xf32>
    %c0_38 = arith.constant 0 : index
    %c1 = arith.constant 1 : index
    %c0_39 = arith.constant 0 : index
    %c0_40 = arith.constant 0 : index
    %59 = vector.load %arg5[%c0_38, %c1, %c0_39, %c0_40] : memref<1x4x32x8xf32, #tpu.memory_space<vmem>>, vector<1x1x32x8xf32>
    %60 = vector.shape_cast %59 : vector<1x1x32x8xf32> to vector<32x8xf32>
    %c0_41 = arith.constant 0 : index
    %c1_42 = arith.constant 1 : index
    %c0_43 = arith.constant 0 : index
    %c0_44 = arith.constant 0 : index
    %61 = vector.load %arg6[%c0_41, %c1_42, %c0_43, %c0_44] : memref<1x4x32x8xf32, #tpu.memory_space<vmem>>, vector<1x1x32x8xf32>
    %62 = vector.shape_cast %61 : vector<1x1x32x8xf32> to vector<32x8xf32>
    %c0_45 = arith.constant 0 : index
    %c1_46 = arith.constant 1 : index
    %c0_47 = arith.constant 0 : index
    %c0_48 = arith.constant 0 : index
    %63 = vector.load %arg7[%c0_45, %c1_46, %c0_47, %c0_48] : memref<1x4x32x8xf32, #tpu.memory_space<vmem>>, vector<1x1x32x8xf32>
    %64 = vector.shape_cast %63 : vector<1x1x32x8xf32> to vector<32x8xf32>
    %c0_49 = arith.constant 0 : index
    %c1_50 = arith.constant 1 : index
    %c0_51 = arith.constant 0 : index
    %c0_52 = arith.constant 0 : index
    %65 = vector.load %arg8[%c0_49, %c1_50, %c0_51, %c0_52] : memref<1x4x8x32xf32, #tpu.memory_space<vmem>>, vector<1x1x8x32xf32>
    %66 = vector.shape_cast %65 : vector<1x1x8x32xf32> to vector<8x32xf32>
    %cst_53 = arith.constant dense<0.000000e+00> : vector<8x8xf32>
    %67 = tpu.matmul %29, %60, %cst_53 {dimension_numbers = #tpu.dot_dimension_numbers<[1], [0], [0], [1], [0, 0, 1, 1], [], []>} : vector<8x32xf32>, vector<32x8xf32>, vector<8x8xf32> -> vector<8x8xf32>
    %cst_54 = arith.constant dense<0.000000e+00> : vector<8x8xf32>
    %68 = tpu.matmul %29, %62, %cst_54 {dimension_numbers = #tpu.dot_dimension_numbers<[1], [0], [0], [1], [0, 0, 1, 1], [], []>} : vector<8x32xf32>, vector<32x8xf32>, vector<8x8xf32> -> vector<8x8xf32>
    %cst_55 = arith.constant dense<0.000000e+00> : vector<8x8xf32>
    %69 = tpu.matmul %29, %64, %cst_55 {dimension_numbers = #tpu.dot_dimension_numbers<[1], [0], [0], [1], [0, 0, 1, 1], [], []>} : vector<8x32xf32>, vector<32x8xf32>, vector<8x8xf32> -> vector<8x8xf32>
    %70 = tpu.transpose %68, [1, 0] : vector<8x8xf32> -> vector<8x8xf32>
    %cst_56 = arith.constant dense<0.000000e+00> : vector<8x8xf32>
    %71 = tpu.matmul %67, %70, %cst_56 {dimension_numbers = #tpu.dot_dimension_numbers<[1], [0], [0], [1], [0, 0, 1, 1], [], []>} : vector<8x8xf32>, vector<8x8xf32>, vector<8x8xf32> -> vector<8x8xf32>
    %cst_57 = arith.constant 0.353553385 : f32
    %72 = vector.broadcast %cst_57 : f32 to vector<8x8xf32>
    %73 = arith.mulf %71, %72 : vector<8x8xf32>
    %cst_58 = arith.constant dense<0xFF800000> : vector<8xf32>
    %74 = vector.multi_reduction <maximumf>, %73, %cst_58 [1] : vector<8x8xf32> to vector<8xf32>
    %75 = vector.shape_cast %74 : vector<8xf32> to vector<8x1xf32>
    %76 = vector.broadcast %75 : vector<8x1xf32> to vector<8x8xf32>
    %77 = arith.subf %73, %76 : vector<8x8xf32>
    %78 = math.exp %77 : vector<8x8xf32>
    %cst_59 = arith.constant dense<0.000000e+00> : vector<8xf32>
    %79 = vector.multi_reduction <add>, %78, %cst_59 [1] : vector<8x8xf32> to vector<8xf32>
    %80 = vector.shape_cast %79 : vector<8xf32> to vector<8x1xf32>
    %81 = tpu.reciprocal %80 {approx = true} : vector<8x1xf32> -> vector<8x1xf32>
    %82 = vector.broadcast %81 : vector<8x1xf32> to vector<8x8xf32>
    %83 = arith.mulf %78, %82 : vector<8x8xf32>
    %cst_60 = arith.constant dense<0.000000e+00> : vector<8x8xf32>
    %84 = tpu.matmul %83, %69, %cst_60 {dimension_numbers = #tpu.dot_dimension_numbers<[1], [0], [0], [1], [0, 0, 1, 1], [], []>} : vector<8x8xf32>, vector<8x8xf32>, vector<8x8xf32> -> vector<8x8xf32>
    %cst_61 = arith.constant dense<0.000000e+00> : vector<8x32xf32>
    %85 = tpu.matmul %84, %66, %cst_61 {dimension_numbers = #tpu.dot_dimension_numbers<[1], [0], [0], [1], [0, 0, 1, 1], [], []>} : vector<8x8xf32>, vector<8x32xf32>, vector<8x32xf32> -> vector<8x32xf32>
    %86 = arith.addf %58, %85 : vector<8x32xf32>
    %c0_62 = arith.constant 0 : index
    %c2 = arith.constant 2 : index
    %c0_63 = arith.constant 0 : index
    %c0_64 = arith.constant 0 : index
    %87 = vector.load %arg5[%c0_62, %c2, %c0_63, %c0_64] : memref<1x4x32x8xf32, #tpu.memory_space<vmem>>, vector<1x1x32x8xf32>
    %88 = vector.shape_cast %87 : vector<1x1x32x8xf32> to vector<32x8xf32>
    %c0_65 = arith.constant 0 : index
    %c2_66 = arith.constant 2 : index
    %c0_67 = arith.constant 0 : index
    %c0_68 = arith.constant 0 : index
    %89 = vector.load %arg6[%c0_65, %c2_66, %c0_67, %c0_68] : memref<1x4x32x8xf32, #tpu.memory_space<vmem>>, vector<1x1x32x8xf32>
    %90 = vector.shape_cast %89 : vector<1x1x32x8xf32> to vector<32x8xf32>
    %c0_69 = arith.constant 0 : index
    %c2_70 = arith.constant 2 : index
    %c0_71 = arith.constant 0 : index
    %c0_72 = arith.constant 0 : index
    %91 = vector.load %arg7[%c0_69, %c2_70, %c0_71, %c0_72] : memref<1x4x32x8xf32, #tpu.memory_space<vmem>>, vector<1x1x32x8xf32>
    %92 = vector.shape_cast %91 : vector<1x1x32x8xf32> to vector<32x8xf32>
    %c0_73 = arith.constant 0 : index
    %c2_74 = arith.constant 2 : index
    %c0_75 = arith.constant 0 : index
    %c0_76 = arith.constant 0 : index
    %93 = vector.load %arg8[%c0_73, %c2_74, %c0_75, %c0_76] : memref<1x4x8x32xf32, #tpu.memory_space<vmem>>, vector<1x1x8x32xf32>
    %94 = vector.shape_cast %93 : vector<1x1x8x32xf32> to vector<8x32xf32>
    %cst_77 = arith.constant dense<0.000000e+00> : vector<8x8xf32>
    %95 = tpu.matmul %29, %88, %cst_77 {dimension_numbers = #tpu.dot_dimension_numbers<[1], [0], [0], [1], [0, 0, 1, 1], [], []>} : vector<8x32xf32>, vector<32x8xf32>, vector<8x8xf32> -> vector<8x8xf32>
    %cst_78 = arith.constant dense<0.000000e+00> : vector<8x8xf32>
    %96 = tpu.matmul %29, %90, %cst_78 {dimension_numbers = #tpu.dot_dimension_numbers<[1], [0], [0], [1], [0, 0, 1, 1], [], []>} : vector<8x32xf32>, vector<32x8xf32>, vector<8x8xf32> -> vector<8x8xf32>
    %cst_79 = arith.constant dense<0.000000e+00> : vector<8x8xf32>
    %97 = tpu.matmul %29, %92, %cst_79 {dimension_numbers = #tpu.dot_dimension_numbers<[1], [0], [0], [1], [0, 0, 1, 1], [], []>} : vector<8x32xf32>, vector<32x8xf32>, vector<8x8xf32> -> vector<8x8xf32>
    %98 = tpu.transpose %96, [1, 0] : vector<8x8xf32> -> vector<8x8xf32>
    %cst_80 = arith.constant dense<0.000000e+00> : vector<8x8xf32>
    %99 = tpu.matmul %95, %98, %cst_80 {dimension_numbers = #tpu.dot_dimension_numbers<[1], [0], [0], [1], [0, 0, 1, 1], [], []>} : vector<8x8xf32>, vector<8x8xf32>, vector<8x8xf32> -> vector<8x8xf32>
    %cst_81 = arith.constant 0.353553385 : f32
    %100 = vector.broadcast %cst_81 : f32 to vector<8x8xf32>
    %101 = arith.mulf %99, %100 : vector<8x8xf32>
    %cst_82 = arith.constant dense<0xFF800000> : vector<8xf32>
    %102 = vector.multi_reduction <maximumf>, %101, %cst_82 [1] : vector<8x8xf32> to vector<8xf32>
    %103 = vector.shape_cast %102 : vector<8xf32> to vector<8x1xf32>
    %104 = vector.broadcast %103 : vector<8x1xf32> to vector<8x8xf32>
    %105 = arith.subf %101, %104 : vector<8x8xf32>
    %106 = math.exp %105 : vector<8x8xf32>
    %cst_83 = arith.constant dense<0.000000e+00> : vector<8xf32>
    %107 = vector.multi_reduction <add>, %106, %cst_83 [1] : vector<8x8xf32> to vector<8xf32>
    %108 = vector.shape_cast %107 : vector<8xf32> to vector<8x1xf32>
    %109 = tpu.reciprocal %108 {approx = true} : vector<8x1xf32> -> vector<8x1xf32>
    %110 = vector.broadcast %109 : vector<8x1xf32> to vector<8x8xf32>
    %111 = arith.mulf %106, %110 : vector<8x8xf32>
    %cst_84 = arith.constant dense<0.000000e+00> : vector<8x8xf32>
    %112 = tpu.matmul %111, %97, %cst_84 {dimension_numbers = #tpu.dot_dimension_numbers<[1], [0], [0], [1], [0, 0, 1, 1], [], []>} : vector<8x8xf32>, vector<8x8xf32>, vector<8x8xf32> -> vector<8x8xf32>
    %cst_85 = arith.constant dense<0.000000e+00> : vector<8x32xf32>
    %113 = tpu.matmul %112, %94, %cst_85 {dimension_numbers = #tpu.dot_dimension_numbers<[1], [0], [0], [1], [0, 0, 1, 1], [], []>} : vector<8x8xf32>, vector<8x32xf32>, vector<8x32xf32> -> vector<8x32xf32>
    %114 = arith.addf %86, %113 : vector<8x32xf32>
    %c0_86 = arith.constant 0 : index
    %c3 = arith.constant 3 : index
    %c0_87 = arith.constant 0 : index
    %c0_88 = arith.constant 0 : index
    %115 = vector.load %arg5[%c0_86, %c3, %c0_87, %c0_88] : memref<1x4x32x8xf32, #tpu.memory_space<vmem>>, vector<1x1x32x8xf32>
    %116 = vector.shape_cast %115 : vector<1x1x32x8xf32> to vector<32x8xf32>
    %c0_89 = arith.constant 0 : index
    %c3_90 = arith.constant 3 : index
    %c0_91 = arith.constant 0 : index
    %c0_92 = arith.constant 0 : index
    %117 = vector.load %arg6[%c0_89, %c3_90, %c0_91, %c0_92] : memref<1x4x32x8xf32, #tpu.memory_space<vmem>>, vector<1x1x32x8xf32>
    %118 = vector.shape_cast %117 : vector<1x1x32x8xf32> to vector<32x8xf32>
    %c0_93 = arith.constant 0 : index
    %c3_94 = arith.constant 3 : index
    %c0_95 = arith.constant 0 : index
    %c0_96 = arith.constant 0 : index
    %119 = vector.load %arg7[%c0_93, %c3_94, %c0_95, %c0_96] : memref<1x4x32x8xf32, #tpu.memory_space<vmem>>, vector<1x1x32x8xf32>
    %120 = vector.shape_cast %119 : vector<1x1x32x8xf32> to vector<32x8xf32>
    %c0_97 = arith.constant 0 : index
    %c3_98 = arith.constant 3 : index
    %c0_99 = arith.constant 0 : index
    %c0_100 = arith.constant 0 : index
    %121 = vector.load %arg8[%c0_97, %c3_98, %c0_99, %c0_100] : memref<1x4x8x32xf32, #tpu.memory_space<vmem>>, vector<1x1x8x32xf32>
    %122 = vector.shape_cast %121 : vector<1x1x8x32xf32> to vector<8x32xf32>
    %cst_101 = arith.constant dense<0.000000e+00> : vector<8x8xf32>
    %123 = tpu.matmul %29, %116, %cst_101 {dimension_numbers = #tpu.dot_dimension_numbers<[1], [0], [0], [1], [0, 0, 1, 1], [], []>} : vector<8x32xf32>, vector<32x8xf32>, vector<8x8xf32> -> vector<8x8xf32>
    %cst_102 = arith.constant dense<0.000000e+00> : vector<8x8xf32>
    %124 = tpu.matmul %29, %118, %cst_102 {dimension_numbers = #tpu.dot_dimension_numbers<[1], [0], [0], [1], [0, 0, 1, 1], [], []>} : vector<8x32xf32>, vector<32x8xf32>, vector<8x8xf32> -> vector<8x8xf32>
    %cst_103 = arith.constant dense<0.000000e+00> : vector<8x8xf32>
    %125 = tpu.matmul %29, %120, %cst_103 {dimension_numbers = #tpu.dot_dimension_numbers<[1], [0], [0], [1], [0, 0, 1, 1], [], []>} : vector<8x32xf32>, vector<32x8xf32>, vector<8x8xf32> -> vector<8x8xf32>
    %126 = tpu.transpose %124, [1, 0] : vector<8x8xf32> -> vector<8x8xf32>
    %cst_104 = arith.constant dense<0.000000e+00> : vector<8x8xf32>
    %127 = tpu.matmul %123, %126, %cst_104 {dimension_numbers = #tpu.dot_dimension_numbers<[1], [0], [0], [1], [0, 0, 1, 1], [], []>} : vector<8x8xf32>, vector<8x8xf32>, vector<8x8xf32> -> vector<8x8xf32>
    %cst_105 = arith.constant 0.353553385 : f32
    %128 = vector.broadcast %cst_105 : f32 to vector<8x8xf32>
    %129 = arith.mulf %127, %128 : vector<8x8xf32>
    %cst_106 = arith.constant dense<0xFF800000> : vector<8xf32>
    %130 = vector.multi_reduction <maximumf>, %129, %cst_106 [1] : vector<8x8xf32> to vector<8xf32>
    %131 = vector.shape_cast %130 : vector<8xf32> to vector<8x1xf32>
    %132 = vector.broadcast %131 : vector<8x1xf32> to vector<8x8xf32>
    %133 = arith.subf %129, %132 : vector<8x8xf32>
    %134 = math.exp %133 : vector<8x8xf32>
    %cst_107 = arith.constant dense<0.000000e+00> : vector<8xf32>
    %135 = vector.multi_reduction <add>, %134, %cst_107 [1] : vector<8x8xf32> to vector<8xf32>
    %136 = vector.shape_cast %135 : vector<8xf32> to vector<8x1xf32>
    %137 = tpu.reciprocal %136 {approx = true} : vector<8x1xf32> -> vector<8x1xf32>
    %138 = vector.broadcast %137 : vector<8x1xf32> to vector<8x8xf32>
    %139 = arith.mulf %134, %138 : vector<8x8xf32>
    %cst_108 = arith.constant dense<0.000000e+00> : vector<8x8xf32>
    %140 = tpu.matmul %139, %125, %cst_108 {dimension_numbers = #tpu.dot_dimension_numbers<[1], [0], [0], [1], [0, 0, 1, 1], [], []>} : vector<8x8xf32>, vector<8x8xf32>, vector<8x8xf32> -> vector<8x8xf32>
    %cst_109 = arith.constant dense<0.000000e+00> : vector<8x32xf32>
    %141 = tpu.matmul %140, %122, %cst_109 {dimension_numbers = #tpu.dot_dimension_numbers<[1], [0], [0], [1], [0, 0, 1, 1], [], []>} : vector<8x8xf32>, vector<8x32xf32>, vector<8x32xf32> -> vector<8x32xf32>
    %142 = arith.addf %114, %141 : vector<8x32xf32>
    %143 = arith.addf %3, %142 : vector<8x32xf32>
    %c0_110 = arith.constant 0 : index
    %c0_111 = arith.constant 0 : index
    %c0_112 = arith.constant 0 : index
    %144 = vector.load %arg9[%c0_110, %c0_111, %c0_112] : memref<1x1x32xf32, #tpu.memory_space<vmem>>, vector<1x1x32xf32>
    %145 = vector.shape_cast %144 : vector<1x1x32xf32> to vector<32xf32>
    %146 = vector.shape_cast %145 : vector<32xf32> to vector<1x32xf32>
    %147 = vector.broadcast %146 : vector<1x32xf32> to vector<8x32xf32>
    %148 = arith.addf %143, %147 : vector<8x32xf32>
    %c0_113 = arith.constant 0 : index
    %c0_114 = arith.constant 0 : index
    %c0_115 = arith.constant 0 : index
    %149 = vector.load %arg10[%c0_113, %c0_114, %c0_115] : memref<1x1x32xf32, #tpu.memory_space<vmem>>, vector<1x1x32xf32>
    %150 = vector.shape_cast %149 : vector<1x1x32xf32> to vector<32xf32>
    %c0_116 = arith.constant 0 : index
    %c0_117 = arith.constant 0 : index
    %c0_118 = arith.constant 0 : index
    %151 = vector.load %arg11[%c0_116, %c0_117, %c0_118] : memref<1x1x32xf32, #tpu.memory_space<vmem>>, vector<1x1x32xf32>
    %152 = vector.shape_cast %151 : vector<1x1x32xf32> to vector<32xf32>
    %cst_119 = arith.constant dense<0.000000e+00> : vector<8xf32>
    %153 = vector.multi_reduction <add>, %148, %cst_119 [1] : vector<8x32xf32> to vector<8xf32>
    %154 = vector.shape_cast %153 : vector<8xf32> to vector<8x1xf32>
    %cst_120 = arith.constant 3.200000e+01 : f32
    %155 = vector.broadcast %cst_120 : f32 to vector<8x1xf32>
    %156 = arith.divf %154, %155 : vector<8x1xf32>
    %157 = vector.broadcast %156 : vector<8x1xf32> to vector<8x32xf32>
    %158 = arith.subf %148, %157 : vector<8x32xf32>
    %159 = arith.mulf %158, %158 : vector<8x32xf32>
    %cst_121 = arith.constant dense<0.000000e+00> : vector<8xf32>
    %160 = vector.multi_reduction <add>, %159, %cst_121 [1] : vector<8x32xf32> to vector<8xf32>
    %161 = vector.shape_cast %160 : vector<8xf32> to vector<8x1xf32>
    %cst_122 = arith.constant 3.200000e+01 : f32
    %162 = vector.broadcast %cst_122 : f32 to vector<8x1xf32>
    %163 = arith.divf %161, %162 : vector<8x1xf32>
    %cst_123 = arith.constant 9.99999974E-6 : f32
    %164 = vector.broadcast %cst_123 : f32 to vector<8x1xf32>
    %165 = arith.addf %163, %164 : vector<8x1xf32>
    %166 = math.rsqrt %165 : vector<8x1xf32>
    %167 = vector.broadcast %166 : vector<8x1xf32> to vector<8x32xf32>
    %168 = arith.mulf %158, %167 : vector<8x32xf32>
    %169 = vector.shape_cast %150 : vector<32xf32> to vector<1x32xf32>
    %170 = vector.broadcast %169 : vector<1x32xf32> to vector<8x32xf32>
    %171 = arith.mulf %168, %170 : vector<8x32xf32>
    %172 = vector.shape_cast %152 : vector<32xf32> to vector<1x32xf32>
    %173 = vector.broadcast %172 : vector<1x32xf32> to vector<8x32xf32>
    %174 = arith.addf %171, %173 : vector<8x32xf32>
    %c0_124 = arith.constant 0 : index
    %c0_125 = arith.constant 0 : index
    %c0_126 = arith.constant 0 : index
    %175 = vector.load %arg12[%c0_124, %c0_125, %c0_126] : memref<1x32x64xf32, #tpu.memory_space<vmem>>, vector<1x32x64xf32>
    %176 = vector.shape_cast %175 : vector<1x32x64xf32> to vector<32x64xf32>
    %cst_127 = arith.constant dense<0.000000e+00> : vector<8x64xf32>
    %177 = tpu.matmul %174, %176, %cst_127 {dimension_numbers = #tpu.dot_dimension_numbers<[1], [0], [0], [1], [0, 0, 1, 1], [], []>} : vector<8x32xf32>, vector<32x64xf32>, vector<8x64xf32> -> vector<8x64xf32>
    %c0_128 = arith.constant 0 : index
    %c0_129 = arith.constant 0 : index
    %c0_130 = arith.constant 0 : index
    %178 = vector.load %arg13[%c0_128, %c0_129, %c0_130] : memref<1x1x64xf32, #tpu.memory_space<vmem>>, vector<1x1x64xf32>
    %179 = vector.shape_cast %178 : vector<1x1x64xf32> to vector<64xf32>
    %180 = vector.shape_cast %179 : vector<64xf32> to vector<1x64xf32>
    %181 = vector.broadcast %180 : vector<1x64xf32> to vector<8x64xf32>
    %182 = arith.addf %177, %181 : vector<8x64xf32>
    %cst_131 = arith.constant 5.000000e-01 : f32
    %183 = vector.broadcast %cst_131 : f32 to vector<8x64xf32>
    %184 = arith.mulf %183, %182 : vector<8x64xf32>
    %cst_132 = arith.constant 0.707106769 : f32
    %185 = vector.broadcast %cst_132 : f32 to vector<8x64xf32>
    %186 = arith.mulf %182, %185 : vector<8x64xf32>
    %187 = math.erf %186 : vector<8x64xf32>
    %cst_133 = arith.constant 1.000000e+00 : f32
    %188 = vector.broadcast %cst_133 : f32 to vector<8x64xf32>
    %189 = arith.addf %188, %187 : vector<8x64xf32>
    %190 = arith.mulf %184, %189 : vector<8x64xf32>
    %c0_134 = arith.constant 0 : index
    %c0_135 = arith.constant 0 : index
    %c0_136 = arith.constant 0 : index
    %191 = vector.load %arg14[%c0_134, %c0_135, %c0_136] : memref<1x64x32xf32, #tpu.memory_space<vmem>>, vector<1x64x32xf32>
    %192 = vector.shape_cast %191 : vector<1x64x32xf32> to vector<64x32xf32>
    %cst_137 = arith.constant dense<0.000000e+00> : vector<8x32xf32>
    %193 = tpu.matmul %190, %192, %cst_137 {dimension_numbers = #tpu.dot_dimension_numbers<[1], [0], [0], [1], [0, 0, 1, 1], [], []>} : vector<8x64xf32>, vector<64x32xf32>, vector<8x32xf32> -> vector<8x32xf32>
    %194 = arith.addf %148, %193 : vector<8x32xf32>
    %c0_138 = arith.constant 0 : index
    %c0_139 = arith.constant 0 : index
    %c0_140 = arith.constant 0 : index
    %195 = vector.load %arg15[%c0_138, %c0_139, %c0_140] : memref<1x1x32xf32, #tpu.memory_space<vmem>>, vector<1x1x32xf32>
    %196 = vector.shape_cast %195 : vector<1x1x32xf32> to vector<32xf32>
    %197 = vector.shape_cast %196 : vector<32xf32> to vector<1x32xf32>
    %198 = vector.broadcast %197 : vector<1x32xf32> to vector<8x32xf32>
    %199 = arith.addf %194, %198 : vector<8x32xf32>
    %c0_141 = arith.constant 0 : index
    %c0_142 = arith.constant 0 : index
    %200 = vector.load %arg19[%c0_141, %c0_142] : memref<8x32xf32, #tpu.memory_space<vmem>>, vector<8x32xf32>
    tpu.vector_store %arg19[%c0_141, %c0_142], %199 {strides = array<i32>} : memref<8x32xf32, #tpu.memory_space<vmem>>, vector<8x32xf32>,
    %c1_i32 = arith.constant 1 : i32
    %201 = arith.cmpi eq, %arg1, %c1_i32 : i32
    %202 = arith.extui %201 : i1 to i32
    %c0_i32_143 = arith.constant 0 : i32
    %203 = arith.cmpi ne, %202, %c0_i32_143 : i32
    scf.if %203 {
      %c0_144 = arith.constant 0 : index
      %c0_145 = arith.constant 0 : index
      %204 = vector.load %arg16[%c0_144, %c0_145] : memref<1x32xf32, #tpu.memory_space<vmem>>, vector<1x32xf32>
      %205 = vector.shape_cast %204 : vector<1x32xf32> to vector<32xf32>
      %c0_146 = arith.constant 0 : index
      %c0_147 = arith.constant 0 : index
      %206 = vector.load %arg17[%c0_146, %c0_147] : memref<1x32xf32, #tpu.memory_space<vmem>>, vector<1x32xf32>
      %207 = vector.shape_cast %206 : vector<1x32xf32> to vector<32xf32>
      %cst_148 = arith.constant dense<0.000000e+00> : vector<8xf32>
      %208 = vector.multi_reduction <add>, %199, %cst_148 [1] : vector<8x32xf32> to vector<8xf32>
      %209 = vector.shape_cast %208 : vector<8xf32> to vector<8x1xf32>
      %cst_149 = arith.constant 3.200000e+01 : f32
      %210 = vector.broadcast %cst_149 : f32 to vector<8x1xf32>
      %211 = arith.divf %209, %210 : vector<8x1xf32>
      %212 = vector.broadcast %211 : vector<8x1xf32> to vector<8x32xf32>
      %213 = arith.subf %199, %212 : vector<8x32xf32>
      %214 = arith.mulf %213, %213 : vector<8x32xf32>
      %cst_150 = arith.constant dense<0.000000e+00> : vector<8xf32>
      %215 = vector.multi_reduction <add>, %214, %cst_150 [1] : vector<8x32xf32> to vector<8xf32>
      %216 = vector.shape_cast %215 : vector<8xf32> to vector<8x1xf32>
      %cst_151 = arith.constant 3.200000e+01 : f32
      %217 = vector.broadcast %cst_151 : f32 to vector<8x1xf32>
      %218 = arith.divf %216, %217 : vector<8x1xf32>
      %cst_152 = arith.constant 9.99999974E-6 : f32
      %219 = vector.broadcast %cst_152 : f32 to vector<8x1xf32>
      %220 = arith.addf %218, %219 : vector<8x1xf32>
      %221 = math.rsqrt %220 : vector<8x1xf32>
      %222 = vector.broadcast %221 : vector<8x1xf32> to vector<8x32xf32>
      %223 = arith.mulf %213, %222 : vector<8x32xf32>
      %224 = vector.shape_cast %205 : vector<32xf32> to vector<1x32xf32>
      %225 = vector.broadcast %224 : vector<1x32xf32> to vector<8x32xf32>
      %226 = arith.mulf %223, %225 : vector<8x32xf32>
      %227 = vector.shape_cast %207 : vector<32xf32> to vector<1x32xf32>
      %228 = vector.broadcast %227 : vector<1x32xf32> to vector<8x32xf32>
      %229 = arith.addf %226, %228 : vector<8x32xf32>
      %c0_153 = arith.constant 0 : index
      %c0_154 = arith.constant 0 : index
      %c0_155 = arith.constant 0 : index
      %230 = vector.load %arg18[%c0_153, %c0_154, %c0_155] : memref<1x8x32xf32, #tpu.memory_space<vmem>>, vector<1x8x32xf32>
      %231 = vector.shape_cast %230 : vector<1x8x32xf32> to vector<8x32xf32>
      %232 = vector.shape_cast %229 : vector<8x32xf32> to vector<1x8x32xf32>
      tpu.vector_store %arg18[%c0_153, %c0_154, %c0_155], %232 {strides = array<i32>} : memref<1x8x32xf32, #tpu.memory_space<vmem>>, vector<1x8x32xf32>,
    } else {
    }
    return
  }
  func.func @transform_0(%arg0: i32, %arg1: i32) -> (i32, i32, i32) {
    %c0_i32 = arith.constant 0 : i32
    %c0_i32_0 = arith.constant 0 : i32
    %c0_i32_1 = arith.constant 0 : i32
    return %arg0, %c0_i32, %c0_i32_0 : i32, i32, i32
  }
  func.func @transform_1(%arg0: i32, %arg1: i32) -> (i32, i32, i32) {
    %c0_i32 = arith.constant 0 : i32
    %c0_i32_0 = arith.constant 0 : i32
    %c0_i32_1 = arith.constant 0 : i32
    return %arg1, %c0_i32, %c0_i32_0 : i32, i32, i32
  }
  func.func @transform_2(%arg0: i32, %arg1: i32) -> (i32, i32, i32) {
    %c0_i32 = arith.constant 0 : i32
    %c0_i32_0 = arith.constant 0 : i32
    %c0_i32_1 = arith.constant 0 : i32
    return %arg1, %c0_i32, %c0_i32_0 : i32, i32, i32
  }
  func.func @transform_3(%arg0: i32, %arg1: i32) -> (i32, i32, i32, i32) {
    %c0_i32 = arith.constant 0 : i32
    %c0_i32_0 = arith.constant 0 : i32
    %c0_i32_1 = arith.constant 0 : i32
    %c0_i32_2 = arith.constant 0 : i32
    return %arg1, %c0_i32, %c0_i32_0, %c0_i32_1 : i32, i32, i32, i32
  }
  func.func @transform_4(%arg0: i32, %arg1: i32) -> (i32, i32, i32, i32) {
    %c0_i32 = arith.constant 0 : i32
    %c0_i32_0 = arith.constant 0 : i32
    %c0_i32_1 = arith.constant 0 : i32
    %c0_i32_2 = arith.constant 0 : i32
    return %arg1, %c0_i32, %c0_i32_0, %c0_i32_1 : i32, i32, i32, i32
  }
  func.func @transform_5(%arg0: i32, %arg1: i32) -> (i32, i32, i32, i32) {
    %c0_i32 = arith.constant 0 : i32
    %c0_i32_0 = arith.constant 0 : i32
    %c0_i32_1 = arith.constant 0 : i32
    %c0_i32_2 = arith.constant 0 : i32
    return %arg1, %c0_i32, %c0_i32_0, %c0_i32_1 : i32, i32, i32, i32
  }
  func.func @transform_6(%arg0: i32, %arg1: i32) -> (i32, i32, i32, i32) {
    %c0_i32 = arith.constant 0 : i32
    %c0_i32_0 = arith.constant 0 : i32
    %c0_i32_1 = arith.constant 0 : i32
    %c0_i32_2 = arith.constant 0 : i32
    return %arg1, %c0_i32, %c0_i32_0, %c0_i32_1 : i32, i32, i32, i32
  }
  func.func @transform_7(%arg0: i32, %arg1: i32) -> (i32, i32, i32) {
    %c0_i32 = arith.constant 0 : i32
    %c0_i32_0 = arith.constant 0 : i32
    %c0_i32_1 = arith.constant 0 : i32
    return %arg1, %c0_i32, %c0_i32_0 : i32, i32, i32
  }
  func.func @transform_8(%arg0: i32, %arg1: i32) -> (i32, i32, i32) {
    %c0_i32 = arith.constant 0 : i32
    %c0_i32_0 = arith.constant 0 : i32
    %c0_i32_1 = arith.constant 0 : i32
    return %arg1, %c0_i32, %c0_i32_0 : i32, i32, i32
  }
  func.func @transform_9(%arg0: i32, %arg1: i32) -> (i32, i32, i32) {
    %c0_i32 = arith.constant 0 : i32
    %c0_i32_0 = arith.constant 0 : i32
    %c0_i32_1 = arith.constant 0 : i32
    return %arg1, %c0_i32, %c0_i32_0 : i32, i32, i32
  }
  func.func @transform_10(%arg0: i32, %arg1: i32) -> (i32, i32, i32) {
    %c0_i32 = arith.constant 0 : i32
    %c0_i32_0 = arith.constant 0 : i32
    %c0_i32_1 = arith.constant 0 : i32
    return %arg1, %c0_i32, %c0_i32_0 : i32, i32, i32
  }
  func.func @transform_11(%arg0: i32, %arg1: i32) -> (i32, i32, i32) {
    %c0_i32 = arith.constant 0 : i32
    %c0_i32_0 = arith.constant 0 : i32
    %c0_i32_1 = arith.constant 0 : i32
    return %arg1, %c0_i32, %c0_i32_0 : i32, i32, i32
  }
  func.func @transform_12(%arg0: i32, %arg1: i32) -> (i32, i32, i32) {
    %c0_i32 = arith.constant 0 : i32
    %c0_i32_0 = arith.constant 0 : i32
    %c0_i32_1 = arith.constant 0 : i32
    return %arg1, %c0_i32, %c0_i32_0 : i32, i32, i32
  }
  func.func @transform_13(%arg0: i32, %arg1: i32) -> (i32, i32, i32) {
    %c0_i32 = arith.constant 0 : i32
    %c0_i32_0 = arith.constant 0 : i32
    %c0_i32_1 = arith.constant 0 : i32
    return %arg1, %c0_i32, %c0_i32_0 : i32, i32, i32
  }
  func.func @transform_14(%arg0: i32, %arg1: i32) -> (i32, i32) {
    %c0_i32 = arith.constant 0 : i32
    %c0_i32_0 = arith.constant 0 : i32
    %c0_i32_1 = arith.constant 0 : i32
    return %c0_i32, %c0_i32_0 : i32, i32
  }
  func.func @transform_15(%arg0: i32, %arg1: i32) -> (i32, i32) {
    %c0_i32 = arith.constant 0 : i32
    %c0_i32_0 = arith.constant 0 : i32
    %c0_i32_1 = arith.constant 0 : i32
    return %c0_i32, %c0_i32_0 : i32, i32
  }
  func.func @transform_16(%arg0: i32, %arg1: i32) -> (i32, i32, i32) {
    %c0_i32 = arith.constant 0 : i32
    %c0_i32_0 = arith.constant 0 : i32
    %c0_i32_1 = arith.constant 0 : i32
    return %arg0, %c0_i32, %c0_i32_0 : i32, i32, i32
  }
}

</mosaic_0001>

<llo_original>
// kernel: tpu_custom_call.1
$region0: #{tpu_custom_call.1}
  #allocation0 [shape = 'u32[]', space=smem, size = 0x4, offset = 0x4, fixed_abs, tag = 'smem constant byte address 0x4 - core index']
  #allocation1 [shape = 'u32[144,128]{1,0:T(1,128)}', space=vmem, size = 0x12000, scoped, tag = 'internal scratch']
  #allocation2 [shape = 'f32[8,32]{1,0:T(8,128)}', space=vmem, size = 0x1000, scoped, tag = 'scratch operand']
  %s0 = inlined_call_operand.vmem [shape: f32[2,8,32], index: 0, kind: input, shape index: {}]
  %s1 = inlined_call_operand.vmem [shape: f32[2,1,32], index: 1, kind: input, shape index: {}]
  %s2 = inlined_call_operand.vmem [shape: f32[2,1,32], index: 2, kind: input, shape index: {}]
  %s3 = inlined_call_operand.vmem [shape: f32[2,4,32,8], index: 3, kind: input, shape index: {}]
  %s4 = inlined_call_operand.vmem [shape: f32[2,4,32,8], index: 4, kind: input, shape index: {}]
  %s5 = inlined_call_operand.vmem [shape: f32[2,4,32,8], index: 5, kind: input, shape index: {}]
  %s6 = inlined_call_operand.vmem [shape: f32[2,4,8,32], index: 6, kind: input, shape index: {}]
  %s7 = inlined_call_operand.vmem [shape: f32[2,1,32], index: 7, kind: input, shape index: {}]
  %s8 = inlined_call_operand.vmem [shape: f32[2,1,32], index: 8, kind: input, shape index: {}]
  %s9 = inlined_call_operand.vmem [shape: f32[2,1,32], index: 9, kind: input, shape index: {}]
  %s10 = inlined_call_operand.vmem [shape: f32[2,32,64], index: 10, kind: input, shape index: {}]
  %s11 = inlined_call_operand.vmem [shape: f32[2,1,64], index: 11, kind: input, shape index: {}]
  %s12 = inlined_call_operand.vmem [shape: f32[2,64,32], index: 12, kind: input, shape index: {}]
  %s13 = inlined_call_operand.vmem [shape: f32[2,1,32], index: 13, kind: input, shape index: {}]
  %s14 = inlined_call_operand.vmem [shape: f32[1,32], index: 14, kind: input, shape index: {}]
  %s15 = inlined_call_operand.vmem [shape: f32[1,32], index: 15, kind: input, shape index: {}]
  %s16 = inlined_call_operand.hbm [shape: f32[2,8,32], index: 16, kind: output, shape index: {}]
  %s17 = sld [smem:[#allocation0]]
  $region105: #{tpu_custom_call.1} parent=0
    _
  %s19 = ssub.s32 1, %s17
  %s20 = scalar_select 0, %s19, %s17
  $region1: #{tpu_custom_call.1} parent=0
    #allocation3 [shape = 'u8[8192]{0}', space=vmem, size = 0x2000, scoped, tag = 'output window, operand 0']
    #allocation4 [shape = 's32[2]{0}', space=sflag, size = 0x8, scoped, tag = 'scoped memory for tpu_custom_call.1']
    %21 = vsyncpa [#allocation4], 0
    %s22 = scalar_lea.sflag [#allocation4], 1
    %23 = vsyncpa %s22, 0
    loop: start=0, step=1, limit=6
    $region2: #{tpu_custom_call.1} parent=1 // loop_pre_header
      _
    $region3: #{tpu_custom_call.1} parent=1 // loop_header
      %s25 = sphi 0, %s29
      %p26 = scmp.ge.s32.totalorder %s25, 6
      %s32 = sphi 0, %s44
      %s33 = sphi 0, %s40
      %s34 = sphi 0, %s32
      %s35 = sphi 0, %s33
      %s36 = sphi 0, %s34
      %s37 = sphi 0, %s35
      %s47 = sphi 0, %s49
      %s50 = sphi 0, %s47
      %s51 = sphi 0, %s50
      %s67 = sphi 0, %s51
      %s73 = sphi 0, %s75
      %s76 = sphi 0, %s73
      %s77 = sphi 0, %s76
      %s93 = sphi 0, %s77
      %s99 = sphi 0, %s101
      %s102 = sphi 0, %s99
      %s103 = sphi 0, %s102
      %s119 = sphi 0, %s103
      %s125 = sphi 0, %s127
      %s128 = sphi 0, %s125
      %s129 = sphi 0, %s128
      %s145 = sphi 0, %s129
      %s151 = sphi 0, %s153
      %s154 = sphi 0, %s151
      %s155 = sphi 0, %s154
      %s171 = sphi 0, %s155
      %s177 = sphi 0, %s179
      %s180 = sphi 0, %s177
      %s181 = sphi 0, %s180
      %s197 = sphi 0, %s181
      %s203 = sphi 0, %s205
      %s206 = sphi 0, %s203
      %s207 = sphi 0, %s206
      %s223 = sphi 0, %s207
      %s229 = sphi 0, %s231
      %s232 = sphi 0, %s229
      %s233 = sphi 0, %s232
      %s249 = sphi 0, %s233
      %s255 = sphi 0, %s257
      %s258 = sphi 0, %s255
      %s259 = sphi 0, %s258
      %s275 = sphi 0, %s259
      %s281 = sphi 0, %s283
      %s284 = sphi 0, %s281
      %s285 = sphi 0, %s284
      %s301 = sphi 0, %s285
      %s307 = sphi 0, %s309
      %s310 = sphi 0, %s307
      %s311 = sphi 0, %s310
      %s327 = sphi 0, %s311
      %s333 = sphi 0, %s335
      %s336 = sphi 0, %s333
      %s337 = sphi 0, %s336
      %s353 = sphi 0, %s337
      %s359 = sphi 0, %s361
      %s362 = sphi 0, %s359
      %s363 = sphi 0, %s362
      %s379 = sphi 0, %s363
      %s385 = sphi 0, %s387
      %s388 = sphi 0, %s385
      %s389 = sphi 0, %s388
      %s405 = sphi 0, %s389
      %s409 = sphi 0, %s409
      %s411 = sphi 0, %s409
      %s412 = sphi 0, %s411
      %s426 = sphi 0, %s412
      %s430 = sphi 0, %s430
      %s432 = sphi 0, %s430
      %s433 = sphi 0, %s432
      %s447 = sphi 0, %s433
      %s453 = sphi 0, %s455
      %s456 = sphi 0, %s453
      %s457 = sphi 0, %s456
      %s473 = sphi 0, %s457
    $region4: #{tpu_custom_call.1} parent=1 // loop_header_branch
      %28 = sbr.rel (%p26) target = $region8
    $region5: #{tpu_custom_call.1} parent=1 // loop_body
      %s30 = ssub.s32 %s25, 1
      %s31 = ssub.s32 %s25, 2
      %s38 = sadd.s32 1, %s33
      %p39 = scmp.ge.s32.totalorder %s38, 2
      %s40 = scalar_select %p39, 0, %s38
      %s41 = sadd.s32 1, %s32
      %s42 = scalar_select %p39, %s41, %s32
      %p43 = scmp.ge.s32.totalorder %s42, 2
      %s44 = scalar_select %p43, 0, %s42
      %s45 = ssub.s32 %s32, %s44
      %p46 = scmp.eq.s32.totalorder %s45, 0
      %s48 = sadd.s32 %s47, 1
      %s49 = scalar_select %p46, %s47, %s48
      %p52 = pneg %p46
      %p53 = scmp.eq.s32.totalorder %s25, 3
      %p54 = por %p52, %p53
      %p55 = scmp.ne.s32.totalorder %s47, %s50
      %p56 = scmp.eq.s32.totalorder %s25, 0
      %p57 = por %p55, %p56
      %p58 = scmp.ne.s32.totalorder %s47, %s50
      %p59 = scmp.eq.s32.totalorder %s30, 3
      %p60 = por %p58, %p59
      %p61 = scmp.ne.s32.totalorder %s50, %s51
      %p62 = scmp.eq.s32.totalorder %s30, 0
      %p63 = por %p61, %p62
      %p64 = scmp.ne.s32.totalorder %s50, %s51
      %p65 = scmp.eq.s32.totalorder %s31, 3
      %p66 = por %p64, %p65
      %p68 = scmp.ne.s32.totalorder %s51, %s67
      %p69 = scmp.eq.s32.totalorder %s31, 0
      %p70 = por %p68, %p69
      %s71 = ssub.s32 %s33, %s40
      %p72 = scmp.eq.s32.totalorder %s71, 0
      %s74 = sadd.s32 %s73, 1
      %s75 = scalar_select %p72, %s73, %s74
      %p78 = pneg %p72
      %p79 = scmp.eq.s32.totalorder %s25, 3
      %p80 = por %p78, %p79
      %p81 = scmp.ne.s32.totalorder %s73, %s76
      %p82 = scmp.eq.s32.totalorder %s25, 0
      %p83 = por %p81, %p82
      %p84 = scmp.ne.s32.totalorder %s73, %s76
      %p85 = scmp.eq.s32.totalorder %s30, 3
      %p86 = por %p84, %p85
      %p87 = scmp.ne.s32.totalorder %s76, %s77
      %p88 = scmp.eq.s32.totalorder %s30, 0
      %p89 = por %p87, %p88
      %p90 = scmp.ne.s32.totalorder %s76, %s77
      %p91 = scmp.eq.s32.totalorder %s31, 3
      %p92 = por %p90, %p91
      %p94 = scmp.ne.s32.totalorder %s77, %s93
      %p95 = scmp.eq.s32.totalorder %s31, 0
      %p96 = por %p94, %p95
      %s97 = ssub.s32 %s33, %s40
      %p98 = scmp.eq.s32.totalorder %s97, 0
      %s100 = sadd.s32 %s99, 1
      %s101 = scalar_select %p98, %s99, %s100
      %p104 = pneg %p98
      %p105 = scmp.eq.s32.totalorder %s25, 3
      %p106 = por %p104, %p105
      %p107 = scmp.ne.s32.totalorder %s99, %s102
      %p108 = scmp.eq.s32.totalorder %s25, 0
      %p109 = por %p107, %p108
      %p110 = scmp.ne.s32.totalorder %s99, %s102
      %p111 = scmp.eq.s32.totalorder %s30, 3
      %p112 = por %p110, %p111
      %p113 = scmp.ne.s32.totalorder %s102, %s103
      %p114 = scmp.eq.s32.totalorder %s30, 0
      %p115 = por %p113, %p114
      %p116 = scmp.ne.s32.totalorder %s102, %s103
      %p117 = scmp.eq.s32.totalorder %s31, 3
      %p118 = por %p116, %p117
      %p120 = scmp.ne.s32.totalorder %s103, %s119
      %p121 = scmp.eq.s32.totalorder %s31, 0
      %p122 = por %p120, %p121
      %s123 = ssub.s32 %s33, %s40
      %p124 = scmp.eq.s32.totalorder %s123, 0
      %s126 = sadd.s32 %s125, 1
      %s127 = scalar_select %p124, %s125, %s126
      %p130 = pneg %p124
      %p131 = scmp.eq.s32.totalorder %s25, 3
      %p132 = por %p130, %p131
      %p133 = scmp.ne.s32.totalorder %s125, %s128
      %p134 = scmp.eq.s32.totalorder %s25, 0
      %p135 = por %p133, %p134
      %p136 = scmp.ne.s32.totalorder %s125, %s128
      %p137 = scmp.eq.s32.totalorder %s30, 3
      %p138 = por %p136, %p137
      %p139 = scmp.ne.s32.totalorder %s128, %s129
      %p140 = scmp.eq.s32.totalorder %s30, 0
      %p141 = por %p139, %p140
      %p142 = scmp.ne.s32.totalorder %s128, %s129
      %p143 = scmp.eq.s32.totalorder %s31, 3
      %p144 = por %p142, %p143
      %p146 = scmp.ne.s32.totalorder %s129, %s145
      %p147 = scmp.eq.s32.totalorder %s31, 0
      %p148 = por %p146, %p147
      %s149 = ssub.s32 %s33, %s40
      %p150 = scmp.eq.s32.totalorder %s149, 0
      %s152 = sadd.s32 %s151, 1
      %s153 = scalar_select %p150, %s151, %s152
      %p156 = pneg %p150
      %p157 = scmp.eq.s32.totalorder %s25, 3
      %p158 = por %p156, %p157
      %p159 = scmp.ne.s32.totalorder %s151, %s154
      %p160 = scmp.eq.s32.totalorder %s25, 0
      %p161 = por %p159, %p160
      %p162 = scmp.ne.s32.totalorder %s151, %s154
      %p163 = scmp.eq.s32.totalorder %s30, 3
      %p164 = por %p162, %p163
      %p165 = scmp.ne.s32.totalorder %s154, %s155
      %p166 = scmp.eq.s32.totalorder %s30, 0
      %p167 = por %p165, %p166
      %p168 = scmp.ne.s32.totalorder %s154, %s155
      %p169 = scmp.eq.s32.totalorder %s31, 3
      %p170 = por %p168, %p169
      %p172 = scmp.ne.s32.totalorder %s155, %s171
      %p173 = scmp.eq.s32.totalorder %s31, 0
      %p174 = por %p172, %p173
      %s175 = ssub.s32 %s33, %s40
      %p176 = scmp.eq.s32.totalorder %s175, 0
      %s178 = sadd.s32 %s177, 1
      %s179 = scalar_select %p176, %s177, %s178
      %p182 = pneg %p176
      %p183 = scmp.eq.s32.totalorder %s25, 3
      %p184 = por %p182, %p183
      %p185 = scmp.ne.s32.totalorder %s177, %s180
      %p186 = scmp.eq.s32.totalorder %s25, 0
      %p187 = por %p185, %p186
      %p188 = scmp.ne.s32.totalorder %s177, %s180
      %p189 = scmp.eq.s32.totalorder %s30, 3
      %p190 = por %p188, %p189
      %p191 = scmp.ne.s32.totalorder %s180, %s181
      %p192 = scmp.eq.s32.totalorder %s30, 0
      %p193 = por %p191, %p192
      %p194 = scmp.ne.s32.totalorder %s180, %s181
      %p195 = scmp.eq.s32.totalorder %s31, 3
      %p196 = por %p194, %p195
      %p198 = scmp.ne.s32.totalorder %s181, %s197
      %p199 = scmp.eq.s32.totalorder %s31, 0
      %p200 = por %p198, %p199
      %s201 = ssub.s32 %s33, %s40
      %p202 = scmp.eq.s32.totalorder %s201, 0
      %s204 = sadd.s32 %s203, 1
      %s205 = scalar_select %p202, %s203, %s204
      %p208 = pneg %p202
      %p209 = scmp.eq.s32.totalorder %s25, 3
      %p210 = por %p208, %p209
      %p211 = scmp.ne.s32.totalorder %s203, %s206
      %p212 = scmp.eq.s32.totalorder %s25, 0
      %p213 = por %p211, %p212
      %p214 = scmp.ne.s32.totalorder %s203, %s206
      %p215 = scmp.eq.s32.totalorder %s30, 3
      %p216 = por %p214, %p215
      %p217 = scmp.ne.s32.totalorder %s206, %s207
      %p218 = scmp.eq.s32.totalorder %s30, 0
      %p219 = por %p217, %p218
      %p220 = scmp.ne.s32.totalorder %s206, %s207
      %p221 = scmp.eq.s32.totalorder %s31, 3
      %p222 = por %p220, %p221
      %p224 = scmp.ne.s32.totalorder %s207, %s223
      %p225 = scmp.eq.s32.totalorder %s31, 0
      %p226 = por %p224, %p225
      %s227 = ssub.s32 %s33, %s40
      %p228 = scmp.eq.s32.totalorder %s227, 0
      %s230 = sadd.s32 %s229, 1
      %s231 = scalar_select %p228, %s229, %s230
      %p234 = pneg %p228
      %p235 = scmp.eq.s32.totalorder %s25, 3
      %p236 = por %p234, %p235
      %p237 = scmp.ne.s32.totalorder %s229, %s232
      %p238 = scmp.eq.s32.totalorder %s25, 0
      %p239 = por %p237, %p238
      %p240 = scmp.ne.s32.totalorder %s229, %s232
      %p241 = scmp.eq.s32.totalorder %s30, 3
      %p242 = por %p240, %p241
      %p243 = scmp.ne.s32.totalorder %s232, %s233
      %p244 = scmp.eq.s32.totalorder %s30, 0
      %p245 = por %p243, %p244
      %p246 = scmp.ne.s32.totalorder %s232, %s233
      %p247 = scmp.eq.s32.totalorder %s31, 3
      %p248 = por %p246, %p247
      %p250 = scmp.ne.s32.totalorder %s233, %s249
      %p251 = scmp.eq.s32.totalorder %s31, 0
      %p252 = por %p250, %p251
      %s253 = ssub.s32 %s33, %s40
      %p254 = scmp.eq.s32.totalorder %s253, 0
      %s256 = sadd.s32 %s255, 1
      %s257 = scalar_select %p254, %s255, %s256
      %p260 = pneg %p254
      %p261 = scmp.eq.s32.totalorder %s25, 3
      %p262 = por %p260, %p261
      %p263 = scmp.ne.s32.totalorder %s255, %s258
      %p264 = scmp.eq.s32.totalorder %s25, 0
      %p265 = por %p263, %p264
      %p266 = scmp.ne.s32.totalorder %s255, %s258
      %p267 = scmp.eq.s32.totalorder %s30, 3
      %p268 = por %p266, %p267
      %p269 = scmp.ne.s32.totalorder %s258, %s259
      %p270 = scmp.eq.s32.totalorder %s30, 0
      %p271 = por %p269, %p270
      %p272 = scmp.ne.s32.totalorder %s258, %s259
      %p273 = scmp.eq.s32.totalorder %s31, 3
      %p274 = por %p272, %p273
      %p276 = scmp.ne.s32.totalorder %s259, %s275
      %p277 = scmp.eq.s32.totalorder %s31, 0
      %p278 = por %p276, %p277
      %s279 = ssub.s32 %s33, %s40
      %p280 = scmp.eq.s32.totalorder %s279, 0
      %s282 = sadd.s32 %s281, 1
      %s283 = scalar_select %p280, %s281, %s282
      %p286 = pneg %p280
      %p287 = scmp.eq.s32.totalorder %s25, 3
      %p288 = por %p286, %p287
      %p289 = scmp.ne.s32.totalorder %s281, %s284
      %p290 = scmp.eq.s32.totalorder %s25, 0
      %p291 = por %p289, %p290
      %p292 = scmp.ne.s32.totalorder %s281, %s284
      %p293 = scmp.eq.s32.totalorder %s30, 3
      %p294 = por %p292, %p293
      %p295 = scmp.ne.s32.totalorder %s284, %s285
      %p296 = scmp.eq.s32.totalorder %s30, 0
      %p297 = por %p295, %p296
      %p298 = scmp.ne.s32.totalorder %s284, %s285
      %p299 = scmp.eq.s32.totalorder %s31, 3
      %p300 = por %p298, %p299
      %p302 = scmp.ne.s32.totalorder %s285, %s301
      %p303 = scmp.eq.s32.totalorder %s31, 0
      %p304 = por %p302, %p303
      %s305 = ssub.s32 %s33, %s40
      %p306 = scmp.eq.s32.totalorder %s305, 0
      %s308 = sadd.s32 %s307, 1
      %s309 = scalar_select %p306, %s307, %s308
      %p312 = pneg %p306
      %p313 = scmp.eq.s32.totalorder %s25, 3
      %p314 = por %p312, %p313
      %p315 = scmp.ne.s32.totalorder %s307, %s310
      %p316 = scmp.eq.s32.totalorder %s25, 0
      %p317 = por %p315, %p316
      %p318 = scmp.ne.s32.totalorder %s307, %s310
      %p319 = scmp.eq.s32.totalorder %s30, 3
      %p320 = por %p318, %p319
      %p321 = scmp.ne.s32.totalorder %s310, %s311
      %p322 = scmp.eq.s32.totalorder %s30, 0
      %p323 = por %p321, %p322
      %p324 = scmp.ne.s32.totalorder %s310, %s311
      %p325 = scmp.eq.s32.totalorder %s31, 3
      %p326 = por %p324, %p325
      %p328 = scmp.ne.s32.totalorder %s311, %s327
      %p329 = scmp.eq.s32.totalorder %s31, 0
      %p330 = por %p328, %p329
      %s331 = ssub.s32 %s33, %s40
      %p332 = scmp.eq.s32.totalorder %s331, 0
      %s334 = sadd.s32 %s333, 1
      %s335 = scalar_select %p332, %s333, %s334
      %p338 = pneg %p332
      %p339 = scmp.eq.s32.totalorder %s25, 3
      %p340 = por %p338, %p339
      %p341 = scmp.ne.s32.totalorder %s333, %s336
      %p342 = scmp.eq.s32.totalorder %s25, 0
      %p343 = por %p341, %p342
      %p344 = scmp.ne.s32.totalorder %s333, %s336
      %p345 = scmp.eq.s32.totalorder %s30, 3
      %p346 = por %p344, %p345
      %p347 = scmp.ne.s32.totalorder %s336, %s337
      %p348 = scmp.eq.s32.totalorder %s30, 0
      %p349 = por %p347, %p348
      %p350 = scmp.ne.s32.totalorder %s336, %s337
      %p351 = scmp.eq.s32.totalorder %s31, 3
      %p352 = por %p350, %p351
      %p354 = scmp.ne.s32.totalorder %s337, %s353
      %p355 = scmp.eq.s32.totalorder %s31, 0
      %p356 = por %p354, %p355
      %s357 = ssub.s32 %s33, %s40
      %p358 = scmp.eq.s32.totalorder %s357, 0
      %s360 = sadd.s32 %s359, 1
      %s361 = scalar_select %p358, %s359, %s360
      %p364 = pneg %p358
      %p365 = scmp.eq.s32.totalorder %s25, 3
      %p366 = por %p364, %p365
      %p367 = scmp.ne.s32.totalorder %s359, %s362
      %p368 = scmp.eq.s32.totalorder %s25, 0
      %p369 = por %p367, %p368
      %p370 = scmp.ne.s32.totalorder %s359, %s362
      %p371 = scmp.eq.s32.totalorder %s30, 3
      %p372 = por %p370, %p371
      %p373 = scmp.ne.s32.totalorder %s362, %s363
      %p374 = scmp.eq.s32.totalorder %s30, 0
      %p375 = por %p373, %p374
      %p376 = scmp.ne.s32.totalorder %s362, %s363
      %p377 = scmp.eq.s32.totalorder %s31, 3
      %p378 = por %p376, %p377
      %p380 = scmp.ne.s32.totalorder %s363, %s379
      %p381 = scmp.eq.s32.totalorder %s31, 0
      %p382 = por %p380, %p381
      %s383 = ssub.s32 %s33, %s40
      %p384 = scmp.eq.s32.totalorder %s383, 0
      %s386 = sadd.s32 %s385, 1
      %s387 = scalar_select %p384, %s385, %s386
      %p390 = pneg %p384
      %p391 = scmp.eq.s32.totalorder %s25, 3
      %p392 = por %p390, %p391
      %p393 = scmp.ne.s32.totalorder %s385, %s388
      %p394 = scmp.eq.s32.totalorder %s25, 0
      %p395 = por %p393, %p394
      %p396 = scmp.ne.s32.totalorder %s385, %s388
      %p397 = scmp.eq.s32.totalorder %s30, 3
      %p398 = por %p396, %p397
      %p399 = scmp.ne.s32.totalorder %s388, %s389
      %p400 = scmp.eq.s32.totalorder %s30, 0
      %p401 = por %p399, %p400
      %p402 = scmp.ne.s32.totalorder %s388, %s389
      %p403 = scmp.eq.s32.totalorder %s31, 3
      %p404 = por %p402, %p403
      %p406 = scmp.ne.s32.totalorder %s389, %s405
      %p407 = scmp.eq.s32.totalorder %s31, 0
      %p408 = por %p406, %p407
      %s410 = sadd.s32 %s409, 1
      %p413 = scmp.eq.s32.totalorder %s25, 3
      %p414 = scmp.ne.s32.totalorder %s409, %s411
      %p415 = scmp.eq.s32.totalorder %s25, 0
      %p416 = por %p414, %p415
      %p417 = scmp.ne.s32.totalorder %s409, %s411
      %p418 = scmp.eq.s32.totalorder %s30, 3
      %p419 = por %p417, %p418
      %p420 = scmp.ne.s32.totalorder %s411, %s412
      %p421 = scmp.eq.s32.totalorder %s30, 0
      %p422 = por %p420, %p421
      %p423 = scmp.ne.s32.totalorder %s411, %s412
      %p424 = scmp.eq.s32.totalorder %s31, 3
      %p425 = por %p423, %p424
      %p427 = scmp.ne.s32.totalorder %s412, %s426
      %p428 = scmp.eq.s32.totalorder %s31, 0
      %p429 = por %p427, %p428
      %s431 = sadd.s32 %s430, 1
      %p434 = scmp.eq.s32.totalorder %s25, 3
      %p435 = scmp.ne.s32.totalorder %s430, %s432
      %p436 = scmp.eq.s32.totalorder %s25, 0
      %p437 = por %p435, %p436
      %p438 = scmp.ne.s32.totalorder %s430, %s432
      %p439 = scmp.eq.s32.totalorder %s30, 3
      %p440 = por %p438, %p439
      %p441 = scmp.ne.s32.totalorder %s432, %s433
      %p442 = scmp.eq.s32.totalorder %s30, 0
      %p443 = por %p441, %p442
      %p444 = scmp.ne.s32.totalorder %s432, %s433
      %p445 = scmp.eq.s32.totalorder %s31, 3
      %p446 = por %p444, %p445
      %p448 = scmp.ne.s32.totalorder %s433, %s447
      %p449 = scmp.eq.s32.totalorder %s31, 0
      %p450 = por %p448, %p449
      %s451 = ssub.s32 %s32, %s44
      %p452 = scmp.eq.s32.totalorder %s451, 0
      %s454 = sadd.s32 %s453, 1
      %s455 = scalar_select %p452, %s453, %s454
      %p458 = pneg %p452
      %p459 = scmp.eq.s32.totalorder %s25, 3
      %p460 = por %p458, %p459
      %p461 = scmp.ne.s32.totalorder %s453, %s456
      %p462 = scmp.eq.s32.totalorder %s25, 0
      %p463 = por %p461, %p462
      %p464 = scmp.ne.s32.totalorder %s453, %s456
      %p465 = scmp.eq.s32.totalorder %s30, 3
      %p466 = por %p464, %p465
      %p467 = scmp.ne.s32.totalorder %s456, %s457
      %p468 = scmp.eq.s32.totalorder %s30, 0
      %p469 = por %p467, %p468
      %p470 = scmp.ne.s32.totalorder %s456, %s457
      %p471 = scmp.eq.s32.totalorder %s31, 3
      %p472 = por %p470, %p471
      %p474 = scmp.ne.s32.totalorder %s457, %s473
      %p475 = scmp.eq.s32.totalorder %s31, 0
      %p476 = por %p474, %p475
      %p477 = scmp.le.s32.totalorder 1, %s25
      %p478 = scmp.lt.s32.totalorder %s25, 5
      %p479 = pnand %p477, %p478
      %p480 = pneg %p479
      // Predicated region
      $region9: #{tpu_custom_call.1} parent=5 // pred_check
        _
      $region10: #{tpu_custom_call.1} parent=5 // pred_check_branch
        %482 = sbr.rel (%p479) target = $region12
      $region11: #{tpu_custom_call.1} parent=5 // pred_region
        %s483 = ssub.s32 %s25, 1
        // Predicated region
        $region13: #{tpu_custom_call.1} parent=11 // pred_check
          %p484 = pneg %p422
        $region14: #{tpu_custom_call.1} parent=11 // pred_check_branch
          %486 = sbr.rel (%p484) target = $region16
        $region15: #{tpu_custom_call.1} parent=11 // pred_region
          _
        $region16: #{tpu_custom_call.1} parent=11 // pred_fallthru
          _
        // Predicated region
        $region17: #{tpu_custom_call.1} parent=11 // pred_check
          %p487 = pneg %p443
        $region18: #{tpu_custom_call.1} parent=11 // pred_check_branch
          %489 = sbr.rel (%p487) target = $region20
        $region19: #{tpu_custom_call.1} parent=11 // pred_region
          _
        $region20: #{tpu_custom_call.1} parent=11 // pred_fallthru
          _
      $region12: #{tpu_custom_call.1} parent=5 // pred_fallthru
        _
      %p490 = scmp.lt.s32.totalorder %s25, 4
      // Predicated region
      $region21: #{tpu_custom_call.1} parent=5 // pred_check
        %p491 = pneg %p490
      $region22: #{tpu_custom_call.1} parent=5 // pred_check_branch
        %493 = sbr.rel (%p491) target = $region24
      $region23: #{tpu_custom_call.1} parent=5 // pred_region
        // Predicated region
        $region25: #{tpu_custom_call.1} parent=23 // pred_check
          %p494 = pneg %p57
        $region26: #{tpu_custom_call.1} parent=23 // pred_check_branch
          %496 = sbr.rel (%p494) target = $region28
        $region27: #{tpu_custom_call.1} parent=23 // pred_region
          %p497 = scmp.lt.s32.totalorder %s32, 1
          %s498 = scalar_select %p497, %s32, 1
          %s499 = smul.addr %s498, 8
          %s500 = scalar_lea.vmem %s0, %s499
        $region28: #{tpu_custom_call.1} parent=23 // pred_fallthru
          _
        // Predicated region
        $region29: #{tpu_custom_call.1} parent=23 // pred_check
          %p501 = pneg %p83
        $region30: #{tpu_custom_call.1} parent=23 // pred_check_branch
          %503 = sbr.rel (%p501) target = $region32
        $region31: #{tpu_custom_call.1} parent=23 // pred_region
          %p504 = scmp.lt.s32.totalorder %s33, 1
          %s505 = scalar_select %p504, %s33, 1
          %s506 = scalar_lea.vmem %s1, %s505
        $region32: #{tpu_custom_call.1} parent=23 // pred_fallthru
          _
        // Predicated region
        $region33: #{tpu_custom_call.1} parent=23 // pred_check
          %p507 = pneg %p109
        $region34: #{tpu_custom_call.1} parent=23 // pred_check_branch
          %509 = sbr.rel (%p507) target = $region36
        $region35: #{tpu_custom_call.1} parent=23 // pred_region
          %p510 = scmp.lt.s32.totalorder %s33, 1
          %s511 = scalar_select %p510, %s33, 1
          %s512 = scalar_lea.vmem %s2, %s511
        $region36: #{tpu_custom_call.1} parent=23 // pred_fallthru
          _
        // Predicated region
        $region37: #{tpu_custom_call.1} parent=23 // pred_check
          %p513 = pneg %p135
        $region38: #{tpu_custom_call.1} parent=23 // pred_check_branch
          %515 = sbr.rel (%p513) target = $region40
        $region39: #{tpu_custom_call.1} parent=23 // pred_region
          %p516 = scmp.lt.s32.totalorder %s33, 1
          %s517 = scalar_select %p516, %s33, 1
          %s518 = smul.addr %s517, 16
          %s519 = smul.addr %s518, 8
          %s520 = scalar_lea.vmem %s3, %s519
        $region40: #{tpu_custom_call.1} parent=23 // pred_fallthru
          _
        // Predicated region
        $region41: #{tpu_custom_call.1} parent=23 // pred_check
          %p521 = pneg %p161
        $region42: #{tpu_custom_call.1} parent=23 // pred_check_branch
          %523 = sbr.rel (%p521) target = $region44
        $region43: #{tpu_custom_call.1} parent=23 // pred_region
          %p524 = scmp.lt.s32.totalorder %s33, 1
          %s525 = scalar_select %p524, %s33, 1
          %s526 = smul.addr %s525, 16
          %s527 = smul.addr %s526, 8
          %s528 = scalar_lea.vmem %s4, %s527
        $region44: #{tpu_custom_call.1} parent=23 // pred_fallthru
          _
        // Predicated region
        $region45: #{tpu_custom_call.1} parent=23 // pred_check
          %p529 = pneg %p187
        $region46: #{tpu_custom_call.1} parent=23 // pred_check_branch
          %531 = sbr.rel (%p529) target = $region48
        $region47: #{tpu_custom_call.1} parent=23 // pred_region
          %p532 = scmp.lt.s32.totalorder %s33, 1
          %s533 = scalar_select %p532, %s33, 1
          %s534 = smul.addr %s533, 16
          %s535 = smul.addr %s534, 8
          %s536 = scalar_lea.vmem %s5, %s535
        $region48: #{tpu_custom_call.1} parent=23 // pred_fallthru
          _
        // Predicated region
        $region49: #{tpu_custom_call.1} parent=23 // pred_check
          %p537 = pneg %p213
        $region50: #{tpu_custom_call.1} parent=23 // pred_check_branch
          %539 = sbr.rel (%p537) target = $region52
        $region51: #{tpu_custom_call.1} parent=23 // pred_region
          %p540 = scmp.lt.s32.totalorder %s33, 1
          %s541 = scalar_select %p540, %s33, 1
          %s542 = smul.addr %s541, 4
          %s543 = smul.addr %s542, 8
          %s544 = scalar_lea.vmem %s6, %s543
        $region52: #{tpu_custom_call.1} parent=23 // pred_fallthru
          _
        // Predicated region
        $region53: #{tpu_custom_call.1} parent=23 // pred_check
          %p545 = pneg %p239
        $region54: #{tpu_custom_call.1} parent=23 // pred_check_branch
          %547 = sbr.rel (%p545) target = $region56
        $region55: #{tpu_custom_call.1} parent=23 // pred_region
          %p548 = scmp.lt.s32.totalorder %s33, 1
          %s549 = scalar_select %p548, %s33, 1
          %s550 = scalar_lea.vmem %s7, %s549
        $region56: #{tpu_custom_call.1} parent=23 // pred_fallthru
          _
        // Predicated region
        $region57: #{tpu_custom_call.1} parent=23 // pred_check
          %p551 = pneg %p265
        $region58: #{tpu_custom_call.1} parent=23 // pred_check_branch
          %553 = sbr.rel (%p551) target = $region60
        $region59: #{tpu_custom_call.1} parent=23 // pred_region
          %p554 = scmp.lt.s32.totalorder %s33, 1
          %s555 = scalar_select %p554, %s33, 1
          %s556 = scalar_lea.vmem %s8, %s555
        $region60: #{tpu_custom_call.1} parent=23 // pred_fallthru
          _
        // Predicated region
        $region61: #{tpu_custom_call.1} parent=23 // pred_check
          %p557 = pneg %p291
        $region62: #{tpu_custom_call.1} parent=23 // pred_check_branch
          %559 = sbr.rel (%p557) target = $region64
        $region63: #{tpu_custom_call.1} parent=23 // pred_region
          %p560 = scmp.lt.s32.totalorder %s33, 1
          %s561 = scalar_select %p560, %s33, 1
          %s562 = scalar_lea.vmem %s9, %s561
        $region64: #{tpu_custom_call.1} parent=23 // pred_fallthru
          _
        // Predicated region
        $region65: #{tpu_custom_call.1} parent=23 // pred_check
          %p563 = pneg %p317
        $region66: #{tpu_custom_call.1} parent=23 // pred_check_branch
          %565 = sbr.rel (%p563) target = $region68
        $region67: #{tpu_custom_call.1} parent=23 // pred_region
          %p566 = scmp.lt.s32.totalorder %s33, 1
          %s567 = scalar_select %p566, %s33, 1
          %s568 = smul.addr %s567, 4
          %s569 = smul.addr %s568, 8
          %s570 = scalar_lea.vmem %s10, %s569
        $region68: #{tpu_custom_call.1} parent=23 // pred_fallthru
          _
        // Predicated region
        $region69: #{tpu_custom_call.1} parent=23 // pred_check
          %p571 = pneg %p343
        $region70: #{tpu_custom_call.1} parent=23 // pred_check_branch
          %573 = sbr.rel (%p571) target = $region72
        $region71: #{tpu_custom_call.1} parent=23 // pred_region
          %p574 = scmp.lt.s32.totalorder %s33, 1
          %s575 = scalar_select %p574, %s33, 1
          %s576 = scalar_lea.vmem %s11, %s575
        $region72: #{tpu_custom_call.1} parent=23 // pred_fallthru
          _
        // Predicated region
        $region73: #{tpu_custom_call.1} parent=23 // pred_check
          %p577 = pneg %p369
        $region74: #{tpu_custom_call.1} parent=23 // pred_check_branch
          %579 = sbr.rel (%p577) target = $region76
        $region75: #{tpu_custom_call.1} parent=23 // pred_region
          %p580 = scmp.lt.s32.totalorder %s33, 1
          %s581 = scalar_select %p580, %s33, 1
          %s582 = smul.addr %s581, 8
          %s583 = smul.addr %s582, 8
          %s584 = scalar_lea.vmem %s12, %s583
        $region76: #{tpu_custom_call.1} parent=23 // pred_fallthru
          _
        // Predicated region
        $region77: #{tpu_custom_call.1} parent=23 // pred_check
          %p585 = pneg %p395
        $region78: #{tpu_custom_call.1} parent=23 // pred_check_branch
          %587 = sbr.rel (%p585) target = $region80
        $region79: #{tpu_custom_call.1} parent=23 // pred_region
          %p588 = scmp.lt.s32.totalorder %s33, 1
          %s589 = scalar_select %p588, %s33, 1
          %s590 = scalar_lea.vmem %s13, %s589
        $region80: #{tpu_custom_call.1} parent=23 // pred_fallthru
          _
      $region24: #{tpu_custom_call.1} parent=5 // pred_fallthru
        _
      %p591 = scmp.le.s32.totalorder 1, %s25
      %p592 = scmp.lt.s32.totalorder %s25, 5
      %p593 = pnand %p591, %p592
      %p594 = pneg %p593
      // Predicated region
      $region81: #{tpu_custom_call.1} parent=5 // pred_check
        _
      $region82: #{tpu_custom_call.1} parent=5 // pred_check_branch
        %596 = sbr.rel (%p593) target = $region84
      $region83: #{tpu_custom_call.1} parent=5 // pred_region
        %s597 = ssub.s32 %s25, 1
        %p598 = scmp.lt.s32.totalorder %s34, 1
        %s599 = scalar_select %p598, %s34, 1
        %s600 = smul.addr %s599, 8
        %s601 = scalar_lea.vmem %s0, %s600
        %p602 = pneg %p63
        %p603 = pneg %p60
        %p604 = scmp.lt.s32.totalorder %s35, 1
        %s605 = scalar_select %p604, %s35, 1
        %s606 = scalar_lea.vmem %s1, %s605
        %p607 = pneg %p89
        %p608 = pneg %p86
        %p609 = scmp.lt.s32.totalorder %s35, 1
        %s610 = scalar_select %p609, %s35, 1
        %s611 = scalar_lea.vmem %s2, %s610
        %p612 = pneg %p115
        %p613 = pneg %p112
        %p614 = scmp.lt.s32.totalorder %s35, 1
        %s615 = scalar_select %p614, %s35, 1
        %s616 = smul.addr %s615, 16
        %s617 = smul.addr %s616, 8
        %s618 = scalar_lea.vmem %s3, %s617
        %p619 = pneg %p141
        %p620 = pneg %p138
        %p621 = scmp.lt.s32.totalorder %s35, 1
        %s622 = scalar_select %p621, %s35, 1
        %s623 = smul.addr %s622, 16
        %s624 = smul.addr %s623, 8
        %s625 = scalar_lea.vmem %s4, %s624
        %p626 = pneg %p167
        %p627 = pneg %p164
        %p628 = scmp.lt.s32.totalorder %s35, 1
        %s629 = scalar_select %p628, %s35, 1
        %s630 = smul.addr %s629, 16
        %s631 = smul.addr %s630, 8
        %s632 = scalar_lea.vmem %s5, %s631
        %p633 = pneg %p193
        %p634 = pneg %p190
        %p635 = scmp.lt.s32.totalorder %s35, 1
        %s636 = scalar_select %p635, %s35, 1
        %s637 = smul.addr %s636, 4
        %s638 = smul.addr %s637, 8
        %s639 = scalar_lea.vmem %s6, %s638
        %p640 = pneg %p219
        %p641 = pneg %p216
        %p642 = scmp.lt.s32.totalorder %s35, 1
        %s643 = scalar_select %p642, %s35, 1
        %s644 = scalar_lea.vmem %s7, %s643
        %p645 = pneg %p245
        %p646 = pneg %p242
        %p647 = scmp.lt.s32.totalorder %s35, 1
        %s648 = scalar_select %p647, %s35, 1
        %s649 = scalar_lea.vmem %s8, %s648
        %p650 = pneg %p271
        %p651 = pneg %p268
        %p652 = scmp.lt.s32.totalorder %s35, 1
        %s653 = scalar_select %p652, %s35, 1
        %s654 = scalar_lea.vmem %s9, %s653
        %p655 = pneg %p297
        %p656 = pneg %p294
        %p657 = scmp.lt.s32.totalorder %s35, 1
        %s658 = scalar_select %p657, %s35, 1
        %s659 = smul.addr %s658, 4
        %s660 = smul.addr %s659, 8
        %s661 = scalar_lea.vmem %s10, %s660
        %p662 = pneg %p323
        %p663 = pneg %p320
        %p664 = scmp.lt.s32.totalorder %s35, 1
        %s665 = scalar_select %p664, %s35, 1
        %s666 = scalar_lea.vmem %s11, %s665
        %p667 = pneg %p349
        %p668 = pneg %p346
        %p669 = scmp.lt.s32.totalorder %s35, 1
        %s670 = scalar_select %p669, %s35, 1
        %s671 = smul.addr %s670, 8
        %s672 = smul.addr %s671, 8
        %s673 = scalar_lea.vmem %s12, %s672
        %p674 = pneg %p375
        %p675 = pneg %p372
        %p676 = scmp.lt.s32.totalorder %s35, 1
        %s677 = scalar_select %p676, %s35, 1
        %s678 = scalar_lea.vmem %s13, %s677
        %p679 = pneg %p401
        %p680 = pneg %p398
        %p681 = pneg %p422
        %p682 = pneg %p419
        %p683 = pneg %p443
        %p684 = pneg %p440
        %p685 = pneg %p469
        %p686 = pneg %p466
        %s687 = sand.u32 %s456, 1
        %s688 = scalar_lea.sflag [#allocation4], %s687
        %s689 = sand.u32 %s456, 1
        %s690 = smul.addr %s689, 8
        %s691 = scalar_lea.vmem [#allocation3], %s690
        %p692 = scmp.lt.s32.totalorder %s34, 1
        %s693 = scalar_select %p692, %s34, 1
        %s694 = smul.addr %s693, 8
        %s695 = scalar_lea.vmem %s0, %s694
        %p696 = scmp.lt.s32.totalorder %s35, 1
        %s697 = scalar_select %p696, %s35, 1
        %s698 = scalar_lea.vmem %s1, %s697
        %p699 = scmp.lt.s32.totalorder %s35, 1
        %s700 = scalar_select %p699, %s35, 1
        %s701 = scalar_lea.vmem %s2, %s700
        %p702 = scmp.lt.s32.totalorder %s35, 1
        %s703 = scalar_select %p702, %s35, 1
        %s704 = smul.addr %s703, 16
        %s705 = smul.addr %s704, 8
        %s706 = scalar_lea.vmem %s3, %s705
        %p707 = scmp.lt.s32.totalorder %s35, 1
        %s708 = scalar_select %p707, %s35, 1
        %s709 = smul.addr %s708, 16
        %s710 = smul.addr %s709, 8
        %s711 = scalar_lea.vmem %s4, %s710
        %p712 = scmp.lt.s32.totalorder %s35, 1
        %s713 = scalar_select %p712, %s35, 1
        %s714 = smul.addr %s713, 16
        %s715 = smul.addr %s714, 8
        %s716 = scalar_lea.vmem %s5, %s715
        %p717 = scmp.lt.s32.totalorder %s35, 1
        %s718 = scalar_select %p717, %s35, 1
        %s719 = smul.addr %s718, 4
        %s720 = smul.addr %s719, 8
        %s721 = scalar_lea.vmem %s6, %s720
        %p722 = scmp.lt.s32.totalorder %s35, 1
        %s723 = scalar_select %p722, %s35, 1
        %s724 = scalar_lea.vmem %s7, %s723
        %p725 = scmp.lt.s32.totalorder %s35, 1
        %s726 = scalar_select %p725, %s35, 1
        %s727 = scalar_lea.vmem %s8, %s726
        %p728 = scmp.lt.s32.totalorder %s35, 1
        %s729 = scalar_select %p728, %s35, 1
        %s730 = scalar_lea.vmem %s9, %s729
        %p731 = scmp.lt.s32.totalorder %s35, 1
        %s732 = scalar_select %p731, %s35, 1
        %s733 = smul.addr %s732, 4
        %s734 = smul.addr %s733, 8
        %s735 = scalar_lea.vmem %s10, %s734
        %p736 = scmp.lt.s32.totalorder %s35, 1
        %s737 = scalar_select %p736, %s35, 1
        %s738 = scalar_lea.vmem %s11, %s737
        %p739 = scmp.lt.s32.totalorder %s35, 1
        %s740 = scalar_select %p739, %s35, 1
        %s741 = smul.addr %s740, 8
        %s742 = smul.addr %s741, 8
        %s743 = scalar_lea.vmem %s12, %s742
        %p744 = scmp.lt.s32.totalorder %s35, 1
        %s745 = scalar_select %p744, %s35, 1
        %s746 = scalar_lea.vmem %s13, %s745
        %p747 = scmp.eq.s32.totalorder %s35, 0
        // Predicated region
        $region85: #{tpu_custom_call.1} parent=83 // pred_check
          %p748 = pneg %p747
        $region86: #{tpu_custom_call.1} parent=83 // pred_check_branch
          %750 = sbr.rel (%p748) target = $region88
        $region87: #{tpu_custom_call.1} parent=83 // pred_region
          %v751 = vld [vmem:[%s695] sm:$0xff]
          %vm752 = vcmask 261120
          %753 = vst.msk [vmem:[#allocation2] sm:$0xff] %vm752, %v751
        $region88: #{tpu_custom_call.1} parent=83 // pred_fallthru
          _
        %v754 = vld [vmem:[#allocation2] sm:$0xff]
        %v755 = vld [vmem:[%s698] sm:$0x1]
        %v756 = vld [vmem:[%s701] sm:$0x1]
        %vm757 = vcmask 261120
        %v758 = vsel %vm757, %v754, 0.0
        %759 = vadd.xlane.f32.xlu0 %v758
        %v760 = vpop.xlane.xlu0 %759
        %v761 = vrcp.pop 32.0
        %v762 = vmul.f32 %v760, %v761
        %v763 = vsub.f32 %v754, %v762
        %v764 = vmul.f32 %v763, %v763
        %v765 = vsel %vm757, %v764, 0.0
        %766 = vadd.xlane.f32.xlu0 %v765
        %v767 = vpop.xlane.xlu0 %766
        %v768 = vmul.f32 %v767, %v761
        %v769 = vadd.f32 %v768, 1e-05
        %v770 = vrsqrt.pop %v769
        %v771 = vmul.f32 %v763, %v770
        %v773 = vlaneseq
        %v774 = vshrl.u32 %v773, 7
        %v775 = vsub.s32 0, %v774
        %v776 = vrot.slane %v755, %v775
        %v778 = vmul.f32 %v771, %v776
        %v780 = vlaneseq
        %v781 = vshrl.u32 %v780, 7
        %v782 = vsub.s32 0, %v781
        %v783 = vrot.slane %v756, %v782
        %v785 = vadd.f32 %v778, %v783
        %v786 = vld [vmem:[%s706] sm:$0xff]
        %v787 = vld [vmem:[%s706 + $0x8] sm:$0xff]
        %v788 = vld [vmem:[%s706 + $0x10] sm:$0xff]
        %v789 = vld [vmem:[%s706 + $0x18] sm:$0xff]
        %v790 = vld [vmem:[%s711] sm:$0xff]
        %v791 = vld [vmem:[%s711 + $0x8] sm:$0xff]
        %v792 = vld [vmem:[%s711 + $0x10] sm:$0xff]
        %v793 = vld [vmem:[%s711 + $0x18] sm:$0xff]
        %v794 = vld [vmem:[%s716] sm:$0xff]
        %v795 = vld [vmem:[%s716 + $0x8] sm:$0xff]
        %v796 = vld [vmem:[%s716 + $0x10] sm:$0xff]
        %v797 = vld [vmem:[%s716 + $0x18] sm:$0xff]
        %v798 = vld [vmem:[%s721] sm:$0xff]
        %v800 = vsel %vm757, %v785, 0
        %802 = vmatprep.subr.mxu0 0.0
        %803 = vmatpush1.msra.mxu0 0.0
        %804 = vmatprep.subr.mxu0 0.0
        %805 = vmatpush1.msra.mxu0 0.0
        %806 = vmatprep.subr.mxu0 0.0
        %807 = vmatpush1.msra.mxu0 0.0
        %808 = vmatprep.subr.mxu0 0.0
        %809 = vmatpush1.msra.mxu0 0.0
        %810 = vmatprep.subr.mxu0 0.0
        %811 = vmatpush1.msra.mxu0 0.0
        %812 = vmatprep.subr.mxu0 0.0
        %813 = vmatpush1.msra.mxu0 0.0
        %814 = vmatprep.subr.mxu0 0.0
        %815 = vmatpush1.msra.mxu0 0.0
        %816 = vmatprep.subr.mxu0 0.0
        %817 = vmatpush1.msra.mxu0 0.0
        %818 = vmatprep.subr.mxu0 0.0
        %819 = vmatpush1.msra.mxu0 0.0
        %820 = vmatprep.subr.mxu0 0.0
        %821 = vmatpush1.msra.mxu0 0.0
        %822 = vmatprep.subr.mxu0 0.0
        %823 = vmatpush1.msra.mxu0 0.0
        %824 = vmatprep.subr.mxu0 0.0
        %825 = vmatpush1.msra.mxu0 0.0
        %826 = vmatprep.subr.mxu0 0.0
        %827 = vmatpush1.msra.mxu0 %v789
        %828 = vmatprep.subr.mxu0 0.0
        %829 = vmatpush1.msra.mxu0 %v788
        %830 = vmatprep.subr.mxu0 0.0
        %831 = vmatpush1.msra.mxu0 %v787
        %832 = vmatprep.subr.mxu0 0.0
        %833 = vmatpush1.msra.mxu0 %v786
        %834 = vmatprep.subr.mxu0 0.0
        %835 = vmatpush2.msra.mxu0 0.0
        %836 = vmatprep.subr.mxu0 0.0
        %837 = vmatpush2.msra.mxu0 0.0
        %838 = vmatprep.subr.mxu0 0.0
        %839 = vmatpush2.msra.mxu0 0.0
        %840 = vmatprep.subr.mxu0 0.0
        %841 = vmatpush2.msra.mxu0 0.0
        %842 = vmatprep.subr.mxu0 0.0
        %843 = vmatpush2.msra.mxu0 0.0
        %844 = vmatprep.subr.mxu0 0.0
        %845 = vmatpush2.msra.mxu0 0.0
        %846 = vmatprep.subr.mxu0 0.0
        %847 = vmatpush2.msra.mxu0 0.0
        %848 = vmatprep.subr.mxu0 0.0
        %849 = vmatpush2.msra.mxu0 0.0
        %850 = vmatprep.subr.mxu0 0.0
        %851 = vmatpush2.msra.mxu0 0.0
        %852 = vmatprep.subr.mxu0 0.0
        %853 = vmatpush2.msra.mxu0 0.0
        %854 = vmatprep.subr.mxu0 0.0
        %855 = vmatpush2.msra.mxu0 0.0
        %856 = vmatprep.subr.mxu0 0.0
        %857 = vmatpush2.msra.mxu0 0.0
        %858 = vmatprep.subr.mxu0 0.0
        %859 = vmatpush2.msra.mxu0 0.0
        %860 = vmatprep.subr.mxu0 0.0
        %861 = vmatpush2.msra.mxu0 0.0
        %862 = vmatprep.subr.mxu0 0.0
        %863 = vmatpush2.msra.mxu0 0.0
        %864 = vmatprep.subr.mxu0 0.0
        %865 = vmatpush2.msra.mxu0 0.0
        %866 = vmatprep.mubr.f32.mxu0 0.0
        %867 = vmatmul.mubr.f32.gmra.mxu0 %v800
        %v868 = vpop.f32.mrf.mxu0
        %v869 = vadd.f32 0.0, %v868
        %v870 = vpop.f32.mrf.mxu0
        %871 = vdwg.mxu0
        %872 = vmatprep.subr.mxu0 0.0
        %873 = vmatpush1.msra.mxu0 0.0
        %874 = vmatprep.subr.mxu0 0.0
        %875 = vmatpush1.msra.mxu0 0.0
        %876 = vmatprep.subr.mxu0 0.0
        %877 = vmatpush1.msra.mxu0 0.0
        %878 = vmatprep.subr.mxu0 0.0
        %879 = vmatpush1.msra.mxu0 0.0
        %880 = vmatprep.subr.mxu0 0.0
        %881 = vmatpush1.msra.mxu0 0.0
        %882 = vmatprep.subr.mxu0 0.0
        %883 = vmatpush1.msra.mxu0 0.0
        %884 = vmatprep.subr.mxu0 0.0
        %885 = vmatpush1.msra.mxu0 0.0
        %886 = vmatprep.subr.mxu0 0.0
        %887 = vmatpush1.msra.mxu0 0.0
        %888 = vmatprep.subr.mxu0 0.0
        %889 = vmatpush1.msra.mxu0 0.0
        %890 = vmatprep.subr.mxu0 0.0
        %891 = vmatpush1.msra.mxu0 0.0
        %892 = vmatprep.subr.mxu0 0.0
        %893 = vmatpush1.msra.mxu0 0.0
        %894 = vmatprep.subr.mxu0 0.0
        %895 = vmatpush1.msra.mxu0 0.0
        %896 = vmatprep.subr.mxu0 0.0
        %897 = vmatpush1.msra.mxu0 %v793
        %898 = vmatprep.subr.mxu0 0.0
        %899 = vmatpush1.msra.mxu0 %v792
        %900 = vmatprep.subr.mxu0 0.0
        %901 = vmatpush1.msra.mxu0 %v791
        %902 = vmatprep.subr.mxu0 0.0
        %903 = vmatpush1.msra.mxu0 %v790
        %904 = vmatprep.subr.mxu0 0.0
        %905 = vmatpush2.msra.mxu0 0.0
        %906 = vmatprep.subr.mxu0 0.0
        %907 = vmatpush2.msra.mxu0 0.0
        %908 = vmatprep.subr.mxu0 0.0
        %909 = vmatpush2.msra.mxu0 0.0
        %910 = vmatprep.subr.mxu0 0.0
        %911 = vmatpush2.msra.mxu0 0.0
        %912 = vmatprep.subr.mxu0 0.0
        %913 = vmatpush2.msra.mxu0 0.0
        %914 = vmatprep.subr.mxu0 0.0
        %915 = vmatpush2.msra.mxu0 0.0
        %916 = vmatprep.subr.mxu0 0.0
        %917 = vmatpush2.msra.mxu0 0.0
        %918 = vmatprep.subr.mxu0 0.0
        %919 = vmatpush2.msra.mxu0 0.0
        %920 = vmatprep.subr.mxu0 0.0
        %921 = vmatpush2.msra.mxu0 0.0
        %922 = vmatprep.subr.mxu0 0.0
        %923 = vmatpush2.msra.mxu0 0.0
        %924 = vmatprep.subr.mxu0 0.0
        %925 = vmatpush2.msra.mxu0 0.0
        %926 = vmatprep.subr.mxu0 0.0
        %927 = vmatpush2.msra.mxu0 0.0
        %928 = vmatprep.subr.mxu0 0.0
        %929 = vmatpush2.msra.mxu0 0.0
        %930 = vmatprep.subr.mxu0 0.0
        %931 = vmatpush2.msra.mxu0 0.0
        %932 = vmatprep.subr.mxu0 0.0
        %933 = vmatpush2.msra.mxu0 0.0
        %934 = vmatprep.subr.mxu0 0.0
        %935 = vmatpush2.msra.mxu0 0.0
        %936 = vmatprep.mubr.f32.mxu0 0.0
        %937 = vmatmul.mubr.f32.gmra.mxu0 %v800
        %v938 = vpop.f32.mrf.mxu0
        %v939 = vadd.f32 0.0, %v938
        %v940 = vpop.f32.mrf.mxu0
        %941 = vdwg.mxu0
        %942 = vmatprep.subr.mxu0 0.0
        %943 = vmatpush1.msra.mxu0 0.0
        %944 = vmatprep.subr.mxu0 0.0
        %945 = vmatpush1.msra.mxu0 0.0
        %946 = vmatprep.subr.mxu0 0.0
        %947 = vmatpush1.msra.mxu0 0.0
        %948 = vmatprep.subr.mxu0 0.0
        %949 = vmatpush1.msra.mxu0 0.0
        %950 = vmatprep.subr.mxu0 0.0
        %951 = vmatpush1.msra.mxu0 0.0
        %952 = vmatprep.subr.mxu0 0.0
        %953 = vmatpush1.msra.mxu0 0.0
        %954 = vmatprep.subr.mxu0 0.0
        %955 = vmatpush1.msra.mxu0 0.0
        %956 = vmatprep.subr.mxu0 0.0
        %957 = vmatpush1.msra.mxu0 0.0
        %958 = vmatprep.subr.mxu0 0.0
        %959 = vmatpush1.msra.mxu0 0.0
        %960 = vmatprep.subr.mxu0 0.0
        %961 = vmatpush1.msra.mxu0 0.0
        %962 = vmatprep.subr.mxu0 0.0
        %963 = vmatpush1.msra.mxu0 0.0
        %964 = vmatprep.subr.mxu0 0.0
        %965 = vmatpush1.msra.mxu0 0.0
        %966 = vmatprep.subr.mxu0 0.0
        %967 = vmatpush1.msra.mxu0 %v797
        %968 = vmatprep.subr.mxu0 0.0
        %969 = vmatpush1.msra.mxu0 %v796
        %970 = vmatprep.subr.mxu0 0.0
        %971 = vmatpush1.msra.mxu0 %v795
        %972 = vmatprep.subr.mxu0 0.0
        %973 = vmatpush1.msra.mxu0 %v794
        %974 = vmatprep.subr.mxu0 0.0
        %975 = vmatpush2.msra.mxu0 0.0
        %976 = vmatprep.subr.mxu0 0.0
        %977 = vmatpush2.msra.mxu0 0.0
        %978 = vmatprep.subr.mxu0 0.0
        %979 = vmatpush2.msra.mxu0 0.0
        %980 = vmatprep.subr.mxu0 0.0
        %981 = vmatpush2.msra.mxu0 0.0
        %982 = vmatprep.subr.mxu0 0.0
        %983 = vmatpush2.msra.mxu0 0.0
        %984 = vmatprep.subr.mxu0 0.0
        %985 = vmatpush2.msra.mxu0 0.0
        %986 = vmatprep.subr.mxu0 0.0
        %987 = vmatpush2.msra.mxu0 0.0
        %988 = vmatprep.subr.mxu0 0.0
        %989 = vmatpush2.msra.mxu0 0.0
        %990 = vmatprep.subr.mxu0 0.0
        %991 = vmatpush2.msra.mxu0 0.0
        %992 = vmatprep.subr.mxu0 0.0
        %993 = vmatpush2.msra.mxu0 0.0
        %994 = vmatprep.subr.mxu0 0.0
        %995 = vmatpush2.msra.mxu0 0.0
        %996 = vmatprep.subr.mxu0 0.0
        %997 = vmatpush2.msra.mxu0 0.0
        %998 = vmatprep.subr.mxu0 0.0
        %999 = vmatpush2.msra.mxu0 0.0
        %1000 = vmatprep.subr.mxu0 0.0
        %1001 = vmatpush2.msra.mxu0 0.0
        %1002 = vmatprep.subr.mxu0 0.0
        %1003 = vmatpush2.msra.mxu0 0.0
        %1004 = vmatprep.subr.mxu0 0.0
        %1005 = vmatpush2.msra.mxu0 0.0
        %1006 = vmatprep.mubr.f32.mxu0 0.0
        %1007 = vmatmul.mubr.f32.gmra.mxu0 %v800
        %v1008 = vpop.f32.mrf.mxu0
        %v1009 = vadd.f32 0.0, %v1008
        %v1010 = vpop.f32.mrf.mxu0
        %1011 = vdwg.mxu0
        %vm1012 = vcmask 64512
        %v1014 = vsel %vm1012, %v869, 0
        %v1017 = vsel %vm1012, %v939, 0
        %1019 = vmatprep.subr.mxu0 0.0
        %1020 = vmatpush1.xpose.msra.mxu0 0.0
        %1021 = vmatprep.subr.mxu0 0.0
        %1022 = vmatpush1.xpose.msra.mxu0 0.0
        %1023 = vmatprep.subr.mxu0 0.0
        %1024 = vmatpush1.xpose.msra.mxu0 0.0
        %1025 = vmatprep.subr.mxu0 0.0
        %1026 = vmatpush1.xpose.msra.mxu0 0.0
        %1027 = vmatprep.subr.mxu0 0.0
        %1028 = vmatpush1.xpose.msra.mxu0 0.0
        %1029 = vmatprep.subr.mxu0 0.0
        %1030 = vmatpush1.xpose.msra.mxu0 0.0
        %1031 = vmatprep.subr.mxu0 0.0
        %1032 = vmatpush1.xpose.msra.mxu0 0.0
        %1033 = vmatprep.subr.mxu0 0.0
        %1034 = vmatpush1.xpose.msra.mxu0 0.0
        %1035 = vmatprep.subr.mxu0 0.0
        %1036 = vmatpush1.xpose.msra.mxu0 0.0
        %1037 = vmatprep.subr.mxu0 0.0
        %1038 = vmatpush1.xpose.msra.mxu0 0.0
        %1039 = vmatprep.subr.mxu0 0.0
        %1040 = vmatpush1.xpose.msra.mxu0 0.0
        %1041 = vmatprep.subr.mxu0 0.0
        %1042 = vmatpush1.xpose.msra.mxu0 0.0
        %1043 = vmatprep.subr.mxu0 0.0
        %1044 = vmatpush1.xpose.msra.mxu0 0.0
        %1045 = vmatprep.subr.mxu0 0.0
        %1046 = vmatpush1.xpose.msra.mxu0 0.0
        %1047 = vmatprep.subr.mxu0 0.0
        %1048 = vmatpush1.xpose.msra.mxu0 0.0
        %1049 = vmatprep.subr.mxu0 0.0
        %1050 = vmatpush1.xpose.msra.mxu0 %v1017
        %1051 = vmatprep.subr.mxu0 0.0
        %1052 = vmatpush2.xpose.msra.mxu0 0.0
        %1053 = vmatprep.subr.mxu0 0.0
        %1054 = vmatpush2.xpose.msra.mxu0 0.0
        %1055 = vmatprep.subr.mxu0 0.0
        %1056 = vmatpush2.xpose.msra.mxu0 0.0
        %1057 = vmatprep.subr.mxu0 0.0
        %1058 = vmatpush2.xpose.msra.mxu0 0.0
        %1059 = vmatprep.subr.mxu0 0.0
        %1060 = vmatpush2.xpose.msra.mxu0 0.0
        %1061 = vmatprep.subr.mxu0 0.0
        %1062 = vmatpush2.xpose.msra.mxu0 0.0
        %1063 = vmatprep.subr.mxu0 0.0
        %1064 = vmatpush2.xpose.msra.mxu0 0.0
        %1065 = vmatprep.subr.mxu0 0.0
        %1066 = vmatpush2.xpose.msra.mxu0 0.0
        %1067 = vmatprep.subr.mxu0 0.0
        %1068 = vmatpush2.xpose.msra.mxu0 0.0
        %1069 = vmatprep.subr.mxu0 0.0
        %1070 = vmatpush2.xpose.msra.mxu0 0.0
        %1071 = vmatprep.subr.mxu0 0.0
        %1072 = vmatpush2.xpose.msra.mxu0 0.0
        %1073 = vmatprep.subr.mxu0 0.0
        %1074 = vmatpush2.xpose.msra.mxu0 0.0
        %1075 = vmatprep.subr.mxu0 0.0
        %1076 = vmatpush2.xpose.msra.mxu0 0.0
        %1077 = vmatprep.subr.mxu0 0.0
        %1078 = vmatpush2.xpose.msra.mxu0 0.0
        %1079 = vmatprep.subr.mxu0 0.0
        %1080 = vmatpush2.xpose.msra.mxu0 0.0
        %1081 = vmatprep.subr.mxu0 0.0
        %1082 = vmatpush2.xpose.msra.mxu0 0.0
        %1083 = vmatprep.mubr.f32.mxu0 0.0
        %1084 = vmatmul.mubr.f32.gmra.mxu0 %v1014
        %v1085 = vpop.f32.mrf.mxu0
        %v1086 = vadd.f32 0.0, %v1085
        %v1087 = vpop.f32.mrf.mxu0
        %1088 = vdwg.mxu0
        %v1089 = vmul.f32 %v1086, 0.35355338
        %v1090 = vsel %vm1012, %v1089, -inf
        %1091 = vmax.xlane.f32.xlu0 %v1090
        %v1092 = vpop.xlane.xlu0 %1091
        %v1093 = vsub.f32 %v1089, %v1092
        %v1094 = vmul.f32 %v1093, 1.442695
        %v1095 = vpow.pop %v1094
        %v1096 = vsel %vm1012, %v1095, 0.0
        %1097 = vadd.xlane.f32.xlu0 %v1096
        %v1098 = vpop.xlane.xlu0 %1097
        %v1099 = vrcp.pop %v1098
        %v1100 = vmul.f32 %v1095, %v1099
        %v1102 = vsel %vm1012, %v1100, 0
        %1104 = vmatprep.subr.mxu0 0.0
        %1105 = vmatpush1.msra.mxu0 0.0
        %1106 = vmatprep.subr.mxu0 0.0
        %1107 = vmatpush1.msra.mxu0 0.0
        %1108 = vmatprep.subr.mxu0 0.0
        %1109 = vmatpush1.msra.mxu0 0.0
        %1110 = vmatprep.subr.mxu0 0.0
        %1111 = vmatpush1.msra.mxu0 0.0
        %1112 = vmatprep.subr.mxu0 0.0
        %1113 = vmatpush1.msra.mxu0 0.0
        %1114 = vmatprep.subr.mxu0 0.0
        %1115 = vmatpush1.msra.mxu0 0.0
        %1116 = vmatprep.subr.mxu0 0.0
        %1117 = vmatpush1.msra.mxu0 0.0
        %1118 = vmatprep.subr.mxu0 0.0
        %1119 = vmatpush1.msra.mxu0 0.0
        %1120 = vmatprep.subr.mxu0 0.0
        %1121 = vmatpush1.msra.mxu0 0.0
        %1122 = vmatprep.subr.mxu0 0.0
        %1123 = vmatpush1.msra.mxu0 0.0
        %1124 = vmatprep.subr.mxu0 0.0
        %1125 = vmatpush1.msra.mxu0 0.0
        %1126 = vmatprep.subr.mxu0 0.0
        %1127 = vmatpush1.msra.mxu0 0.0
        %1128 = vmatprep.subr.mxu0 0.0
        %1129 = vmatpush1.msra.mxu0 0.0
        %1130 = vmatprep.subr.mxu0 0.0
        %1131 = vmatpush1.msra.mxu0 0.0
        %1132 = vmatprep.subr.mxu0 0.0
        %1133 = vmatpush1.msra.mxu0 0.0
        %1134 = vmatprep.subr.mxu0 0.0
        %1135 = vmatpush1.msra.mxu0 %v1009
        %1136 = vmatprep.subr.mxu0 0.0
        %1137 = vmatpush2.msra.mxu0 0.0
        %1138 = vmatprep.subr.mxu0 0.0
        %1139 = vmatpush2.msra.mxu0 0.0
        %1140 = vmatprep.subr.mxu0 0.0
        %1141 = vmatpush2.msra.mxu0 0.0
        %1142 = vmatprep.subr.mxu0 0.0
        %1143 = vmatpush2.msra.mxu0 0.0
        %1144 = vmatprep.subr.mxu0 0.0
        %1145 = vmatpush2.msra.mxu0 0.0
        %1146 = vmatprep.subr.mxu0 0.0
        %1147 = vmatpush2.msra.mxu0 0.0
        %1148 = vmatprep.subr.mxu0 0.0
        %1149 = vmatpush2.msra.mxu0 0.0
        %1150 = vmatprep.subr.mxu0 0.0
        %1151 = vmatpush2.msra.mxu0 0.0
        %1152 = vmatprep.subr.mxu0 0.0
        %1153 = vmatpush2.msra.mxu0 0.0
        %1154 = vmatprep.subr.mxu0 0.0
        %1155 = vmatpush2.msra.mxu0 0.0
        %1156 = vmatprep.subr.mxu0 0.0
        %1157 = vmatpush2.msra.mxu0 0.0
        %1158 = vmatprep.subr.mxu0 0.0
        %1159 = vmatpush2.msra.mxu0 0.0
        %1160 = vmatprep.subr.mxu0 0.0
        %1161 = vmatpush2.msra.mxu0 0.0
        %1162 = vmatprep.subr.mxu0 0.0
        %1163 = vmatpush2.msra.mxu0 0.0
        %1164 = vmatprep.subr.mxu0 0.0
        %1165 = vmatpush2.msra.mxu0 0.0
        %1166 = vmatprep.subr.mxu0 0.0
        %1167 = vmatpush2.msra.mxu0 0.0
        %1168 = vmatprep.mubr.f32.mxu0 0.0
        %1169 = vmatmul.mubr.f32.gmra.mxu0 %v1102
        %v1170 = vpop.f32.mrf.mxu0
        %v1171 = vadd.f32 0.0, %v1170
        %v1172 = vpop.f32.mrf.mxu0
        %1173 = vdwg.mxu0
        %s1174 = scalar_lea.vmem %s706, 32
        %v1175 = vld [vmem:[%s1174] sm:$0xff]
        %v1176 = vld [vmem:[%s1174 + $0x8] sm:$0xff]
        %v1177 = vld [vmem:[%s1174 + $0x10] sm:$0xff]
        %v1178 = vld [vmem:[%s1174 + $0x18] sm:$0xff]
        %s1179 = scalar_lea.vmem %s711, 32
        %v1180 = vld [vmem:[%s1179] sm:$0xff]
        %v1181 = vld [vmem:[%s1179 + $0x8] sm:$0xff]
        %v1182 = vld [vmem:[%s1179 + $0x10] sm:$0xff]
        %v1183 = vld [vmem:[%s1179 + $0x18] sm:$0xff]
        %s1184 = scalar_lea.vmem %s716, 32
        %v1185 = vld [vmem:[%s1184] sm:$0xff]
        %v1186 = vld [vmem:[%s1184 + $0x8] sm:$0xff]
        %v1187 = vld [vmem:[%s1184 + $0x10] sm:$0xff]
        %v1188 = vld [vmem:[%s1184 + $0x18] sm:$0xff]
        %s1189 = scalar_lea.vmem %s721, 8
        %v1190 = vld [vmem:[%s1189] sm:$0xff]
        %1191 = vmatprep.subr.mxu0 0.0
        %1192 = vmatpush1.msra.mxu0 0.0
        %1193 = vmatprep.subr.mxu0 0.0
        %1194 = vmatpush1.msra.mxu0 0.0
        %1195 = vmatprep.subr.mxu0 0.0
        %1196 = vmatpush1.msra.mxu0 0.0
        %1197 = vmatprep.subr.mxu0 0.0
        %1198 = vmatpush1.msra.mxu0 0.0
        %1199 = vmatprep.subr.mxu0 0.0
        %1200 = vmatpush1.msra.mxu0 0.0
        %1201 = vmatprep.subr.mxu0 0.0
        %1202 = vmatpush1.msra.mxu0 0.0
        %1203 = vmatprep.subr.mxu0 0.0
        %1204 = vmatpush1.msra.mxu0 0.0
        %1205 = vmatprep.subr.mxu0 0.0
        %1206 = vmatpush1.msra.mxu0 0.0
        %1207 = vmatprep.subr.mxu0 0.0
        %1208 = vmatpush1.msra.mxu0 0.0
        %1209 = vmatprep.subr.mxu0 0.0
        %1210 = vmatpush1.msra.mxu0 0.0
        %1211 = vmatprep.subr.mxu0 0.0
        %1212 = vmatpush1.msra.mxu0 0.0
        %1213 = vmatprep.subr.mxu0 0.0
        %1214 = vmatpush1.msra.mxu0 0.0
        %1215 = vmatprep.subr.mxu0 0.0
        %1216 = vmatpush1.msra.mxu0 %v1178
        %1217 = vmatprep.subr.mxu0 0.0
        %1218 = vmatpush1.msra.mxu0 %v1177
        %1219 = vmatprep.subr.mxu0 0.0
        %1220 = vmatpush1.msra.mxu0 %v1176
        %1221 = vmatprep.subr.mxu0 0.0
        %1222 = vmatpush1.msra.mxu0 %v1175
        %1223 = vmatprep.subr.mxu0 0.0
        %1224 = vmatpush2.msra.mxu0 0.0
        %1225 = vmatprep.subr.mxu0 0.0
        %1226 = vmatpush2.msra.mxu0 0.0
        %1227 = vmatprep.subr.mxu0 0.0
        %1228 = vmatpush2.msra.mxu0 0.0
        %1229 = vmatprep.subr.mxu0 0.0
        %1230 = vmatpush2.msra.mxu0 0.0
        %1231 = vmatprep.subr.mxu0 0.0
        %1232 = vmatpush2.msra.mxu0 0.0
        %1233 = vmatprep.subr.mxu0 0.0
        %1234 = vmatpush2.msra.mxu0 0.0
        %1235 = vmatprep.subr.mxu0 0.0
        %1236 = vmatpush2.msra.mxu0 0.0
        %1237 = vmatprep.subr.mxu0 0.0
        %1238 = vmatpush2.msra.mxu0 0.0
        %1239 = vmatprep.subr.mxu0 0.0
        %1240 = vmatpush2.msra.mxu0 0.0
        %1241 = vmatprep.subr.mxu0 0.0
        %1242 = vmatpush2.msra.mxu0 0.0
        %1243 = vmatprep.subr.mxu0 0.0
        %1244 = vmatpush2.msra.mxu0 0.0
        %1245 = vmatprep.subr.mxu0 0.0
        %1246 = vmatpush2.msra.mxu0 0.0
        %1247 = vmatprep.subr.mxu0 0.0
        %1248 = vmatpush2.msra.mxu0 0.0
        %1249 = vmatprep.subr.mxu0 0.0
        %1250 = vmatpush2.msra.mxu0 0.0
        %1251 = vmatprep.subr.mxu0 0.0
        %1252 = vmatpush2.msra.mxu0 0.0
        %1253 = vmatprep.subr.mxu0 0.0
        %1254 = vmatpush2.msra.mxu0 0.0
        %1255 = vmatprep.mubr.f32.mxu0 0.0
        %1256 = vmatmul.mubr.f32.gmra.mxu0 %v800
        %v1257 = vpop.f32.mrf.mxu0
        %v1258 = vadd.f32 0.0, %v1257
        %v1259 = vpop.f32.mrf.mxu0
        %1260 = vdwg.mxu0
        %1261 = vmatprep.subr.mxu0 0.0
        %1262 = vmatpush1.msra.mxu0 0.0
        %1263 = vmatprep.subr.mxu0 0.0
        %1264 = vmatpush1.msra.mxu0 0.0
        %1265 = vmatprep.subr.mxu0 0.0
        %1266 = vmatpush1.msra.mxu0 0.0
        %1267 = vmatprep.subr.mxu0 0.0
        %1268 = vmatpush1.msra.mxu0 0.0
        %1269 = vmatprep.subr.mxu0 0.0
        %1270 = vmatpush1.msra.mxu0 0.0
        %1271 = vmatprep.subr.mxu0 0.0
        %1272 = vmatpush1.msra.mxu0 0.0
        %1273 = vmatprep.subr.mxu0 0.0
        %1274 = vmatpush1.msra.mxu0 0.0
        %1275 = vmatprep.subr.mxu0 0.0
        %1276 = vmatpush1.msra.mxu0 0.0
        %1277 = vmatprep.subr.mxu0 0.0
        %1278 = vmatpush1.msra.mxu0 0.0
        %1279 = vmatprep.subr.mxu0 0.0
        %1280 = vmatpush1.msra.mxu0 0.0
        %1281 = vmatprep.subr.mxu0 0.0
        %1282 = vmatpush1.msra.mxu0 0.0
        %1283 = vmatprep.subr.mxu0 0.0
        %1284 = vmatpush1.msra.mxu0 0.0
        %1285 = vmatprep.subr.mxu0 0.0
        %1286 = vmatpush1.msra.mxu0 %v1183
        %1287 = vmatprep.subr.mxu0 0.0
        %1288 = vmatpush1.msra.mxu0 %v1182
        %1289 = vmatprep.subr.mxu0 0.0
        %1290 = vmatpush1.msra.mxu0 %v1181
        %1291 = vmatprep.subr.mxu0 0.0
        %1292 = vmatpush1.msra.mxu0 %v1180
        %1293 = vmatprep.subr.mxu0 0.0
        %1294 = vmatpush2.msra.mxu0 0.0
        %1295 = vmatprep.subr.mxu0 0.0
        %1296 = vmatpush2.msra.mxu0 0.0
        %1297 = vmatprep.subr.mxu0 0.0
        %1298 = vmatpush2.msra.mxu0 0.0
        %1299 = vmatprep.subr.mxu0 0.0
        %1300 = vmatpush2.msra.mxu0 0.0
        %1301 = vmatprep.subr.mxu0 0.0
        %1302 = vmatpush2.msra.mxu0 0.0
        %1303 = vmatprep.subr.mxu0 0.0
        %1304 = vmatpush2.msra.mxu0 0.0
        %1305 = vmatprep.subr.mxu0 0.0
        %1306 = vmatpush2.msra.mxu0 0.0
        %1307 = vmatprep.subr.mxu0 0.0
        %1308 = vmatpush2.msra.mxu0 0.0
        %1309 = vmatprep.subr.mxu0 0.0
        %1310 = vmatpush2.msra.mxu0 0.0
        %1311 = vmatprep.subr.mxu0 0.0
        %1312 = vmatpush2.msra.mxu0 0.0
        %1313 = vmatprep.subr.mxu0 0.0
        %1314 = vmatpush2.msra.mxu0 0.0
        %1315 = vmatprep.subr.mxu0 0.0
        %1316 = vmatpush2.msra.mxu0 0.0
        %1317 = vmatprep.subr.mxu0 0.0
        %1318 = vmatpush2.msra.mxu0 0.0
        %1319 = vmatprep.subr.mxu0 0.0
        %1320 = vmatpush2.msra.mxu0 0.0
        %1321 = vmatprep.subr.mxu0 0.0
        %1322 = vmatpush2.msra.mxu0 0.0
        %1323 = vmatprep.subr.mxu0 0.0
        %1324 = vmatpush2.msra.mxu0 0.0
        %1325 = vmatprep.mubr.f32.mxu0 0.0
        %1326 = vmatmul.mubr.f32.gmra.mxu0 %v800
        %v1327 = vpop.f32.mrf.mxu0
        %v1328 = vadd.f32 0.0, %v1327
        %v1329 = vpop.f32.mrf.mxu0
        %1330 = vdwg.mxu0
        %1331 = vmatprep.subr.mxu0 0.0
        %1332 = vmatpush1.msra.mxu0 0.0
        %1333 = vmatprep.subr.mxu0 0.0
        %1334 = vmatpush1.msra.mxu0 0.0
        %1335 = vmatprep.subr.mxu0 0.0
        %1336 = vmatpush1.msra.mxu0 0.0
        %1337 = vmatprep.subr.mxu0 0.0
        %1338 = vmatpush1.msra.mxu0 0.0
        %1339 = vmatprep.subr.mxu0 0.0
        %1340 = vmatpush1.msra.mxu0 0.0
        %1341 = vmatprep.subr.mxu0 0.0
        %1342 = vmatpush1.msra.mxu0 0.0
        %1343 = vmatprep.subr.mxu0 0.0
        %1344 = vmatpush1.msra.mxu0 0.0
        %1345 = vmatprep.subr.mxu0 0.0
        %1346 = vmatpush1.msra.mxu0 0.0
        %1347 = vmatprep.subr.mxu0 0.0
        %1348 = vmatpush1.msra.mxu0 0.0
        %1349 = vmatprep.subr.mxu0 0.0
        %1350 = vmatpush1.msra.mxu0 0.0
        %1351 = vmatprep.subr.mxu0 0.0
        %1352 = vmatpush1.msra.mxu0 0.0
        %1353 = vmatprep.subr.mxu0 0.0
        %1354 = vmatpush1.msra.mxu0 0.0
        %1355 = vmatprep.subr.mxu0 0.0
        %1356 = vmatpush1.msra.mxu0 %v1188
        %1357 = vmatprep.subr.mxu0 0.0
        %1358 = vmatpush1.msra.mxu0 %v1187
        %1359 = vmatprep.subr.mxu0 0.0
        %1360 = vmatpush1.msra.mxu0 %v1186
        %1361 = vmatprep.subr.mxu0 0.0
        %1362 = vmatpush1.msra.mxu0 %v1185
        %1363 = vmatprep.subr.mxu0 0.0
        %1364 = vmatpush2.msra.mxu0 0.0
        %1365 = vmatprep.subr.mxu0 0.0
        %1366 = vmatpush2.msra.mxu0 0.0
        %1367 = vmatprep.subr.mxu0 0.0
        %1368 = vmatpush2.msra.mxu0 0.0
        %1369 = vmatprep.subr.mxu0 0.0
        %1370 = vmatpush2.msra.mxu0 0.0
        %1371 = vmatprep.subr.mxu0 0.0
        %1372 = vmatpush2.msra.mxu0 0.0
        %1373 = vmatprep.subr.mxu0 0.0
        %1374 = vmatpush2.msra.mxu0 0.0
        %1375 = vmatprep.subr.mxu0 0.0
        %1376 = vmatpush2.msra.mxu0 0.0
        %1377 = vmatprep.subr.mxu0 0.0
        %1378 = vmatpush2.msra.mxu0 0.0
        %1379 = vmatprep.subr.mxu0 0.0
        %1380 = vmatpush2.msra.mxu0 0.0
        %1381 = vmatprep.subr.mxu0 0.0
        %1382 = vmatpush2.msra.mxu0 0.0
        %1383 = vmatprep.subr.mxu0 0.0
        %1384 = vmatpush2.msra.mxu0 0.0
        %1385 = vmatprep.subr.mxu0 0.0
        %1386 = vmatpush2.msra.mxu0 0.0
        %1387 = vmatprep.subr.mxu0 0.0
        %1388 = vmatpush2.msra.mxu0 0.0
        %1389 = vmatprep.subr.mxu0 0.0
        %1390 = vmatpush2.msra.mxu0 0.0
        %1391 = vmatprep.subr.mxu0 0.0
        %1392 = vmatpush2.msra.mxu0 0.0
        %1393 = vmatprep.subr.mxu0 0.0
        %1394 = vmatpush2.msra.mxu0 0.0
        %1395 = vmatprep.mubr.f32.mxu0 0.0
        %1396 = vmatmul.mubr.f32.gmra.mxu0 %v800
        %v1397 = vpop.f32.mrf.mxu0
        %v1398 = vadd.f32 0.0, %v1397
        %v1399 = vpop.f32.mrf.mxu0
        %1400 = vdwg.mxu0
        %v1402 = vsel %vm1012, %v1258, 0
        %v1405 = vsel %vm1012, %v1328, 0
        %1407 = vmatprep.subr.mxu0 0.0
        %1408 = vmatpush1.xpose.msra.mxu0 0.0
        %1409 = vmatprep.subr.mxu0 0.0
        %1410 = vmatpush1.xpose.msra.mxu0 0.0
        %1411 = vmatprep.subr.mxu0 0.0
        %1412 = vmatpush1.xpose.msra.mxu0 0.0
        %1413 = vmatprep.subr.mxu0 0.0
        %1414 = vmatpush1.xpose.msra.mxu0 0.0
        %1415 = vmatprep.subr.mxu0 0.0
        %1416 = vmatpush1.xpose.msra.mxu0 0.0
        %1417 = vmatprep.subr.mxu0 0.0
        %1418 = vmatpush1.xpose.msra.mxu0 0.0
        %1419 = vmatprep.subr.mxu0 0.0
        %1420 = vmatpush1.xpose.msra.mxu0 0.0
        %1421 = vmatprep.subr.mxu0 0.0
        %1422 = vmatpush1.xpose.msra.mxu0 0.0
        %1423 = vmatprep.subr.mxu0 0.0
        %1424 = vmatpush1.xpose.msra.mxu0 0.0
        %1425 = vmatprep.subr.mxu0 0.0
        %1426 = vmatpush1.xpose.msra.mxu0 0.0
        %1427 = vmatprep.subr.mxu0 0.0
        %1428 = vmatpush1.xpose.msra.mxu0 0.0
        %1429 = vmatprep.subr.mxu0 0.0
        %1430 = vmatpush1.xpose.msra.mxu0 0.0
        %1431 = vmatprep.subr.mxu0 0.0
        %1432 = vmatpush1.xpose.msra.mxu0 0.0
        %1433 = vmatprep.subr.mxu0 0.0
        %1434 = vmatpush1.xpose.msra.mxu0 0.0
        %1435 = vmatprep.subr.mxu0 0.0
        %1436 = vmatpush1.xpose.msra.mxu0 0.0
        %1437 = vmatprep.subr.mxu0 0.0
        %1438 = vmatpush1.xpose.msra.mxu0 %v1405
        %1439 = vmatprep.subr.mxu0 0.0
        %1440 = vmatpush2.xpose.msra.mxu0 0.0
        %1441 = vmatprep.subr.mxu0 0.0
        %1442 = vmatpush2.xpose.msra.mxu0 0.0
        %1443 = vmatprep.subr.mxu0 0.0
        %1444 = vmatpush2.xpose.msra.mxu0 0.0
        %1445 = vmatprep.subr.mxu0 0.0
        %1446 = vmatpush2.xpose.msra.mxu0 0.0
        %1447 = vmatprep.subr.mxu0 0.0
        %1448 = vmatpush2.xpose.msra.mxu0 0.0
        %1449 = vmatprep.subr.mxu0 0.0
        %1450 = vmatpush2.xpose.msra.mxu0 0.0
        %1451 = vmatprep.subr.mxu0 0.0
        %1452 = vmatpush2.xpose.msra.mxu0 0.0
        %1453 = vmatprep.subr.mxu0 0.0
        %1454 = vmatpush2.xpose.msra.mxu0 0.0
        %1455 = vmatprep.subr.mxu0 0.0
        %1456 = vmatpush2.xpose.msra.mxu0 0.0
        %1457 = vmatprep.subr.mxu0 0.0
        %1458 = vmatpush2.xpose.msra.mxu0 0.0
        %1459 = vmatprep.subr.mxu0 0.0
        %1460 = vmatpush2.xpose.msra.mxu0 0.0
        %1461 = vmatprep.subr.mxu0 0.0
        %1462 = vmatpush2.xpose.msra.mxu0 0.0
        %1463 = vmatprep.subr.mxu0 0.0
        %1464 = vmatpush2.xpose.msra.mxu0 0.0
        %1465 = vmatprep.subr.mxu0 0.0
        %1466 = vmatpush2.xpose.msra.mxu0 0.0
        %1467 = vmatprep.subr.mxu0 0.0
        %1468 = vmatpush2.xpose.msra.mxu0 0.0
        %1469 = vmatprep.subr.mxu0 0.0
        %1470 = vmatpush2.xpose.msra.mxu0 0.0
        %1471 = vmatprep.mubr.f32.mxu0 0.0
        %1472 = vmatmul.mubr.f32.gmra.mxu0 %v1402
        %v1473 = vpop.f32.mrf.mxu0
        %v1474 = vadd.f32 0.0, %v1473
        %v1475 = vpop.f32.mrf.mxu0
        %1476 = vdwg.mxu0
        %v1477 = vmul.f32 %v1474, 0.35355338
        %v1478 = vsel %vm1012, %v1477, -inf
        %1479 = vmax.xlane.f32.xlu0 %v1478
        %v1480 = vpop.xlane.xlu0 %1479
        %v1481 = vsub.f32 %v1477, %v1480
        %v1482 = vmul.f32 %v1481, 1.442695
        %v1483 = vpow.pop %v1482
        %v1484 = vsel %vm1012, %v1483, 0.0
        %1485 = vadd.xlane.f32.xlu0 %v1484
        %v1486 = vpop.xlane.xlu0 %1485
        %v1487 = vrcp.pop %v1486
        %v1488 = vmul.f32 %v1483, %v1487
        %v1490 = vsel %vm1012, %v1488, 0
        %1492 = vmatprep.subr.mxu0 0.0
        %1493 = vmatpush1.msra.mxu0 0.0
        %1494 = vmatprep.subr.mxu0 0.0
        %1495 = vmatpush1.msra.mxu0 0.0
        %1496 = vmatprep.subr.mxu0 0.0
        %1497 = vmatpush1.msra.mxu0 0.0
        %1498 = vmatprep.subr.mxu0 0.0
        %1499 = vmatpush1.msra.mxu0 0.0
        %1500 = vmatprep.subr.mxu0 0.0
        %1501 = vmatpush1.msra.mxu0 0.0
        %1502 = vmatprep.subr.mxu0 0.0
        %1503 = vmatpush1.msra.mxu0 0.0
        %1504 = vmatprep.subr.mxu0 0.0
        %1505 = vmatpush1.msra.mxu0 0.0
        %1506 = vmatprep.subr.mxu0 0.0
        %1507 = vmatpush1.msra.mxu0 0.0
        %1508 = vmatprep.subr.mxu0 0.0
        %1509 = vmatpush1.msra.mxu0 0.0
        %1510 = vmatprep.subr.mxu0 0.0
        %1511 = vmatpush1.msra.mxu0 0.0
        %1512 = vmatprep.subr.mxu0 0.0
        %1513 = vmatpush1.msra.mxu0 0.0
        %1514 = vmatprep.subr.mxu0 0.0
        %1515 = vmatpush1.msra.mxu0 0.0
        %1516 = vmatprep.subr.mxu0 0.0
        %1517 = vmatpush1.msra.mxu0 0.0
        %1518 = vmatprep.subr.mxu0 0.0
        %1519 = vmatpush1.msra.mxu0 0.0
        %1520 = vmatprep.subr.mxu0 0.0
        %1521 = vmatpush1.msra.mxu0 0.0
        %1522 = vmatprep.subr.mxu0 0.0
        %1523 = vmatpush1.msra.mxu0 %v1398
        %1524 = vmatprep.subr.mxu0 0.0
        %1525 = vmatpush2.msra.mxu0 0.0
        %1526 = vmatprep.subr.mxu0 0.0
        %1527 = vmatpush2.msra.mxu0 0.0
        %1528 = vmatprep.subr.mxu0 0.0
        %1529 = vmatpush2.msra.mxu0 0.0
        %1530 = vmatprep.subr.mxu0 0.0
        %1531 = vmatpush2.msra.mxu0 0.0
        %1532 = vmatprep.subr.mxu0 0.0
        %1533 = vmatpush2.msra.mxu0 0.0
        %1534 = vmatprep.subr.mxu0 0.0
        %1535 = vmatpush2.msra.mxu0 0.0
        %1536 = vmatprep.subr.mxu0 0.0
        %1537 = vmatpush2.msra.mxu0 0.0
        %1538 = vmatprep.subr.mxu0 0.0
        %1539 = vmatpush2.msra.mxu0 0.0
        %1540 = vmatprep.subr.mxu0 0.0
        %1541 = vmatpush2.msra.mxu0 0.0
        %1542 = vmatprep.subr.mxu0 0.0
        %1543 = vmatpush2.msra.mxu0 0.0
        %1544 = vmatprep.subr.mxu0 0.0
        %1545 = vmatpush2.msra.mxu0 0.0
        %1546 = vmatprep.subr.mxu0 0.0
        %1547 = vmatpush2.msra.mxu0 0.0
        %1548 = vmatprep.subr.mxu0 0.0
        %1549 = vmatpush2.msra.mxu0 0.0
        %1550 = vmatprep.subr.mxu0 0.0
        %1551 = vmatpush2.msra.mxu0 0.0
        %1552 = vmatprep.subr.mxu0 0.0
        %1553 = vmatpush2.msra.mxu0 0.0
        %1554 = vmatprep.subr.mxu0 0.0
        %1555 = vmatpush2.msra.mxu0 0.0
        %1556 = vmatprep.mubr.f32.mxu0 0.0
        %1557 = vmatmul.mubr.f32.gmra.mxu0 %v1490
        %v1558 = vpop.f32.mrf.mxu0
        %v1559 = vadd.f32 0.0, %v1558
        %v1560 = vpop.f32.mrf.mxu0
        %1561 = vdwg.mxu0
        %v1563 = vsel %vm1012, %v1559, 0
        %1565 = vmatprep.subr.mxu0 0.0
        %1566 = vmatpush1.msra.mxu0 0.0
        %1567 = vmatprep.subr.mxu0 0.0
        %1568 = vmatpush1.msra.mxu0 0.0
        %1569 = vmatprep.subr.mxu0 0.0
        %1570 = vmatpush1.msra.mxu0 0.0
        %1571 = vmatprep.subr.mxu0 0.0
        %1572 = vmatpush1.msra.mxu0 0.0
        %1573 = vmatprep.subr.mxu0 0.0
        %1574 = vmatpush1.msra.mxu0 0.0
        %1575 = vmatprep.subr.mxu0 0.0
        %1576 = vmatpush1.msra.mxu0 0.0
        %1577 = vmatprep.subr.mxu0 0.0
        %1578 = vmatpush1.msra.mxu0 0.0
        %1579 = vmatprep.subr.mxu0 0.0
        %1580 = vmatpush1.msra.mxu0 0.0
        %1581 = vmatprep.subr.mxu0 0.0
        %1582 = vmatpush1.msra.mxu0 0.0
        %1583 = vmatprep.subr.mxu0 0.0
        %1584 = vmatpush1.msra.mxu0 0.0
        %1585 = vmatprep.subr.mxu0 0.0
        %1586 = vmatpush1.msra.mxu0 0.0
        %1587 = vmatprep.subr.mxu0 0.0
        %1588 = vmatpush1.msra.mxu0 0.0
        %1589 = vmatprep.subr.mxu0 0.0
        %1590 = vmatpush1.msra.mxu0 0.0
        %1591 = vmatprep.subr.mxu0 0.0
        %1592 = vmatpush1.msra.mxu0 0.0
        %1593 = vmatprep.subr.mxu0 0.0
        %1594 = vmatpush1.msra.mxu0 0.0
        %1595 = vmatprep.subr.mxu0 0.0
        %1596 = vmatpush1.msra.mxu0 %v1190
        %1597 = vmatprep.subr.mxu0 0.0
        %1598 = vmatpush2.msra.mxu0 0.0
        %1599 = vmatprep.subr.mxu0 0.0
        %1600 = vmatpush2.msra.mxu0 0.0
        %1601 = vmatprep.subr.mxu0 0.0
        %1602 = vmatpush2.msra.mxu0 0.0
        %1603 = vmatprep.subr.mxu0 0.0
        %1604 = vmatpush2.msra.mxu0 0.0
        %1605 = vmatprep.subr.mxu0 0.0
        %1606 = vmatpush2.msra.mxu0 0.0
        %1607 = vmatprep.subr.mxu0 0.0
        %1608 = vmatpush2.msra.mxu0 0.0
        %1609 = vmatprep.subr.mxu0 0.0
        %1610 = vmatpush2.msra.mxu0 0.0
        %1611 = vmatprep.subr.mxu0 0.0
        %1612 = vmatpush2.msra.mxu0 0.0
        %1613 = vmatprep.subr.mxu0 0.0
        %1614 = vmatpush2.msra.mxu0 0.0
        %1615 = vmatprep.subr.mxu0 0.0
        %1616 = vmatpush2.msra.mxu0 0.0
        %1617 = vmatprep.subr.mxu0 0.0
        %1618 = vmatpush2.msra.mxu0 0.0
        %1619 = vmatprep.subr.mxu0 0.0
        %1620 = vmatpush2.msra.mxu0 0.0
        %1621 = vmatprep.subr.mxu0 0.0
        %1622 = vmatpush2.msra.mxu0 0.0
        %1623 = vmatprep.subr.mxu0 0.0
        %1624 = vmatpush2.msra.mxu0 0.0
        %1625 = vmatprep.subr.mxu0 0.0
        %1626 = vmatpush2.msra.mxu0 0.0
        %1627 = vmatprep.subr.mxu0 0.0
        %1628 = vmatpush2.msra.mxu0 0.0
        %1629 = vmatprep.mubr.f32.mxu0 0.0
        %1630 = vmatmul.mubr.f32.gmra.mxu0 %v1563
        %v1631 = vpop.f32.mrf.mxu0
        %v1632 = vadd.f32 0.0, %v1631
        %v1633 = vpop.f32.mrf.mxu0
        %1634 = vdwg.mxu0
        %v1636 = vsel %vm1012, %v1171, 0
        %1638 = vmatprep.subr.mxu0 0.0
        %1639 = vmatpush1.msra.mxu0 0.0
        %1640 = vmatprep.subr.mxu0 0.0
        %1641 = vmatpush1.msra.mxu0 0.0
        %1642 = vmatprep.subr.mxu0 0.0
        %1643 = vmatpush1.msra.mxu0 0.0
        %1644 = vmatprep.subr.mxu0 0.0
        %1645 = vmatpush1.msra.mxu0 0.0
        %1646 = vmatprep.subr.mxu0 0.0
        %1647 = vmatpush1.msra.mxu0 0.0
        %1648 = vmatprep.subr.mxu0 0.0
        %1649 = vmatpush1.msra.mxu0 0.0
        %1650 = vmatprep.subr.mxu0 0.0
        %1651 = vmatpush1.msra.mxu0 0.0
        %1652 = vmatprep.subr.mxu0 0.0
        %1653 = vmatpush1.msra.mxu0 0.0
        %1654 = vmatprep.subr.mxu0 0.0
        %1655 = vmatpush1.msra.mxu0 0.0
        %1656 = vmatprep.subr.mxu0 0.0
        %1657 = vmatpush1.msra.mxu0 0.0
        %1658 = vmatprep.subr.mxu0 0.0
        %1659 = vmatpush1.msra.mxu0 0.0
        %1660 = vmatprep.subr.mxu0 0.0
        %1661 = vmatpush1.msra.mxu0 0.0
        %1662 = vmatprep.subr.mxu0 0.0
        %1663 = vmatpush1.msra.mxu0 0.0
        %1664 = vmatprep.subr.mxu0 0.0
        %1665 = vmatpush1.msra.mxu0 0.0
        %1666 = vmatprep.subr.mxu0 0.0
        %1667 = vmatpush1.msra.mxu0 0.0
        %1668 = vmatprep.subr.mxu0 0.0
        %1669 = vmatpush1.msra.mxu0 %v798
        %1670 = vmatprep.subr.mxu0 0.0
        %1671 = vmatpush2.msra.mxu0 0.0
        %1672 = vmatprep.subr.mxu0 0.0
        %1673 = vmatpush2.msra.mxu0 0.0
        %1674 = vmatprep.subr.mxu0 0.0
        %1675 = vmatpush2.msra.mxu0 0.0
        %1676 = vmatprep.subr.mxu0 0.0
        %1677 = vmatpush2.msra.mxu0 0.0
        %1678 = vmatprep.subr.mxu0 0.0
        %1679 = vmatpush2.msra.mxu0 0.0
        %1680 = vmatprep.subr.mxu0 0.0
        %1681 = vmatpush2.msra.mxu0 0.0
        %1682 = vmatprep.subr.mxu0 0.0
        %1683 = vmatpush2.msra.mxu0 0.0
        %1684 = vmatprep.subr.mxu0 0.0
        %1685 = vmatpush2.msra.mxu0 0.0
        %1686 = vmatprep.subr.mxu0 0.0
        %1687 = vmatpush2.msra.mxu0 0.0
        %1688 = vmatprep.subr.mxu0 0.0
        %1689 = vmatpush2.msra.mxu0 0.0
        %1690 = vmatprep.subr.mxu0 0.0
        %1691 = vmatpush2.msra.mxu0 0.0
        %1692 = vmatprep.subr.mxu0 0.0
        %1693 = vmatpush2.msra.mxu0 0.0
        %1694 = vmatprep.subr.mxu0 0.0
        %1695 = vmatpush2.msra.mxu0 0.0
        %1696 = vmatprep.subr.mxu0 0.0
        %1697 = vmatpush2.msra.mxu0 0.0
        %1698 = vmatprep.subr.mxu0 0.0
        %1699 = vmatpush2.msra.mxu0 0.0
        %1700 = vmatprep.subr.mxu0 0.0
        %1701 = vmatpush2.msra.mxu0 0.0
        %1702 = vmatprep.mubr.f32.mxu0 0.0
        %1703 = vmatmul.mubr.f32.gmra.mxu0 %v1636
        %v1704 = vpop.f32.mrf.mxu0
        %v1705 = vadd.f32 %v1632, %v1704
        %v1706 = vpop.f32.mrf.mxu0
        %1707 = vdwg.mxu0
        %s1708 = scalar_lea.vmem %s706, 64
        %v1709 = vld [vmem:[%s1708] sm:$0xff]
        %v1710 = vld [vmem:[%s1708 + $0x8] sm:$0xff]
        %v1711 = vld [vmem:[%s1708 + $0x10] sm:$0xff]
        %v1712 = vld [vmem:[%s1708 + $0x18] sm:$0xff]
        %s1713 = scalar_lea.vmem %s711, 64
        %v1714 = vld [vmem:[%s1713] sm:$0xff]
        %v1715 = vld [vmem:[%s1713 + $0x8] sm:$0xff]
        %v1716 = vld [vmem:[%s1713 + $0x10] sm:$0xff]
        %v1717 = vld [vmem:[%s1713 + $0x18] sm:$0xff]
        %s1718 = scalar_lea.vmem %s716, 64
        %v1719 = vld [vmem:[%s1718] sm:$0xff]
        %v1720 = vld [vmem:[%s1718 + $0x8] sm:$0xff]
        %v1721 = vld [vmem:[%s1718 + $0x10] sm:$0xff]
        %v1722 = vld [vmem:[%s1718 + $0x18] sm:$0xff]
        %s1723 = scalar_lea.vmem %s721, 16
        %v1724 = vld [vmem:[%s1723] sm:$0xff]
        %1725 = vmatprep.subr.mxu0 0.0
        %1726 = vmatpush1.msra.mxu0 0.0
        %1727 = vmatprep.subr.mxu0 0.0
        %1728 = vmatpush1.msra.mxu0 0.0
        %1729 = vmatprep.subr.mxu0 0.0
        %1730 = vmatpush1.msra.mxu0 0.0
        %1731 = vmatprep.subr.mxu0 0.0
        %1732 = vmatpush1.msra.mxu0 0.0
        %1733 = vmatprep.subr.mxu0 0.0
        %1734 = vmatpush1.msra.mxu0 0.0
        %1735 = vmatprep.subr.mxu0 0.0
        %1736 = vmatpush1.msra.mxu0 0.0
        %1737 = vmatprep.subr.mxu0 0.0
        %1738 = vmatpush1.msra.mxu0 0.0
        %1739 = vmatprep.subr.mxu0 0.0
        %1740 = vmatpush1.msra.mxu0 0.0
        %1741 = vmatprep.subr.mxu0 0.0
        %1742 = vmatpush1.msra.mxu0 0.0
        %1743 = vmatprep.subr.mxu0 0.0
        %1744 = vmatpush1.msra.mxu0 0.0
        %1745 = vmatprep.subr.mxu0 0.0
        %1746 = vmatpush1.msra.mxu0 0.0
        %1747 = vmatprep.subr.mxu0 0.0
        %1748 = vmatpush1.msra.mxu0 0.0
        %1749 = vmatprep.subr.mxu0 0.0
        %1750 = vmatpush1.msra.mxu0 %v1712
        %1751 = vmatprep.subr.mxu0 0.0
        %1752 = vmatpush1.msra.mxu0 %v1711
        %1753 = vmatprep.subr.mxu0 0.0
        %1754 = vmatpush1.msra.mxu0 %v1710
        %1755 = vmatprep.subr.mxu0 0.0
        %1756 = vmatpush1.msra.mxu0 %v1709
        %1757 = vmatprep.subr.mxu0 0.0
        %1758 = vmatpush2.msra.mxu0 0.0
        %1759 = vmatprep.subr.mxu0 0.0
        %1760 = vmatpush2.msra.mxu0 0.0
        %1761 = vmatprep.subr.mxu0 0.0
        %1762 = vmatpush2.msra.mxu0 0.0
        %1763 = vmatprep.subr.mxu0 0.0
        %1764 = vmatpush2.msra.mxu0 0.0
        %1765 = vmatprep.subr.mxu0 0.0
        %1766 = vmatpush2.msra.mxu0 0.0
        %1767 = vmatprep.subr.mxu0 0.0
        %1768 = vmatpush2.msra.mxu0 0.0
        %1769 = vmatprep.subr.mxu0 0.0
        %1770 = vmatpush2.msra.mxu0 0.0
        %1771 = vmatprep.subr.mxu0 0.0
        %1772 = vmatpush2.msra.mxu0 0.0
        %1773 = vmatprep.subr.mxu0 0.0
        %1774 = vmatpush2.msra.mxu0 0.0
        %1775 = vmatprep.subr.mxu0 0.0
        %1776 = vmatpush2.msra.mxu0 0.0
        %1777 = vmatprep.subr.mxu0 0.0
        %1778 = vmatpush2.msra.mxu0 0.0
        %1779 = vmatprep.subr.mxu0 0.0
        %1780 = vmatpush2.msra.mxu0 0.0
        %1781 = vmatprep.subr.mxu0 0.0
        %1782 = vmatpush2.msra.mxu0 0.0
        %1783 = vmatprep.subr.mxu0 0.0
        %1784 = vmatpush2.msra.mxu0 0.0
        %1785 = vmatprep.subr.mxu0 0.0
        %1786 = vmatpush2.msra.mxu0 0.0
        %1787 = vmatprep.subr.mxu0 0.0
        %1788 = vmatpush2.msra.mxu0 0.0
        %1789 = vmatprep.mubr.f32.mxu0 0.0
        %1790 = vmatmul.mubr.f32.gmra.mxu0 %v800
        %v1791 = vpop.f32.mrf.mxu0
        %v1792 = vadd.f32 0.0, %v1791
        %v1793 = vpop.f32.mrf.mxu0
        %1794 = vdwg.mxu0
        %1795 = vmatprep.subr.mxu0 0.0
        %1796 = vmatpush1.msra.mxu0 0.0
        %1797 = vmatprep.subr.mxu0 0.0
        %1798 = vmatpush1.msra.mxu0 0.0
        %1799 = vmatprep.subr.mxu0 0.0
        %1800 = vmatpush1.msra.mxu0 0.0
        %1801 = vmatprep.subr.mxu0 0.0
        %1802 = vmatpush1.msra.mxu0 0.0
        %1803 = vmatprep.subr.mxu0 0.0
        %1804 = vmatpush1.msra.mxu0 0.0
        %1805 = vmatprep.subr.mxu0 0.0
        %1806 = vmatpush1.msra.mxu0 0.0
        %1807 = vmatprep.subr.mxu0 0.0
        %1808 = vmatpush1.msra.mxu0 0.0
        %1809 = vmatprep.subr.mxu0 0.0
        %1810 = vmatpush1.msra.mxu0 0.0
        %1811 = vmatprep.subr.mxu0 0.0
        %1812 = vmatpush1.msra.mxu0 0.0
        %1813 = vmatprep.subr.mxu0 0.0
        %1814 = vmatpush1.msra.mxu0 0.0
        %1815 = vmatprep.subr.mxu0 0.0
        %1816 = vmatpush1.msra.mxu0 0.0
        %1817 = vmatprep.subr.mxu0 0.0
        %1818 = vmatpush1.msra.mxu0 0.0
        %1819 = vmatprep.subr.mxu0 0.0
        %1820 = vmatpush1.msra.mxu0 %v1717
        %1821 = vmatprep.subr.mxu0 0.0
        %1822 = vmatpush1.msra.mxu0 %v1716
        %1823 = vmatprep.subr.mxu0 0.0
        %1824 = vmatpush1.msra.mxu0 %v1715
        %1825 = vmatprep.subr.mxu0 0.0
        %1826 = vmatpush1.msra.mxu0 %v1714
        %1827 = vmatprep.subr.mxu0 0.0
        %1828 = vmatpush2.msra.mxu0 0.0
        %1829 = vmatprep.subr.mxu0 0.0
        %1830 = vmatpush2.msra.mxu0 0.0
        %1831 = vmatprep.subr.mxu0 0.0
        %1832 = vmatpush2.msra.mxu0 0.0
        %1833 = vmatprep.subr.mxu0 0.0
        %1834 = vmatpush2.msra.mxu0 0.0
        %1835 = vmatprep.subr.mxu0 0.0
        %1836 = vmatpush2.msra.mxu0 0.0
        %1837 = vmatprep.subr.mxu0 0.0
        %1838 = vmatpush2.msra.mxu0 0.0
        %1839 = vmatprep.subr.mxu0 0.0
        %1840 = vmatpush2.msra.mxu0 0.0
        %1841 = vmatprep.subr.mxu0 0.0
        %1842 = vmatpush2.msra.mxu0 0.0
        %1843 = vmatprep.subr.mxu0 0.0
        %1844 = vmatpush2.msra.mxu0 0.0
        %1845 = vmatprep.subr.mxu0 0.0
        %1846 = vmatpush2.msra.mxu0 0.0
        %1847 = vmatprep.subr.mxu0 0.0
        %1848 = vmatpush2.msra.mxu0 0.0
        %1849 = vmatprep.subr.mxu0 0.0
        %1850 = vmatpush2.msra.mxu0 0.0
        %1851 = vmatprep.subr.mxu0 0.0
        %1852 = vmatpush2.msra.mxu0 0.0
        %1853 = vmatprep.subr.mxu0 0.0
        %1854 = vmatpush2.msra.mxu0 0.0
        %1855 = vmatprep.subr.mxu0 0.0
        %1856 = vmatpush2.msra.mxu0 0.0
        %1857 = vmatprep.subr.mxu0 0.0
        %1858 = vmatpush2.msra.mxu0 0.0
        %1859 = vmatprep.mubr.f32.mxu0 0.0
        %1860 = vmatmul.mubr.f32.gmra.mxu0 %v800
        %v1861 = vpop.f32.mrf.mxu0
        %v1862 = vadd.f32 0.0, %v1861
        %v1863 = vpop.f32.mrf.mxu0
        %1864 = vdwg.mxu0
        %1865 = vmatprep.subr.mxu0 0.0
        %1866 = vmatpush1.msra.mxu0 0.0
        %1867 = vmatprep.subr.mxu0 0.0
        %1868 = vmatpush1.msra.mxu0 0.0
        %1869 = vmatprep.subr.mxu0 0.0
        %1870 = vmatpush1.msra.mxu0 0.0
        %1871 = vmatprep.subr.mxu0 0.0
        %1872 = vmatpush1.msra.mxu0 0.0
        %1873 = vmatprep.subr.mxu0 0.0
        %1874 = vmatpush1.msra.mxu0 0.0
        %1875 = vmatprep.subr.mxu0 0.0
        %1876 = vmatpush1.msra.mxu0 0.0
        %1877 = vmatprep.subr.mxu0 0.0
        %1878 = vmatpush1.msra.mxu0 0.0
        %1879 = vmatprep.subr.mxu0 0.0
        %1880 = vmatpush1.msra.mxu0 0.0
        %1881 = vmatprep.subr.mxu0 0.0
        %1882 = vmatpush1.msra.mxu0 0.0
        %1883 = vmatprep.subr.mxu0 0.0
        %1884 = vmatpush1.msra.mxu0 0.0
        %1885 = vmatprep.subr.mxu0 0.0
        %1886 = vmatpush1.msra.mxu0 0.0
        %1887 = vmatprep.subr.mxu0 0.0
        %1888 = vmatpush1.msra.mxu0 0.0
        %1889 = vmatprep.subr.mxu0 0.0
        %1890 = vmatpush1.msra.mxu0 %v1722
        %1891 = vmatprep.subr.mxu0 0.0
        %1892 = vmatpush1.msra.mxu0 %v1721
        %1893 = vmatprep.subr.mxu0 0.0
        %1894 = vmatpush1.msra.mxu0 %v1720
        %1895 = vmatprep.subr.mxu0 0.0
        %1896 = vmatpush1.msra.mxu0 %v1719
        %1897 = vmatprep.subr.mxu0 0.0
        %1898 = vmatpush2.msra.mxu0 0.0
        %1899 = vmatprep.subr.mxu0 0.0
        %1900 = vmatpush2.msra.mxu0 0.0
        %1901 = vmatprep.subr.mxu0 0.0
        %1902 = vmatpush2.msra.mxu0 0.0
        %1903 = vmatprep.subr.mxu0 0.0
        %1904 = vmatpush2.msra.mxu0 0.0
        %1905 = vmatprep.subr.mxu0 0.0
        %1906 = vmatpush2.msra.mxu0 0.0
        %1907 = vmatprep.subr.mxu0 0.0
        %1908 = vmatpush2.msra.mxu0 0.0
        %1909 = vmatprep.subr.mxu0 0.0
        %1910 = vmatpush2.msra.mxu0 0.0
        %1911 = vmatprep.subr.mxu0 0.0
        %1912 = vmatpush2.msra.mxu0 0.0
        %1913 = vmatprep.subr.mxu0 0.0
        %1914 = vmatpush2.msra.mxu0 0.0
        %1915 = vmatprep.subr.mxu0 0.0
        %1916 = vmatpush2.msra.mxu0 0.0
        %1917 = vmatprep.subr.mxu0 0.0
        %1918 = vmatpush2.msra.mxu0 0.0
        %1919 = vmatprep.subr.mxu0 0.0
        %1920 = vmatpush2.msra.mxu0 0.0
        %1921 = vmatprep.subr.mxu0 0.0
        %1922 = vmatpush2.msra.mxu0 0.0
        %1923 = vmatprep.subr.mxu0 0.0
        %1924 = vmatpush2.msra.mxu0 0.0
        %1925 = vmatprep.subr.mxu0 0.0
        %1926 = vmatpush2.msra.mxu0 0.0
        %1927 = vmatprep.subr.mxu0 0.0
        %1928 = vmatpush2.msra.mxu0 0.0
        %1929 = vmatprep.mubr.f32.mxu0 0.0
        %1930 = vmatmul.mubr.f32.gmra.mxu0 %v800
        %v1931 = vpop.f32.mrf.mxu0
        %v1932 = vadd.f32 0.0, %v1931
        %v1933 = vpop.f32.mrf.mxu0
        %1934 = vdwg.mxu0
        %v1936 = vsel %vm1012, %v1792, 0
        %v1939 = vsel %vm1012, %v1862, 0
        %1941 = vmatprep.subr.mxu0 0.0
        %1942 = vmatpush1.xpose.msra.mxu0 0.0
        %1943 = vmatprep.subr.mxu0 0.0
        %1944 = vmatpush1.xpose.msra.mxu0 0.0
        %1945 = vmatprep.subr.mxu0 0.0
        %1946 = vmatpush1.xpose.msra.mxu0 0.0
        %1947 = vmatprep.subr.mxu0 0.0
        %1948 = vmatpush1.xpose.msra.mxu0 0.0
        %1949 = vmatprep.subr.mxu0 0.0
        %1950 = vmatpush1.xpose.msra.mxu0 0.0
        %1951 = vmatprep.subr.mxu0 0.0
        %1952 = vmatpush1.xpose.msra.mxu0 0.0
        %1953 = vmatprep.subr.mxu0 0.0
        %1954 = vmatpush1.xpose.msra.mxu0 0.0
        %1955 = vmatprep.subr.mxu0 0.0
        %1956 = vmatpush1.xpose.msra.mxu0 0.0
        %1957 = vmatprep.subr.mxu0 0.0
        %1958 = vmatpush1.xpose.msra.mxu0 0.0
        %1959 = vmatprep.subr.mxu0 0.0
        %1960 = vmatpush1.xpose.msra.mxu0 0.0
        %1961 = vmatprep.subr.mxu0 0.0
        %1962 = vmatpush1.xpose.msra.mxu0 0.0
        %1963 = vmatprep.subr.mxu0 0.0
        %1964 = vmatpush1.xpose.msra.mxu0 0.0
        %1965 = vmatprep.subr.mxu0 0.0
        %1966 = vmatpush1.xpose.msra.mxu0 0.0
        %1967 = vmatprep.subr.mxu0 0.0
        %1968 = vmatpush1.xpose.msra.mxu0 0.0
        %1969 = vmatprep.subr.mxu0 0.0
        %1970 = vmatpush1.xpose.msra.mxu0 0.0
        %1971 = vmatprep.subr.mxu0 0.0
        %1972 = vmatpush1.xpose.msra.mxu0 %v1939
        %1973 = vmatprep.subr.mxu0 0.0
        %1974 = vmatpush2.xpose.msra.mxu0 0.0
        %1975 = vmatprep.subr.mxu0 0.0
        %1976 = vmatpush2.xpose.msra.mxu0 0.0
        %1977 = vmatprep.subr.mxu0 0.0
        %1978 = vmatpush2.xpose.msra.mxu0 0.0
        %1979 = vmatprep.subr.mxu0 0.0
        %1980 = vmatpush2.xpose.msra.mxu0 0.0
        %1981 = vmatprep.subr.mxu0 0.0
        %1982 = vmatpush2.xpose.msra.mxu0 0.0
        %1983 = vmatprep.subr.mxu0 0.0
        %1984 = vmatpush2.xpose.msra.mxu0 0.0
        %1985 = vmatprep.subr.mxu0 0.0
        %1986 = vmatpush2.xpose.msra.mxu0 0.0
        %1987 = vmatprep.subr.mxu0 0.0
        %1988 = vmatpush2.xpose.msra.mxu0 0.0
        %1989 = vmatprep.subr.mxu0 0.0
        %1990 = vmatpush2.xpose.msra.mxu0 0.0
        %1991 = vmatprep.subr.mxu0 0.0
        %1992 = vmatpush2.xpose.msra.mxu0 0.0
        %1993 = vmatprep.subr.mxu0 0.0
        %1994 = vmatpush2.xpose.msra.mxu0 0.0
        %1995 = vmatprep.subr.mxu0 0.0
        %1996 = vmatpush2.xpose.msra.mxu0 0.0
        %1997 = vmatprep.subr.mxu0 0.0
        %1998 = vmatpush2.xpose.msra.mxu0 0.0
        %1999 = vmatprep.subr.mxu0 0.0
        %2000 = vmatpush2.xpose.msra.mxu0 0.0
        %2001 = vmatprep.subr.mxu0 0.0
        %2002 = vmatpush2.xpose.msra.mxu0 0.0
        %2003 = vmatprep.subr.mxu0 0.0
        %2004 = vmatpush2.xpose.msra.mxu0 0.0
        %2005 = vmatprep.mubr.f32.mxu0 0.0
        %2006 = vmatmul.mubr.f32.gmra.mxu0 %v1936
        %v2007 = vpop.f32.mrf.mxu0
        %v2008 = vadd.f32 0.0, %v2007
        %v2009 = vpop.f32.mrf.mxu0
        %2010 = vdwg.mxu0
        %v2011 = vmul.f32 %v2008, 0.35355338
        %v2012 = vsel %vm1012, %v2011, -inf
        %2013 = vmax.xlane.f32.xlu0 %v2012
        %v2014 = vpop.xlane.xlu0 %2013
        %v2015 = vsub.f32 %v2011, %v2014
        %v2016 = vmul.f32 %v2015, 1.442695
        %v2017 = vpow.pop %v2016
        %v2018 = vsel %vm1012, %v2017, 0.0
        %2019 = vadd.xlane.f32.xlu0 %v2018
        %v2020 = vpop.xlane.xlu0 %2019
        %v2021 = vrcp.pop %v2020
        %v2022 = vmul.f32 %v2017, %v2021
        %v2024 = vsel %vm1012, %v2022, 0
        %2026 = vmatprep.subr.mxu0 0.0
        %2027 = vmatpush1.msra.mxu0 0.0
        %2028 = vmatprep.subr.mxu0 0.0
        %2029 = vmatpush1.msra.mxu0 0.0
        %2030 = vmatprep.subr.mxu0 0.0
        %2031 = vmatpush1.msra.mxu0 0.0
        %2032 = vmatprep.subr.mxu0 0.0
        %2033 = vmatpush1.msra.mxu0 0.0
        %2034 = vmatprep.subr.mxu0 0.0
        %2035 = vmatpush1.msra.mxu0 0.0
        %2036 = vmatprep.subr.mxu0 0.0
        %2037 = vmatpush1.msra.mxu0 0.0
        %2038 = vmatprep.subr.mxu0 0.0
        %2039 = vmatpush1.msra.mxu0 0.0
        %2040 = vmatprep.subr.mxu0 0.0
        %2041 = vmatpush1.msra.mxu0 0.0
        %2042 = vmatprep.subr.mxu0 0.0
        %2043 = vmatpush1.msra.mxu0 0.0
        %2044 = vmatprep.subr.mxu0 0.0
        %2045 = vmatpush1.msra.mxu0 0.0
        %2046 = vmatprep.subr.mxu0 0.0
        %2047 = vmatpush1.msra.mxu0 0.0
        %2048 = vmatprep.subr.mxu0 0.0
        %2049 = vmatpush1.msra.mxu0 0.0
        %2050 = vmatprep.subr.mxu0 0.0
        %2051 = vmatpush1.msra.mxu0 0.0
        %2052 = vmatprep.subr.mxu0 0.0
        %2053 = vmatpush1.msra.mxu0 0.0
        %2054 = vmatprep.subr.mxu0 0.0
        %2055 = vmatpush1.msra.mxu0 0.0
        %2056 = vmatprep.subr.mxu0 0.0
        %2057 = vmatpush1.msra.mxu0 %v1932
        %2058 = vmatprep.subr.mxu0 0.0
        %2059 = vmatpush2.msra.mxu0 0.0
        %2060 = vmatprep.subr.mxu0 0.0
        %2061 = vmatpush2.msra.mxu0 0.0
        %2062 = vmatprep.subr.mxu0 0.0
        %2063 = vmatpush2.msra.mxu0 0.0
        %2064 = vmatprep.subr.mxu0 0.0
        %2065 = vmatpush2.msra.mxu0 0.0
        %2066 = vmatprep.subr.mxu0 0.0
        %2067 = vmatpush2.msra.mxu0 0.0
        %2068 = vmatprep.subr.mxu0 0.0
        %2069 = vmatpush2.msra.mxu0 0.0
        %2070 = vmatprep.subr.mxu0 0.0
        %2071 = vmatpush2.msra.mxu0 0.0
        %2072 = vmatprep.subr.mxu0 0.0
        %2073 = vmatpush2.msra.mxu0 0.0
        %2074 = vmatprep.subr.mxu0 0.0
        %2075 = vmatpush2.msra.mxu0 0.0
        %2076 = vmatprep.subr.mxu0 0.0
        %2077 = vmatpush2.msra.mxu0 0.0
        %2078 = vmatprep.subr.mxu0 0.0
        %2079 = vmatpush2.msra.mxu0 0.0
        %2080 = vmatprep.subr.mxu0 0.0
        %2081 = vmatpush2.msra.mxu0 0.0
        %2082 = vmatprep.subr.mxu0 0.0
        %2083 = vmatpush2.msra.mxu0 0.0
        %2084 = vmatprep.subr.mxu0 0.0
        %2085 = vmatpush2.msra.mxu0 0.0
        %2086 = vmatprep.subr.mxu0 0.0
        %2087 = vmatpush2.msra.mxu0 0.0
        %2088 = vmatprep.subr.mxu0 0.0
        %2089 = vmatpush2.msra.mxu0 0.0
        %2090 = vmatprep.mubr.f32.mxu0 0.0
        %2091 = vmatmul.mubr.f32.gmra.mxu0 %v2024
        %v2092 = vpop.f32.mrf.mxu0
        %v2093 = vadd.f32 0.0, %v2092
        %v2094 = vpop.f32.mrf.mxu0
        %2095 = vdwg.mxu0
        %v2097 = vsel %vm1012, %v2093, 0
        %2099 = vmatprep.subr.mxu0 0.0
        %2100 = vmatpush1.msra.mxu0 0.0
        %2101 = vmatprep.subr.mxu0 0.0
        %2102 = vmatpush1.msra.mxu0 0.0
        %2103 = vmatprep.subr.mxu0 0.0
        %2104 = vmatpush1.msra.mxu0 0.0
        %2105 = vmatprep.subr.mxu0 0.0
        %2106 = vmatpush1.msra.mxu0 0.0
        %2107 = vmatprep.subr.mxu0 0.0
        %2108 = vmatpush1.msra.mxu0 0.0
        %2109 = vmatprep.subr.mxu0 0.0
        %2110 = vmatpush1.msra.mxu0 0.0
        %2111 = vmatprep.subr.mxu0 0.0
        %2112 = vmatpush1.msra.mxu0 0.0
        %2113 = vmatprep.subr.mxu0 0.0
        %2114 = vmatpush1.msra.mxu0 0.0
        %2115 = vmatprep.subr.mxu0 0.0
        %2116 = vmatpush1.msra.mxu0 0.0
        %2117 = vmatprep.subr.mxu0 0.0
        %2118 = vmatpush1.msra.mxu0 0.0
        %2119 = vmatprep.subr.mxu0 0.0
        %2120 = vmatpush1.msra.mxu0 0.0
        %2121 = vmatprep.subr.mxu0 0.0
        %2122 = vmatpush1.msra.mxu0 0.0
        %2123 = vmatprep.subr.mxu0 0.0
        %2124 = vmatpush1.msra.mxu0 0.0
        %2125 = vmatprep.subr.mxu0 0.0
        %2126 = vmatpush1.msra.mxu0 0.0
        %2127 = vmatprep.subr.mxu0 0.0
        %2128 = vmatpush1.msra.mxu0 0.0
        %2129 = vmatprep.subr.mxu0 0.0
        %2130 = vmatpush1.msra.mxu0 %v1724
        %2131 = vmatprep.subr.mxu0 0.0
        %2132 = vmatpush2.msra.mxu0 0.0
        %2133 = vmatprep.subr.mxu0 0.0
        %2134 = vmatpush2.msra.mxu0 0.0
        %2135 = vmatprep.subr.mxu0 0.0
        %2136 = vmatpush2.msra.mxu0 0.0
        %2137 = vmatprep.subr.mxu0 0.0
        %2138 = vmatpush2.msra.mxu0 0.0
        %2139 = vmatprep.subr.mxu0 0.0
        %2140 = vmatpush2.msra.mxu0 0.0
        %2141 = vmatprep.subr.mxu0 0.0
        %2142 = vmatpush2.msra.mxu0 0.0
        %2143 = vmatprep.subr.mxu0 0.0
        %2144 = vmatpush2.msra.mxu0 0.0
        %2145 = vmatprep.subr.mxu0 0.0
        %2146 = vmatpush2.msra.mxu0 0.0
        %2147 = vmatprep.subr.mxu0 0.0
        %2148 = vmatpush2.msra.mxu0 0.0
        %2149 = vmatprep.subr.mxu0 0.0
        %2150 = vmatpush2.msra.mxu0 0.0
        %2151 = vmatprep.subr.mxu0 0.0
        %2152 = vmatpush2.msra.mxu0 0.0
        %2153 = vmatprep.subr.mxu0 0.0
        %2154 = vmatpush2.msra.mxu0 0.0
        %2155 = vmatprep.subr.mxu0 0.0
        %2156 = vmatpush2.msra.mxu0 0.0
        %2157 = vmatprep.subr.mxu0 0.0
        %2158 = vmatpush2.msra.mxu0 0.0
        %2159 = vmatprep.subr.mxu0 0.0
        %2160 = vmatpush2.msra.mxu0 0.0
        %2161 = vmatprep.subr.mxu0 0.0
        %2162 = vmatpush2.msra.mxu0 0.0
        %2163 = vmatprep.mubr.f32.mxu0 0.0
        %2164 = vmatmul.mubr.f32.gmra.mxu0 %v2097
        %v2165 = vpop.f32.mrf.mxu0
        %v2166 = vadd.f32 0.0, %v2165
        %v2167 = vpop.f32.mrf.mxu0
        %2168 = vdwg.mxu0
        %v2169 = vadd.f32 %v1705, %v2166
        %s2170 = scalar_lea.vmem %s706, 96
        %v2171 = vld [vmem:[%s2170] sm:$0xff]
        %v2172 = vld [vmem:[%s2170 + $0x8] sm:$0xff]
        %v2173 = vld [vmem:[%s2170 + $0x10] sm:$0xff]
        %v2174 = vld [vmem:[%s2170 + $0x18] sm:$0xff]
        %s2175 = scalar_lea.vmem %s711, 96
        %v2176 = vld [vmem:[%s2175] sm:$0xff]
        %v2177 = vld [vmem:[%s2175 + $0x8] sm:$0xff]
        %v2178 = vld [vmem:[%s2175 + $0x10] sm:$0xff]
        %v2179 = vld [vmem:[%s2175 + $0x18] sm:$0xff]
        %s2180 = scalar_lea.vmem %s716, 96
        %v2181 = vld [vmem:[%s2180] sm:$0xff]
        %v2182 = vld [vmem:[%s2180 + $0x8] sm:$0xff]
        %v2183 = vld [vmem:[%s2180 + $0x10] sm:$0xff]
        %v2184 = vld [vmem:[%s2180 + $0x18] sm:$0xff]
        %s2185 = scalar_lea.vmem %s721, 24
        %v2186 = vld [vmem:[%s2185] sm:$0xff]
        %2187 = vmatprep.subr.mxu0 0.0
        %2188 = vmatpush1.msra.mxu0 0.0
        %2189 = vmatprep.subr.mxu0 0.0
        %2190 = vmatpush1.msra.mxu0 0.0
        %2191 = vmatprep.subr.mxu0 0.0
        %2192 = vmatpush1.msra.mxu0 0.0
        %2193 = vmatprep.subr.mxu0 0.0
        %2194 = vmatpush1.msra.mxu0 0.0
        %2195 = vmatprep.subr.mxu0 0.0
        %2196 = vmatpush1.msra.mxu0 0.0
        %2197 = vmatprep.subr.mxu0 0.0
        %2198 = vmatpush1.msra.mxu0 0.0
        %2199 = vmatprep.subr.mxu0 0.0
        %2200 = vmatpush1.msra.mxu0 0.0
        %2201 = vmatprep.subr.mxu0 0.0
        %2202 = vmatpush1.msra.mxu0 0.0
        %2203 = vmatprep.subr.mxu0 0.0
        %2204 = vmatpush1.msra.mxu0 0.0
        %2205 = vmatprep.subr.mxu0 0.0
        %2206 = vmatpush1.msra.mxu0 0.0
        %2207 = vmatprep.subr.mxu0 0.0
        %2208 = vmatpush1.msra.mxu0 0.0
        %2209 = vmatprep.subr.mxu0 0.0
        %2210 = vmatpush1.msra.mxu0 0.0
        %2211 = vmatprep.subr.mxu0 0.0
        %2212 = vmatpush1.msra.mxu0 %v2174
        %2213 = vmatprep.subr.mxu0 0.0
        %2214 = vmatpush1.msra.mxu0 %v2173
        %2215 = vmatprep.subr.mxu0 0.0
        %2216 = vmatpush1.msra.mxu0 %v2172
        %2217 = vmatprep.subr.mxu0 0.0
        %2218 = vmatpush1.msra.mxu0 %v2171
        %2219 = vmatprep.subr.mxu0 0.0
        %2220 = vmatpush2.msra.mxu0 0.0
        %2221 = vmatprep.subr.mxu0 0.0
        %2222 = vmatpush2.msra.mxu0 0.0
        %2223 = vmatprep.subr.mxu0 0.0
        %2224 = vmatpush2.msra.mxu0 0.0
        %2225 = vmatprep.subr.mxu0 0.0
        %2226 = vmatpush2.msra.mxu0 0.0
        %2227 = vmatprep.subr.mxu0 0.0
        %2228 = vmatpush2.msra.mxu0 0.0
        %2229 = vmatprep.subr.mxu0 0.0
        %2230 = vmatpush2.msra.mxu0 0.0
        %2231 = vmatprep.subr.mxu0 0.0
        %2232 = vmatpush2.msra.mxu0 0.0
        %2233 = vmatprep.subr.mxu0 0.0
        %2234 = vmatpush2.msra.mxu0 0.0
        %2235 = vmatprep.subr.mxu0 0.0
        %2236 = vmatpush2.msra.mxu0 0.0
        %2237 = vmatprep.subr.mxu0 0.0
        %2238 = vmatpush2.msra.mxu0 0.0
        %2239 = vmatprep.subr.mxu0 0.0
        %2240 = vmatpush2.msra.mxu0 0.0
        %2241 = vmatprep.subr.mxu0 0.0
        %2242 = vmatpush2.msra.mxu0 0.0
        %2243 = vmatprep.subr.mxu0 0.0
        %2244 = vmatpush2.msra.mxu0 0.0
        %2245 = vmatprep.subr.mxu0 0.0
        %2246 = vmatpush2.msra.mxu0 0.0
        %2247 = vmatprep.subr.mxu0 0.0
        %2248 = vmatpush2.msra.mxu0 0.0
        %2249 = vmatprep.subr.mxu0 0.0
        %2250 = vmatpush2.msra.mxu0 0.0
        %2251 = vmatprep.mubr.f32.mxu0 0.0
        %2252 = vmatmul.mubr.f32.gmra.mxu0 %v800
        %v2253 = vpop.f32.mrf.mxu0
        %v2254 = vadd.f32 0.0, %v2253
        %v2255 = vpop.f32.mrf.mxu0
        %2256 = vdwg.mxu0
        %2257 = vmatprep.subr.mxu0 0.0
        %2258 = vmatpush1.msra.mxu0 0.0
        %2259 = vmatprep.subr.mxu0 0.0
        %2260 = vmatpush1.msra.mxu0 0.0
        %2261 = vmatprep.subr.mxu0 0.0
        %2262 = vmatpush1.msra.mxu0 0.0
        %2263 = vmatprep.subr.mxu0 0.0
        %2264 = vmatpush1.msra.mxu0 0.0
        %2265 = vmatprep.subr.mxu0 0.0
        %2266 = vmatpush1.msra.mxu0 0.0
        %2267 = vmatprep.subr.mxu0 0.0
        %2268 = vmatpush1.msra.mxu0 0.0
        %2269 = vmatprep.subr.mxu0 0.0
        %2270 = vmatpush1.msra.mxu0 0.0
        %2271 = vmatprep.subr.mxu0 0.0
        %2272 = vmatpush1.msra.mxu0 0.0
        %2273 = vmatprep.subr.mxu0 0.0
        %2274 = vmatpush1.msra.mxu0 0.0
        %2275 = vmatprep.subr.mxu0 0.0
        %2276 = vmatpush1.msra.mxu0 0.0
        %2277 = vmatprep.subr.mxu0 0.0
        %2278 = vmatpush1.msra.mxu0 0.0
        %2279 = vmatprep.subr.mxu0 0.0
        %2280 = vmatpush1.msra.mxu0 0.0
        %2281 = vmatprep.subr.mxu0 0.0
        %2282 = vmatpush1.msra.mxu0 %v2179
        %2283 = vmatprep.subr.mxu0 0.0
        %2284 = vmatpush1.msra.mxu0 %v2178
        %2285 = vmatprep.subr.mxu0 0.0
        %2286 = vmatpush1.msra.mxu0 %v2177
        %2287 = vmatprep.subr.mxu0 0.0
        %2288 = vmatpush1.msra.mxu0 %v2176
        %2289 = vmatprep.subr.mxu0 0.0
        %2290 = vmatpush2.msra.mxu0 0.0
        %2291 = vmatprep.subr.mxu0 0.0
        %2292 = vmatpush2.msra.mxu0 0.0
        %2293 = vmatprep.subr.mxu0 0.0
        %2294 = vmatpush2.msra.mxu0 0.0
        %2295 = vmatprep.subr.mxu0 0.0
        %2296 = vmatpush2.msra.mxu0 0.0
        %2297 = vmatprep.subr.mxu0 0.0
        %2298 = vmatpush2.msra.mxu0 0.0
        %2299 = vmatprep.subr.mxu0 0.0
        %2300 = vmatpush2.msra.mxu0 0.0
        %2301 = vmatprep.subr.mxu0 0.0
        %2302 = vmatpush2.msra.mxu0 0.0
        %2303 = vmatprep.subr.mxu0 0.0
        %2304 = vmatpush2.msra.mxu0 0.0
        %2305 = vmatprep.subr.mxu0 0.0
        %2306 = vmatpush2.msra.mxu0 0.0
        %2307 = vmatprep.subr.mxu0 0.0
        %2308 = vmatpush2.msra.mxu0 0.0
        %2309 = vmatprep.subr.mxu0 0.0
        %2310 = vmatpush2.msra.mxu0 0.0
        %2311 = vmatprep.subr.mxu0 0.0
        %2312 = vmatpush2.msra.mxu0 0.0
        %2313 = vmatprep.subr.mxu0 0.0
        %2314 = vmatpush2.msra.mxu0 0.0
        %2315 = vmatprep.subr.mxu0 0.0
        %2316 = vmatpush2.msra.mxu0 0.0
        %2317 = vmatprep.subr.mxu0 0.0
        %2318 = vmatpush2.msra.mxu0 0.0
        %2319 = vmatprep.subr.mxu0 0.0
        %2320 = vmatpush2.msra.mxu0 0.0
        %2321 = vmatprep.mubr.f32.mxu0 0.0
        %2322 = vmatmul.mubr.f32.gmra.mxu0 %v800
        %v2323 = vpop.f32.mrf.mxu0
        %v2324 = vadd.f32 0.0, %v2323
        %v2325 = vpop.f32.mrf.mxu0
        %2326 = vdwg.mxu0
        %2327 = vmatprep.subr.mxu0 0.0
        %2328 = vmatpush1.msra.mxu0 0.0
        %2329 = vmatprep.subr.mxu0 0.0
        %2330 = vmatpush1.msra.mxu0 0.0
        %2331 = vmatprep.subr.mxu0 0.0
        %2332 = vmatpush1.msra.mxu0 0.0
        %2333 = vmatprep.subr.mxu0 0.0
        %2334 = vmatpush1.msra.mxu0 0.0
        %2335 = vmatprep.subr.mxu0 0.0
        %2336 = vmatpush1.msra.mxu0 0.0
        %2337 = vmatprep.subr.mxu0 0.0
        %2338 = vmatpush1.msra.mxu0 0.0
        %2339 = vmatprep.subr.mxu0 0.0
        %2340 = vmatpush1.msra.mxu0 0.0
        %2341 = vmatprep.subr.mxu0 0.0
        %2342 = vmatpush1.msra.mxu0 0.0
        %2343 = vmatprep.subr.mxu0 0.0
        %2344 = vmatpush1.msra.mxu0 0.0
        %2345 = vmatprep.subr.mxu0 0.0
        %2346 = vmatpush1.msra.mxu0 0.0
        %2347 = vmatprep.subr.mxu0 0.0
        %2348 = vmatpush1.msra.mxu0 0.0
        %2349 = vmatprep.subr.mxu0 0.0
        %2350 = vmatpush1.msra.mxu0 0.0
        %2351 = vmatprep.subr.mxu0 0.0
        %2352 = vmatpush1.msra.mxu0 %v2184
        %2353 = vmatprep.subr.mxu0 0.0
        %2354 = vmatpush1.msra.mxu0 %v2183
        %2355 = vmatprep.subr.mxu0 0.0
        %2356 = vmatpush1.msra.mxu0 %v2182
        %2357 = vmatprep.subr.mxu0 0.0
        %2358 = vmatpush1.msra.mxu0 %v2181
        %2359 = vmatprep.subr.mxu0 0.0
        %2360 = vmatpush2.msra.mxu0 0.0
        %2361 = vmatprep.subr.mxu0 0.0
        %2362 = vmatpush2.msra.mxu0 0.0
        %2363 = vmatprep.subr.mxu0 0.0
        %2364 = vmatpush2.msra.mxu0 0.0
        %2365 = vmatprep.subr.mxu0 0.0
        %2366 = vmatpush2.msra.mxu0 0.0
        %2367 = vmatprep.subr.mxu0 0.0
        %2368 = vmatpush2.msra.mxu0 0.0
        %2369 = vmatprep.subr.mxu0 0.0
        %2370 = vmatpush2.msra.mxu0 0.0
        %2371 = vmatprep.subr.mxu0 0.0
        %2372 = vmatpush2.msra.mxu0 0.0
        %2373 = vmatprep.subr.mxu0 0.0
        %2374 = vmatpush2.msra.mxu0 0.0
        %2375 = vmatprep.subr.mxu0 0.0
        %2376 = vmatpush2.msra.mxu0 0.0
        %2377 = vmatprep.subr.mxu0 0.0
        %2378 = vmatpush2.msra.mxu0 0.0
        %2379 = vmatprep.subr.mxu0 0.0
        %2380 = vmatpush2.msra.mxu0 0.0
        %2381 = vmatprep.subr.mxu0 0.0
        %2382 = vmatpush2.msra.mxu0 0.0
        %2383 = vmatprep.subr.mxu0 0.0
        %2384 = vmatpush2.msra.mxu0 0.0
        %2385 = vmatprep.subr.mxu0 0.0
        %2386 = vmatpush2.msra.mxu0 0.0
        %2387 = vmatprep.subr.mxu0 0.0
        %2388 = vmatpush2.msra.mxu0 0.0
        %2389 = vmatprep.subr.mxu0 0.0
        %2390 = vmatpush2.msra.mxu0 0.0
        %2391 = vmatprep.mubr.f32.mxu0 0.0
        %2392 = vmatmul.mubr.f32.gmra.mxu0 %v800
        %v2393 = vpop.f32.mrf.mxu0
        %v2394 = vadd.f32 0.0, %v2393
        %v2395 = vpop.f32.mrf.mxu0
        %2396 = vdwg.mxu0
        %v2398 = vsel %vm1012, %v2254, 0
        %v2401 = vsel %vm1012, %v2324, 0
        %2403 = vmatprep.subr.mxu0 0.0
        %2404 = vmatpush1.xpose.msra.mxu0 0.0
        %2405 = vmatprep.subr.mxu0 0.0
        %2406 = vmatpush1.xpose.msra.mxu0 0.0
        %2407 = vmatprep.subr.mxu0 0.0
        %2408 = vmatpush1.xpose.msra.mxu0 0.0
        %2409 = vmatprep.subr.mxu0 0.0
        %2410 = vmatpush1.xpose.msra.mxu0 0.0
        %2411 = vmatprep.subr.mxu0 0.0
        %2412 = vmatpush1.xpose.msra.mxu0 0.0
        %2413 = vmatprep.subr.mxu0 0.0
        %2414 = vmatpush1.xpose.msra.mxu0 0.0
        %2415 = vmatprep.subr.mxu0 0.0
        %2416 = vmatpush1.xpose.msra.mxu0 0.0
        %2417 = vmatprep.subr.mxu0 0.0
        %2418 = vmatpush1.xpose.msra.mxu0 0.0
        %2419 = vmatprep.subr.mxu0 0.0
        %2420 = vmatpush1.xpose.msra.mxu0 0.0
        %2421 = vmatprep.subr.mxu0 0.0
        %2422 = vmatpush1.xpose.msra.mxu0 0.0
        %2423 = vmatprep.subr.mxu0 0.0
        %2424 = vmatpush1.xpose.msra.mxu0 0.0
        %2425 = vmatprep.subr.mxu0 0.0
        %2426 = vmatpush1.xpose.msra.mxu0 0.0
        %2427 = vmatprep.subr.mxu0 0.0
        %2428 = vmatpush1.xpose.msra.mxu0 0.0
        %2429 = vmatprep.subr.mxu0 0.0
        %2430 = vmatpush1.xpose.msra.mxu0 0.0
        %2431 = vmatprep.subr.mxu0 0.0
        %2432 = vmatpush1.xpose.msra.mxu0 0.0
        %2433 = vmatprep.subr.mxu0 0.0
        %2434 = vmatpush1.xpose.msra.mxu0 %v2401
        %2435 = vmatprep.subr.mxu0 0.0
        %2436 = vmatpush2.xpose.msra.mxu0 0.0
        %2437 = vmatprep.subr.mxu0 0.0
        %2438 = vmatpush2.xpose.msra.mxu0 0.0
        %2439 = vmatprep.subr.mxu0 0.0
        %2440 = vmatpush2.xpose.msra.mxu0 0.0
        %2441 = vmatprep.subr.mxu0 0.0
        %2442 = vmatpush2.xpose.msra.mxu0 0.0
        %2443 = vmatprep.subr.mxu0 0.0
        %2444 = vmatpush2.xpose.msra.mxu0 0.0
        %2445 = vmatprep.subr.mxu0 0.0
        %2446 = vmatpush2.xpose.msra.mxu0 0.0
        %2447 = vmatprep.subr.mxu0 0.0
        %2448 = vmatpush2.xpose.msra.mxu0 0.0
        %2449 = vmatprep.subr.mxu0 0.0
        %2450 = vmatpush2.xpose.msra.mxu0 0.0
        %2451 = vmatprep.subr.mxu0 0.0
        %2452 = vmatpush2.xpose.msra.mxu0 0.0
        %2453 = vmatprep.subr.mxu0 0.0
        %2454 = vmatpush2.xpose.msra.mxu0 0.0
        %2455 = vmatprep.subr.mxu0 0.0
        %2456 = vmatpush2.xpose.msra.mxu0 0.0
        %2457 = vmatprep.subr.mxu0 0.0
        %2458 = vmatpush2.xpose.msra.mxu0 0.0
        %2459 = vmatprep.subr.mxu0 0.0
        %2460 = vmatpush2.xpose.msra.mxu0 0.0
        %2461 = vmatprep.subr.mxu0 0.0
        %2462 = vmatpush2.xpose.msra.mxu0 0.0
        %2463 = vmatprep.subr.mxu0 0.0
        %2464 = vmatpush2.xpose.msra.mxu0 0.0
        %2465 = vmatprep.subr.mxu0 0.0
        %2466 = vmatpush2.xpose.msra.mxu0 0.0
        %2467 = vmatprep.mubr.f32.mxu0 0.0
        %2468 = vmatmul.mubr.f32.gmra.mxu0 %v2398
        %v2469 = vpop.f32.mrf.mxu0
        %v2470 = vadd.f32 0.0, %v2469
        %v2471 = vpop.f32.mrf.mxu0
        %2472 = vdwg.mxu0
        %v2473 = vmul.f32 %v2470, 0.35355338
        %v2474 = vsel %vm1012, %v2473, -inf
        %2475 = vmax.xlane.f32.xlu0 %v2474
        %v2476 = vpop.xlane.xlu0 %2475
        %v2477 = vsub.f32 %v2473, %v2476
        %v2478 = vmul.f32 %v2477, 1.442695
        %v2479 = vpow.pop %v2478
        %v2480 = vsel %vm1012, %v2479, 0.0
        %2481 = vadd.xlane.f32.xlu0 %v2480
        %v2482 = vpop.xlane.xlu0 %2481
        %v2483 = vrcp.pop %v2482
        %v2484 = vmul.f32 %v2479, %v2483
        %v2486 = vsel %vm1012, %v2484, 0
        %2488 = vmatprep.subr.mxu0 0.0
        %2489 = vmatpush1.msra.mxu0 0.0
        %2490 = vmatprep.subr.mxu0 0.0
        %2491 = vmatpush1.msra.mxu0 0.0
        %2492 = vmatprep.subr.mxu0 0.0
        %2493 = vmatpush1.msra.mxu0 0.0
        %2494 = vmatprep.subr.mxu0 0.0
        %2495 = vmatpush1.msra.mxu0 0.0
        %2496 = vmatprep.subr.mxu0 0.0
        %2497 = vmatpush1.msra.mxu0 0.0
        %2498 = vmatprep.subr.mxu0 0.0
        %2499 = vmatpush1.msra.mxu0 0.0
        %2500 = vmatprep.subr.mxu0 0.0
        %2501 = vmatpush1.msra.mxu0 0.0
        %2502 = vmatprep.subr.mxu0 0.0
        %2503 = vmatpush1.msra.mxu0 0.0
        %2504 = vmatprep.subr.mxu0 0.0
        %2505 = vmatpush1.msra.mxu0 0.0
        %2506 = vmatprep.subr.mxu0 0.0
        %2507 = vmatpush1.msra.mxu0 0.0
        %2508 = vmatprep.subr.mxu0 0.0
        %2509 = vmatpush1.msra.mxu0 0.0
        %2510 = vmatprep.subr.mxu0 0.0
        %2511 = vmatpush1.msra.mxu0 0.0
        %2512 = vmatprep.subr.mxu0 0.0
        %2513 = vmatpush1.msra.mxu0 0.0
        %2514 = vmatprep.subr.mxu0 0.0
        %2515 = vmatpush1.msra.mxu0 0.0
        %2516 = vmatprep.subr.mxu0 0.0
        %2517 = vmatpush1.msra.mxu0 0.0
        %2518 = vmatprep.subr.mxu0 0.0
        %2519 = vmatpush1.msra.mxu0 %v2394
        %2520 = vmatprep.subr.mxu0 0.0
        %2521 = vmatpush2.msra.mxu0 0.0
        %2522 = vmatprep.subr.mxu0 0.0
        %2523 = vmatpush2.msra.mxu0 0.0
        %2524 = vmatprep.subr.mxu0 0.0
        %2525 = vmatpush2.msra.mxu0 0.0
        %2526 = vmatprep.subr.mxu0 0.0
        %2527 = vmatpush2.msra.mxu0 0.0
        %2528 = vmatprep.subr.mxu0 0.0
        %2529 = vmatpush2.msra.mxu0 0.0
        %2530 = vmatprep.subr.mxu0 0.0
        %2531 = vmatpush2.msra.mxu0 0.0
        %2532 = vmatprep.subr.mxu0 0.0
        %2533 = vmatpush2.msra.mxu0 0.0
        %2534 = vmatprep.subr.mxu0 0.0
        %2535 = vmatpush2.msra.mxu0 0.0
        %2536 = vmatprep.subr.mxu0 0.0
        %2537 = vmatpush2.msra.mxu0 0.0
        %2538 = vmatprep.subr.mxu0 0.0
        %2539 = vmatpush2.msra.mxu0 0.0
        %2540 = vmatprep.subr.mxu0 0.0
        %2541 = vmatpush2.msra.mxu0 0.0
        %2542 = vmatprep.subr.mxu0 0.0
        %2543 = vmatpush2.msra.mxu0 0.0
        %2544 = vmatprep.subr.mxu0 0.0
        %2545 = vmatpush2.msra.mxu0 0.0
        %2546 = vmatprep.subr.mxu0 0.0
        %2547 = vmatpush2.msra.mxu0 0.0
        %2548 = vmatprep.subr.mxu0 0.0
        %2549 = vmatpush2.msra.mxu0 0.0
        %2550 = vmatprep.subr.mxu0 0.0
        %2551 = vmatpush2.msra.mxu0 0.0
        %2552 = vmatprep.mubr.f32.mxu0 0.0
        %2553 = vmatmul.mubr.f32.gmra.mxu0 %v2486
        %v2554 = vpop.f32.mrf.mxu0
        %v2555 = vadd.f32 0.0, %v2554
        %v2556 = vpop.f32.mrf.mxu0
        %2557 = vdwg.mxu0
        %v2559 = vsel %vm1012, %v2555, 0
        %2561 = vmatprep.subr.mxu0 0.0
        %2562 = vmatpush1.msra.mxu0 0.0
        %2563 = vmatprep.subr.mxu0 0.0
        %2564 = vmatpush1.msra.mxu0 0.0
        %2565 = vmatprep.subr.mxu0 0.0
        %2566 = vmatpush1.msra.mxu0 0.0
        %2567 = vmatprep.subr.mxu0 0.0
        %2568 = vmatpush1.msra.mxu0 0.0
        %2569 = vmatprep.subr.mxu0 0.0
        %2570 = vmatpush1.msra.mxu0 0.0
        %2571 = vmatprep.subr.mxu0 0.0
        %2572 = vmatpush1.msra.mxu0 0.0
        %2573 = vmatprep.subr.mxu0 0.0
        %2574 = vmatpush1.msra.mxu0 0.0
        %2575 = vmatprep.subr.mxu0 0.0
        %2576 = vmatpush1.msra.mxu0 0.0
        %2577 = vmatprep.subr.mxu0 0.0
        %2578 = vmatpush1.msra.mxu0 0.0
        %2579 = vmatprep.subr.mxu0 0.0
        %2580 = vmatpush1.msra.mxu0 0.0
        %2581 = vmatprep.subr.mxu0 0.0
        %2582 = vmatpush1.msra.mxu0 0.0
        %2583 = vmatprep.subr.mxu0 0.0
        %2584 = vmatpush1.msra.mxu0 0.0
        %2585 = vmatprep.subr.mxu0 0.0
        %2586 = vmatpush1.msra.mxu0 0.0
        %2587 = vmatprep.subr.mxu0 0.0
        %2588 = vmatpush1.msra.mxu0 0.0
        %2589 = vmatprep.subr.mxu0 0.0
        %2590 = vmatpush1.msra.mxu0 0.0
        %2591 = vmatprep.subr.mxu0 0.0
        %2592 = vmatpush1.msra.mxu0 %v2186
        %2593 = vmatprep.subr.mxu0 0.0
        %2594 = vmatpush2.msra.mxu0 0.0
        %2595 = vmatprep.subr.mxu0 0.0
        %2596 = vmatpush2.msra.mxu0 0.0
        %2597 = vmatprep.subr.mxu0 0.0
        %2598 = vmatpush2.msra.mxu0 0.0
        %2599 = vmatprep.subr.mxu0 0.0
        %2600 = vmatpush2.msra.mxu0 0.0
        %2601 = vmatprep.subr.mxu0 0.0
        %2602 = vmatpush2.msra.mxu0 0.0
        %2603 = vmatprep.subr.mxu0 0.0
        %2604 = vmatpush2.msra.mxu0 0.0
        %2605 = vmatprep.subr.mxu0 0.0
        %2606 = vmatpush2.msra.mxu0 0.0
        %2607 = vmatprep.subr.mxu0 0.0
        %2608 = vmatpush2.msra.mxu0 0.0
        %2609 = vmatprep.subr.mxu0 0.0
        %2610 = vmatpush2.msra.mxu0 0.0
        %2611 = vmatprep.subr.mxu0 0.0
        %2612 = vmatpush2.msra.mxu0 0.0
        %2613 = vmatprep.subr.mxu0 0.0
        %2614 = vmatpush2.msra.mxu0 0.0
        %2615 = vmatprep.subr.mxu0 0.0
        %2616 = vmatpush2.msra.mxu0 0.0
        %2617 = vmatprep.subr.mxu0 0.0
        %2618 = vmatpush2.msra.mxu0 0.0
        %2619 = vmatprep.subr.mxu0 0.0
        %2620 = vmatpush2.msra.mxu0 0.0
        %2621 = vmatprep.subr.mxu0 0.0
        %2622 = vmatpush2.msra.mxu0 0.0
        %2623 = vmatprep.subr.mxu0 0.0
        %2624 = vmatpush2.msra.mxu0 0.0
        %2625 = vmatprep.mubr.f32.mxu0 0.0
        %2626 = vmatmul.mubr.f32.gmra.mxu0 %v2559
        %v2627 = vpop.f32.mrf.mxu0
        %v2628 = vadd.f32 0.0, %v2627
        %v2629 = vpop.f32.mrf.mxu0
        %2630 = vdwg.mxu0
        %v2631 = vadd.f32 %v2169, %v2628
        %v2632 = vadd.f32 %v754, %v2631
        %v2633 = vld [vmem:[%s724] sm:$0x1]
        %v2635 = vlaneseq
        %v2636 = vshrl.u32 %v2635, 7
        %v2637 = vsub.s32 0, %v2636
        %v2638 = vrot.slane %v2633, %v2637
        %v2640 = vadd.f32 %v2632, %v2638
        %v2641 = vld [vmem:[%s727] sm:$0x1]
        %v2642 = vld [vmem:[%s730] sm:$0x1]
        %v2643 = vsel %vm757, %v2640, 0.0
        %2644 = vadd.xlane.f32.xlu0 %v2643
        %v2645 = vpop.xlane.xlu0 %2644
        %v2646 = vmul.f32 %v2645, %v761
        %v2647 = vsub.f32 %v2640, %v2646
        %v2648 = vmul.f32 %v2647, %v2647
        %v2649 = vsel %vm757, %v2648, 0.0
        %2650 = vadd.xlane.f32.xlu0 %v2649
        %v2651 = vpop.xlane.xlu0 %2650
        %v2652 = vmul.f32 %v2651, %v761
        %v2653 = vadd.f32 %v2652, 1e-05
        %v2654 = vrsqrt.pop %v2653
        %v2655 = vmul.f32 %v2647, %v2654
        %v2657 = vlaneseq
        %v2658 = vshrl.u32 %v2657, 7
        %v2659 = vsub.s32 0, %v2658
        %v2660 = vrot.slane %v2641, %v2659
        %v2662 = vmul.f32 %v2655, %v2660
        %v2664 = vlaneseq
        %v2665 = vshrl.u32 %v2664, 7
        %v2666 = vsub.s32 0, %v2665
        %v2667 = vrot.slane %v2642, %v2666
        %v2669 = vadd.f32 %v2662, %v2667
        %v2670 = vld [vmem:[%s735] sm:$0xff]
        %v2671 = vld [vmem:[%s735 + $0x8] sm:$0xff]
        %v2672 = vld [vmem:[%s735 + $0x10] sm:$0xff]
        %v2673 = vld [vmem:[%s735 + $0x18] sm:$0xff]
        %v2674 = vld [vmem:[%s738] sm:$0x1]
        %v2676 = vlaneseq
        %v2677 = vshrl.u32 %v2676, 7
        %v2678 = vsub.s32 0, %v2677
        %v2679 = vrot.slane %v2674, %v2678
        %v2682 = vsel %vm757, %v2669, 0
        %2684 = vmatprep.subr.mxu0 0.0
        %2685 = vmatpush1.msra.mxu0 0.0
        %2686 = vmatprep.subr.mxu0 0.0
        %2687 = vmatpush1.msra.mxu0 0.0
        %2688 = vmatprep.subr.mxu0 0.0
        %2689 = vmatpush1.msra.mxu0 0.0
        %2690 = vmatprep.subr.mxu0 0.0
        %2691 = vmatpush1.msra.mxu0 0.0
        %2692 = vmatprep.subr.mxu0 0.0
        %2693 = vmatpush1.msra.mxu0 0.0
        %2694 = vmatprep.subr.mxu0 0.0
        %2695 = vmatpush1.msra.mxu0 0.0
        %2696 = vmatprep.subr.mxu0 0.0
        %2697 = vmatpush1.msra.mxu0 0.0
        %2698 = vmatprep.subr.mxu0 0.0
        %2699 = vmatpush1.msra.mxu0 0.0
        %2700 = vmatprep.subr.mxu0 0.0
        %2701 = vmatpush1.msra.mxu0 0.0
        %2702 = vmatprep.subr.mxu0 0.0
        %2703 = vmatpush1.msra.mxu0 0.0
        %2704 = vmatprep.subr.mxu0 0.0
        %2705 = vmatpush1.msra.mxu0 0.0
        %2706 = vmatprep.subr.mxu0 0.0
        %2707 = vmatpush1.msra.mxu0 0.0
        %2708 = vmatprep.subr.mxu0 0.0
        %2709 = vmatpush1.msra.mxu0 %v2673
        %2710 = vmatprep.subr.mxu0 0.0
        %2711 = vmatpush1.msra.mxu0 %v2672
        %2712 = vmatprep.subr.mxu0 0.0
        %2713 = vmatpush1.msra.mxu0 %v2671
        %2714 = vmatprep.subr.mxu0 0.0
        %2715 = vmatpush1.msra.mxu0 %v2670
        %2716 = vmatprep.subr.mxu0 0.0
        %2717 = vmatpush2.msra.mxu0 0.0
        %2718 = vmatprep.subr.mxu0 0.0
        %2719 = vmatpush2.msra.mxu0 0.0
        %2720 = vmatprep.subr.mxu0 0.0
        %2721 = vmatpush2.msra.mxu0 0.0
        %2722 = vmatprep.subr.mxu0 0.0
        %2723 = vmatpush2.msra.mxu0 0.0
        %2724 = vmatprep.subr.mxu0 0.0
        %2725 = vmatpush2.msra.mxu0 0.0
        %2726 = vmatprep.subr.mxu0 0.0
        %2727 = vmatpush2.msra.mxu0 0.0
        %2728 = vmatprep.subr.mxu0 0.0
        %2729 = vmatpush2.msra.mxu0 0.0
        %2730 = vmatprep.subr.mxu0 0.0
        %2731 = vmatpush2.msra.mxu0 0.0
        %2732 = vmatprep.subr.mxu0 0.0
        %2733 = vmatpush2.msra.mxu0 0.0
        %2734 = vmatprep.subr.mxu0 0.0
        %2735 = vmatpush2.msra.mxu0 0.0
        %2736 = vmatprep.subr.mxu0 0.0
        %2737 = vmatpush2.msra.mxu0 0.0
        %2738 = vmatprep.subr.mxu0 0.0
        %2739 = vmatpush2.msra.mxu0 0.0
        %2740 = vmatprep.subr.mxu0 0.0
        %2741 = vmatpush2.msra.mxu0 0.0
        %2742 = vmatprep.subr.mxu0 0.0
        %2743 = vmatpush2.msra.mxu0 0.0
        %2744 = vmatprep.subr.mxu0 0.0
        %2745 = vmatpush2.msra.mxu0 0.0
        %2746 = vmatprep.subr.mxu0 0.0
        %2747 = vmatpush2.msra.mxu0 0.0
        %2748 = vmatprep.mubr.f32.mxu0 0.0
        %2749 = vmatmul.mubr.f32.gmra.mxu0 %v2682
        %v2750 = vpop.f32.mrf.mxu0
        %v2751 = vadd.f32 %v2679, %v2750
        %v2752 = vpop.f32.mrf.mxu0
        %2753 = vdwg.mxu0
        %v2754 = vmul.f32 %v2751, 0.5
        %v2755 = vmul.f32 %v2751, 0.70710677
        %v2756 = verf.f32.pop %v2755
        %v2757 = vadd.f32 %v2756, 1.0
        %v2758 = vmul.f32 %v2754, %v2757
        %v2759 = vld [vmem:[%s743] sm:$0xff]
        %v2760 = vld [vmem:[%s743 + $0x8] sm:$0xff]
        %v2761 = vld [vmem:[%s743 + $0x10] sm:$0xff]
        %v2762 = vld [vmem:[%s743 + $0x18] sm:$0xff]
        %v2763 = vld [vmem:[%s743 + $0x20] sm:$0xff]
        %v2764 = vld [vmem:[%s743 + $0x28] sm:$0xff]
        %v2765 = vld [vmem:[%s743 + $0x30] sm:$0xff]
        %v2766 = vld [vmem:[%s743 + $0x38] sm:$0xff]
        %vm2767 = vcmask 523264
        %v2769 = vsel %vm2767, %v2758, 0
        %2771 = vmatprep.subr.mxu0 0.0
        %2772 = vmatpush1.msra.mxu0 0.0
        %2773 = vmatprep.subr.mxu0 0.0
        %2774 = vmatpush1.msra.mxu0 0.0
        %2775 = vmatprep.subr.mxu0 0.0
        %2776 = vmatpush1.msra.mxu0 0.0
        %2777 = vmatprep.subr.mxu0 0.0
        %2778 = vmatpush1.msra.mxu0 0.0
        %2779 = vmatprep.subr.mxu0 0.0
        %2780 = vmatpush1.msra.mxu0 0.0
        %2781 = vmatprep.subr.mxu0 0.0
        %2782 = vmatpush1.msra.mxu0 0.0
        %2783 = vmatprep.subr.mxu0 0.0
        %2784 = vmatpush1.msra.mxu0 0.0
        %2785 = vmatprep.subr.mxu0 0.0
        %2786 = vmatpush1.msra.mxu0 0.0
        %2787 = vmatprep.subr.mxu0 0.0
        %2788 = vmatpush1.msra.mxu0 %v2766
        %2789 = vmatprep.subr.mxu0 0.0
        %2790 = vmatpush1.msra.mxu0 %v2765
        %2791 = vmatprep.subr.mxu0 0.0
        %2792 = vmatpush1.msra.mxu0 %v2764
        %2793 = vmatprep.subr.mxu0 0.0
        %2794 = vmatpush1.msra.mxu0 %v2763
        %2795 = vmatprep.subr.mxu0 0.0
        %2796 = vmatpush1.msra.mxu0 %v2762
        %2797 = vmatprep.subr.mxu0 0.0
        %2798 = vmatpush1.msra.mxu0 %v2761
        %2799 = vmatprep.subr.mxu0 0.0
        %2800 = vmatpush1.msra.mxu0 %v2760
        %2801 = vmatprep.subr.mxu0 0.0
        %2802 = vmatpush1.msra.mxu0 %v2759
        %2803 = vmatprep.subr.mxu0 0.0
        %2804 = vmatpush2.msra.mxu0 0.0
        %2805 = vmatprep.subr.mxu0 0.0
        %2806 = vmatpush2.msra.mxu0 0.0
        %2807 = vmatprep.subr.mxu0 0.0
        %2808 = vmatpush2.msra.mxu0 0.0
        %2809 = vmatprep.subr.mxu0 0.0
        %2810 = vmatpush2.msra.mxu0 0.0
        %2811 = vmatprep.subr.mxu0 0.0
        %2812 = vmatpush2.msra.mxu0 0.0
        %2813 = vmatprep.subr.mxu0 0.0
        %2814 = vmatpush2.msra.mxu0 0.0
        %2815 = vmatprep.subr.mxu0 0.0
        %2816 = vmatpush2.msra.mxu0 0.0
        %2817 = vmatprep.subr.mxu0 0.0
        %2818 = vmatpush2.msra.mxu0 0.0
        %2819 = vmatprep.subr.mxu0 0.0
        %2820 = vmatpush2.msra.mxu0 0.0
        %2821 = vmatprep.subr.mxu0 0.0
        %2822 = vmatpush2.msra.mxu0 0.0
        %2823 = vmatprep.subr.mxu0 0.0
        %2824 = vmatpush2.msra.mxu0 0.0
        %2825 = vmatprep.subr.mxu0 0.0
        %2826 = vmatpush2.msra.mxu0 0.0
        %2827 = vmatprep.subr.mxu0 0.0
        %2828 = vmatpush2.msra.mxu0 0.0
        %2829 = vmatprep.subr.mxu0 0.0
        %2830 = vmatpush2.msra.mxu0 0.0
        %2831 = vmatprep.subr.mxu0 0.0
        %2832 = vmatpush2.msra.mxu0 0.0
        %2833 = vmatprep.subr.mxu0 0.0
        %2834 = vmatpush2.msra.mxu0 0.0
        %2835 = vmatprep.mubr.f32.mxu0 0.0
        %2836 = vmatmul.mubr.f32.gmra.mxu0 %v2769
        %v2837 = vpop.f32.mrf.mxu0
        %v2838 = vadd.f32 0.0, %v2837
        %v2839 = vpop.f32.mrf.mxu0
        %2840 = vdwg.mxu0
        %v2841 = vadd.f32 %v2640, %v2838
        %v2842 = vld [vmem:[%s746] sm:$0x1]
        %v2844 = vlaneseq
        %v2845 = vshrl.u32 %v2844, 7
        %v2846 = vsub.s32 0, %v2845
        %v2847 = vrot.slane %v2842, %v2846
        %v2849 = vadd.f32 %v2841, %v2847
        %2850 = vst.msk [vmem:[#allocation2] sm:$0xff] %vm757, %v2849
        %p2851 = scmp.eq.s32.totalorder %s35, 1
        // Predicated region
        $region89: #{tpu_custom_call.1} parent=83 // pred_check
          %p2852 = pneg %p2851
        $region90: #{tpu_custom_call.1} parent=83 // pred_check_branch
          %2854 = sbr.rel (%p2852) target = $region92
        $region91: #{tpu_custom_call.1} parent=83 // pred_region
          %v2855 = vld [vmem:[%s14] sm:$0x1]
          %v2856 = vld [vmem:[%s15] sm:$0x1]
          %v2857 = vsel %vm757, %v2849, 0.0
          %2858 = vadd.xlane.f32.xlu0 %v2857
          %v2859 = vpop.xlane.xlu0 %2858
          %v2860 = vmul.f32 %v2859, %v761
          %v2861 = vsub.f32 %v2849, %v2860
          %v2862 = vmul.f32 %v2861, %v2861
          %v2863 = vsel %vm757, %v2862, 0.0
          %2864 = vadd.xlane.f32.xlu0 %v2863
          %v2865 = vpop.xlane.xlu0 %2864
          %v2866 = vmul.f32 %v2865, %v761
          %v2867 = vadd.f32 %v2866, 1e-05
          %v2868 = vrsqrt.pop %v2867
          %v2869 = vmul.f32 %v2861, %v2868
          %v2871 = vlaneseq
          %v2872 = vshrl.u32 %v2871, 7
          %v2873 = vsub.s32 0, %v2872
          %v2874 = vrot.slane %v2855, %v2873
          %v2876 = vmul.f32 %v2869, %v2874
          %v2878 = vlaneseq
          %v2879 = vshrl.u32 %v2878, 7
          %v2880 = vsub.s32 0, %v2879
          %v2881 = vrot.slane %v2856, %v2880
          %v2883 = vadd.f32 %v2876, %v2881
          %2884 = vst.msk [vmem:[%s691] sm:$0xff] %vm757, %v2883
        $region92: #{tpu_custom_call.1} parent=83 // pred_fallthru
          _
        %s2885 = sand.u32 %s456, 1
        %s2886 = scalar_lea.sflag [#allocation4], %s2885
        %s2887 = sand.u32 %s456, 1
        %s2888 = smul.addr %s2887, 8
        %s2889 = scalar_lea.vmem [#allocation3], %s2888
        // Predicated region
        $region93: #{tpu_custom_call.1} parent=83 // pred_check
          %p2890 = pneg %p466
        $region94: #{tpu_custom_call.1} parent=83 // pred_check_branch
          %2892 = sbr.rel (%p2890) target = $region96
        $region95: #{tpu_custom_call.1} parent=83 // pred_region
          %s2894 = ssub.s32 128, 128
          %2895 = vsyncadd %s2886, %s2894
          %s2896 = smul.addr %s34, 128
          %s2897 = scalar_lea.hbm %s16, %s2896
          %s2899 = sshll.u32 %s2889, 4
          %s2900 = int_to_ptr.vmem [resolvable:$true] %s2899
          %2902 = dma.vmem_to_hbm [thread:$0]  %s2900, 128, %s2897, %s2886
        $region96: #{tpu_custom_call.1} parent=83 // pred_fallthru
          _
      $region84: #{tpu_custom_call.1} parent=5 // pred_fallthru
        _
      %p2903 = scmp.le.s32.totalorder 2, %s25
      // Predicated region
      $region97: #{tpu_custom_call.1} parent=5 // pred_check
        %p2904 = pneg %p2903
      $region98: #{tpu_custom_call.1} parent=5 // pred_check_branch
        %2906 = sbr.rel (%p2904) target = $region100
      $region99: #{tpu_custom_call.1} parent=5 // pred_region
        %s2907 = ssub.s32 %s25, 2
        // Predicated region
        $region101: #{tpu_custom_call.1} parent=99 // pred_check
          %p2908 = pneg %p472
        $region102: #{tpu_custom_call.1} parent=99 // pred_check_branch
          %2910 = sbr.rel (%p2908) target = $region104
        $region103: #{tpu_custom_call.1} parent=99 // pred_region
          %s2911 = sand.u32 %s457, 1
          %s2912 = scalar_lea.sflag [#allocation4], %s2911
          %s2913 = sand.u32 %s457, 1
          %s2914 = smul.addr %s2913, 8
          %s2915 = scalar_lea.vmem [#allocation3], %s2914
          %2916 = dma.done %s2912, 128
        $region104: #{tpu_custom_call.1} parent=99 // pred_fallthru
          _
      $region100: #{tpu_custom_call.1} parent=5 // pred_fallthru
        _
    $region6: #{tpu_custom_call.1} parent=1 // loop_footer
      %s29 = sadd.s32 1, %s25
    $region7: #{tpu_custom_call.1} parent=1 // loop_footer_branch
      %24 = sbr.rel target = $region3
    $region8: #{tpu_custom_call.1} parent=1 // loop_exit
      _
    %2917 = vsyncpa [#allocation4], 1
    %s2918 = scalar_lea.sflag [#allocation4], 1
    %2919 = vsyncpa %s2918, 1

</llo_original>
